<compile_context>
chip_gen: v6e
topology: v6e:2x2x1
jax: 0.10.0
libtpu: 0.0.40
codegen_flags: <defaults>
</compile_context>

<pallas_src>
import functools

import jax
import jax.numpy as jnp
from jax import lax
from jax.experimental import pallas as pl
from jax.experimental.pallas import tpu as pltpu

# Keep the XLA reference matmuls in full f32 so the Pallas-vs-XLA check is tight.
jax.config.update("jax_default_matmul_precision", "highest")


# --------------------------------------------------------------------------
# Fused forward kernel (one bag per grid step; everything stays in VMEM/vregs)
# --------------------------------------------------------------------------
def _mili_fused_kernel(inp_ref, keep_ref, li_w_ref, li_b_ref,
                       v2_ref, wbd_ref, lo_w_ref, lo_b_ref, out_ref,
                       *, n_layer, C):
    # inp_ref : (1, N, Din)          one bag of instances
    # keep_ref: (1, N, C)  float32   1.0 = keep instance, 0.0 = masked (layer 0 only)
    # li_w_ref: (Din, E)   li_b_ref: (1, E)
    # v2_ref  : (nLayer, E, C*DK)    V_i transposed/reshaped (lane-dense)
    # wbd_ref : (nLayer, C*DK, C)    block-diagonal W_i
    # lo_w_ref: (C, E, nSe)          output weight split per class chunk
    # lo_b_ref: (1, nSe)
    # out_ref : (1, 1, nSe)
    x = inp_ref[0]                                                    # (N, Din)

    # input linear (no activation, matches nn.Linear)
    re = jnp.dot(x, li_w_ref[...],
                 preferred_element_type=jnp.float32) + li_b_ref[...]   # (N, E)

    for i in range(n_layer):                                          # static unroll
        # s[l, c*DK+d] = tanh( re[l, :] @ V_i[c, :, d] )  -- one lane-dense MXU matmul
        s = jnp.tanh(jnp.dot(re, v2_ref[i],
                             preferred_element_type=jnp.float32))      # (L, C*DK)
        # scores[l, c] = s[l, c*DK:(c+1)*DK] @ W_i[c]     -- DK reduce on the MXU
        scores = jnp.dot(s, wbd_ref[i],
                         preferred_element_type=jnp.float32)           # (L, C)
        if i == 0:
            # mask applied in-kernel; finite bias keeps empty rows NaN-free
            scores = jnp.where(keep_ref[0] > 0.5, scores, -1e30)

        # softmax over the instance axis L (axis 0), independently per class c
        m = jnp.max(scores, axis=0, keepdims=True)                     # (1, C)
        e = jnp.exp(scores - m)                                        # (L, C)
        denom = jnp.sum(e, axis=0, keepdims=True)                      # (1, C)
        attn = e * pl.reciprocal(denom, approx=True)                   # (L, C)

        # re_new[c, :] = sum_l attn[l, c] * re[l, :]   (lhs-contracted MXU matmul)
        re = lax.dot_general(attn, re, (((0,), (0,)), ((), ())),
                             preferred_element_type=jnp.float32)       # (C, E)
        re = jnp.maximum(re, 0.0)

    # output linear on the flattened (C*E) representation, done as C small dots
    # so everything stays 2D (no lane/sublane reshapes inside the kernel).
    y = jnp.dot(re[0:1, :], lo_w_ref[0], preferred_element_type=jnp.float32)
    for c in range(1, C):
        y = y + jnp.dot(re[c:c + 1, :], lo_w_ref[c],
                        preferred_element_type=jnp.float32)            # (1, nSe)
    out_ref[0] = jnp.maximum(y + lo_b_ref[...], 0.0)


# --------------------------------------------------------------------------
# Parameters + forward
# --------------------------------------------------------------------------
def init_params(key, embedding_size, input_dim, C, DK, n_se, n_layer):
    keys = jax.random.split(key, 2 * n_layer + 4)
    params = {
        "li_w": jax.random.uniform(keys[0], (input_dim, embedding_size),
                                   jnp.float32, -0.3, 0.3),
        "li_b": jax.random.uniform(keys[1], (embedding_size,),
                                   jnp.float32, -0.3, 0.3),
        "V": [],
        "W": [],
    }
    for i in range(n_layer):
        params["V"].append(
            jax.random.uniform(keys[2 + 2 * i], (C, embedding_size, DK), jnp.float32))
        # torch param is (C, DK, 1); store it squeezed as (C, DK)
        params["W"].append(
            jax.random.uniform(keys[3 + 2 * i], (C, DK), jnp.float32))
    out_size = C * embedding_size
    params["lo_w"] = jax.random.uniform(keys[-2], (out_size, n_se),
                                        jnp.float32, -0.1, 0.1)
    params["lo_b"] = jax.random.uniform(keys[-1], (n_se,),
                                        jnp.float32, -0.1, 0.1)
    return params


def mili_forward(params, inp, mask):
    """inp: (B, N, inputDim) f32, mask: (B, C, N) bool -> (B, nSe) f32."""
    B, N, d_in = inp.shape
    n_layer = len(params["V"])
    C, E, DK = params["V"][0].shape
    n_se = params["lo_b"].shape[0]

    # Weight repacking (tiny, fused by XLA / cached under jit):
    #   V_i (C, E, DK)  -> V2_i  (E, C*DK)    so the attention projection is one matmul
    #   W_i (C, DK)     -> Wbd_i (C*DK, C)    block-diagonal, DK-reduce runs on the MXU
    v2 = jnp.stack([jnp.transpose(v, (1, 0, 2)).reshape(E, C * DK)
                    for v in params["V"]])                             # (nLayer, E, C*DK)
    eye = jnp.eye(C, dtype=jnp.float32)
    wbd = jnp.stack([(w[:, :, None] * eye[:, None, :]).reshape(C * DK, C)
                     for w in params["W"]])                            # (nLayer, C*DK, C)
    lo_w3 = params["lo_w"].reshape(C, E, n_se)                         # (C, E, nSe)
    li_b = params["li_b"].reshape(1, E)
    lo_b = params["lo_b"].reshape(1, n_se)
    keep = jnp.transpose(mask, (0, 2, 1)).astype(jnp.float32)          # (B, N, C)

    kernel = functools.partial(_mili_fused_kernel, n_layer=n_layer, C=C)

    out3 = pl.pallas_call(
        kernel,
        out_shape=jax.ShapeDtypeStruct((B, 1, n_se), jnp.float32),
        grid_spec=pltpu.PrefetchScalarGridSpec(
            num_scalar_prefetch=0,
            grid=(B,),
            in_specs=[
                pl.BlockSpec((1, N, d_in), lambda b: (b, 0, 0)),        # inp (per bag)
                pl.BlockSpec((1, N, C), lambda b: (b, 0, 0)),           # keep mask
                pl.BlockSpec((d_in, E), lambda b: (0, 0)),              # li_w (resident)
                pl.BlockSpec((1, E), lambda b: (0, 0)),                 # li_b
                pl.BlockSpec((n_layer, E, C * DK), lambda b: (0, 0, 0)),  # V2 stack
                pl.BlockSpec((n_layer, C * DK, C), lambda b: (0, 0, 0)),  # Wbd stack
                pl.BlockSpec((C, E, n_se), lambda b: (0, 0, 0)),        # lo_w
                pl.BlockSpec((1, n_se), lambda b: (0, 0)),              # lo_b
            ],
            out_specs=pl.BlockSpec((1, 1, n_se), lambda b: (b, 0, 0)),
        ),
        compiler_params=pltpu.CompilerParams(
            dimension_semantics=("parallel",)),
    )(inp, keep, params["li_w"], li_b, v2, wbd, lo_w3, lo_b)
    return out3.reshape(B, n_se)


# --------------------------------------------------------------------------
# Pure-JAX reference (mirrors the PyTorch forward exactly)
# --------------------------------------------------------------------------
def mili_reference(params, inp, mask):
    B = inp.shape[0]
    re = inp @ params["li_w"] + params["li_b"]                         # (B, N, E)
    for i, (V, W) in enumerate(zip(params["V"], params["W"])):
        s = jnp.tanh(jnp.einsum("ble,ced->bcld", re, V))               # (B, C, L, DK)
        scores = jnp.einsum("bcld,cd->bcl", s, W)                      # (B, C, L)
        if i == 0:
            scores = jnp.where(mask, scores, -jnp.inf)
        attn = jax.nn.softmax(scores, axis=-1)
        re = jnp.maximum(jnp.einsum("bcl,ble->bce", attn, re), 0.0)    # (B, C, E)
    flat = re.reshape(B, -1)
    return jnp.maximum(flat @ params["lo_w"] + params["lo_b"], 0.0)


# --------------------------------------------------------------------------
if __name__ == "__main__":
    # small shapes consistent with the module
    B, N, inputDim = 2, 8, 12          # N == nD (instances per bag)
    embeddingSize, C, DK = 32, 4, 16
    nSe, nLayer = 5, 2

    key = jax.random.PRNGKey(0)
    k_param, k_inp = jax.random.split(key)
    params = init_params(k_param, embeddingSize, inputDim, C, DK, nSe, nLayer)

    inp = jax.random.normal(k_inp, (B, N, inputDim), jnp.float32)
    # valid-instance mask: bag 0 has all N instances, bag 1 has N-3
    lengths = jnp.array([N, N - 3])
    mask_bn = jnp.arange(N)[None, :] < lengths[:, None]                # (B, N)
    mask = jnp.broadcast_to(mask_bn[:, None, :], (B, C, N))            # (B, C, N)

    out = jax.jit(mili_forward)(params, inp, mask)
    out = jax.block_until_ready(out)

    ref = mili_reference(params, inp, mask)

    assert out.shape == (B, nSe), out.shape
    assert bool(jnp.all(jnp.isfinite(out)))
    assert bool(jnp.allclose(out, ref, rtol=2e-2, atol=2e-2)), (out, ref)
    print("KERNEL_OK")
</pallas_src>

<mosaic_0001>
module attributes {stable_mosaic.version = 11 : i64} {
  func.func @_mili_fused_kernel(%arg0: i32, %arg1: memref<1x8x12xf32, #tpu.memory_space<vmem>>, %arg2: memref<1x8x4xf32, #tpu.memory_space<vmem>>, %arg3: memref<12x32xf32, #tpu.memory_space<vmem>>, %arg4: memref<1x32xf32, #tpu.memory_space<vmem>>, %arg5: memref<2x32x64xf32, #tpu.memory_space<vmem>>, %arg6: memref<2x64x4xf32, #tpu.memory_space<vmem>>, %arg7: memref<4x32x5xf32, #tpu.memory_space<vmem>>, %arg8: memref<1x5xf32, #tpu.memory_space<vmem>>, %arg9: memref<1x1x5xf32, #tpu.memory_space<vmem>>) attributes {dimension_semantics = [#tpu.dimension_semantics<parallel>], iteration_bounds = array<i64: 2>, scalar_prefetch = 0 : i64, scratch_operands = 0 : i64, tpu.core_type = #tpu.core_type<tc>, window_params = [{transform_indices = @transform_0, window_bounds = array<i64: 1, 8, 12>}, {transform_indices = @transform_1, window_bounds = array<i64: 1, 8, 4>}, {pipeline_mode = #tpu.pipeline_mode<synchronous>, transform_indices = @transform_2, window_bounds = array<i64: 12, 32>}, {pipeline_mode = #tpu.pipeline_mode<synchronous>, transform_indices = @transform_3, window_bounds = array<i64: 1, 32>}, {pipeline_mode = #tpu.pipeline_mode<synchronous>, transform_indices = @transform_4, window_bounds = array<i64: 2, 32, 64>}, {pipeline_mode = #tpu.pipeline_mode<synchronous>, transform_indices = @transform_5, window_bounds = array<i64: 2, 64, 4>}, {pipeline_mode = #tpu.pipeline_mode<synchronous>, transform_indices = @transform_6, window_bounds = array<i64: 4, 32, 5>}, {pipeline_mode = #tpu.pipeline_mode<synchronous>, transform_indices = @transform_7, window_bounds = array<i64: 1, 5>}, {transform_indices = @transform_8, window_bounds = array<i64: 1, 1, 5>}]} {
    %c0 = arith.constant 0 : index
    %c0_0 = arith.constant 0 : index
    %c0_1 = arith.constant 0 : index
    %0 = vector.load %arg1[%c0, %c0_0, %c0_1] : memref<1x8x12xf32, #tpu.memory_space<vmem>>, vector<1x8x12xf32>
    %1 = vector.shape_cast %0 : vector<1x8x12xf32> to vector<8x12xf32>
    %c0_2 = arith.constant 0 : index
    %c0_3 = arith.constant 0 : index
    %2 = vector.load %arg3[%c0_2, %c0_3] : memref<12x32xf32, #tpu.memory_space<vmem>>, vector<12x32xf32>
    %cst = arith.constant dense<0.000000e+00> : vector<8x32xf32>
    %3 = tpu.matmul %1, %2, %cst {dimension_numbers = #tpu.dot_dimension_numbers<[1], [0], [0], [1], [0, 0, 1, 1], [], []>, precision = #tpu.contract_precision<fp32>} : vector<8x12xf32>, vector<12x32xf32>, vector<8x32xf32> -> vector<8x32xf32>
    %c0_4 = arith.constant 0 : index
    %c0_5 = arith.constant 0 : index
    %4 = vector.load %arg4[%c0_4, %c0_5] : memref<1x32xf32, #tpu.memory_space<vmem>>, vector<1x32xf32>
    %5 = vector.broadcast %4 : vector<1x32xf32> to vector<8x32xf32>
    %6 = arith.addf %3, %5 : vector<8x32xf32>
    %c0_6 = arith.constant 0 : index
    %c0_7 = arith.constant 0 : index
    %c0_8 = arith.constant 0 : index
    %7 = vector.load %arg5[%c0_6, %c0_7, %c0_8] : memref<2x32x64xf32, #tpu.memory_space<vmem>>, vector<1x32x64xf32>
    %8 = vector.shape_cast %7 : vector<1x32x64xf32> to vector<32x64xf32>
    %cst_9 = arith.constant dense<0.000000e+00> : vector<8x64xf32>
    %9 = tpu.matmul %6, %8, %cst_9 {dimension_numbers = #tpu.dot_dimension_numbers<[1], [0], [0], [1], [0, 0, 1, 1], [], []>, precision = #tpu.contract_precision<fp32>} : vector<8x32xf32>, vector<32x64xf32>, vector<8x64xf32> -> vector<8x64xf32>
    %10 = math.tanh %9 : vector<8x64xf32>
    %c0_10 = arith.constant 0 : index
    %c0_11 = arith.constant 0 : index
    %c0_12 = arith.constant 0 : index
    %11 = vector.load %arg6[%c0_10, %c0_11, %c0_12] : memref<2x64x4xf32, #tpu.memory_space<vmem>>, vector<1x64x4xf32>
    %12 = vector.shape_cast %11 : vector<1x64x4xf32> to vector<64x4xf32>
    %cst_13 = arith.constant dense<0.000000e+00> : vector<8x4xf32>
    %13 = tpu.matmul %10, %12, %cst_13 {dimension_numbers = #tpu.dot_dimension_numbers<[1], [0], [0], [1], [0, 0, 1, 1], [], []>, precision = #tpu.contract_precision<fp32>} : vector<8x64xf32>, vector<64x4xf32>, vector<8x4xf32> -> vector<8x4xf32>
    %c0_14 = arith.constant 0 : index
    %c0_15 = arith.constant 0 : index
    %c0_16 = arith.constant 0 : index
    %14 = vector.load %arg2[%c0_14, %c0_15, %c0_16] : memref<1x8x4xf32, #tpu.memory_space<vmem>>, vector<1x8x4xf32>
    %15 = vector.shape_cast %14 : vector<1x8x4xf32> to vector<8x4xf32>
    %cst_17 = arith.constant 5.000000e-01 : f32
    %16 = vector.broadcast %cst_17 : f32 to vector<8x4xf32>
    %17 = arith.cmpf ogt, %15, %16 : vector<8x4xf32>
    %cst_18 = arith.constant -1.000000e+30 : f32
    %18 = vector.broadcast %cst_18 : f32 to vector<8x4xf32>
    %19 = arith.select %17, %13, %18 : vector<8x4xi1>, vector<8x4xf32>
    %cst_19 = arith.constant dense<0xFF800000> : vector<4xf32>
    %20 = vector.multi_reduction <maximumf>, %19, %cst_19 [0] : vector<8x4xf32> to vector<4xf32>
    %21 = vector.shape_cast %20 : vector<4xf32> to vector<1x4xf32>
    %22 = vector.broadcast %21 : vector<1x4xf32> to vector<8x4xf32>
    %23 = arith.subf %19, %22 : vector<8x4xf32>
    %24 = math.exp %23 : vector<8x4xf32>
    %cst_20 = arith.constant dense<0.000000e+00> : vector<4xf32>
    %25 = vector.multi_reduction <add>, %24, %cst_20 [0] : vector<8x4xf32> to vector<4xf32>
    %26 = vector.shape_cast %25 : vector<4xf32> to vector<1x4xf32>
    %27 = tpu.reciprocal %26 {approx = true} : vector<1x4xf32> -> vector<1x4xf32>
    %28 = vector.broadcast %27 : vector<1x4xf32> to vector<8x4xf32>
    %29 = arith.mulf %24, %28 : vector<8x4xf32>
    %cst_21 = arith.constant dense<0.000000e+00> : vector<4x32xf32>
    %30 = tpu.matmul %29, %6, %cst_21 {dimension_numbers = #tpu.dot_dimension_numbers<[0], [0], [1], [1], [0, 1, 1, 1], [], []>, precision = #tpu.contract_precision<fp32>} : vector<8x4xf32>, vector<8x32xf32>, vector<4x32xf32> -> vector<4x32xf32>
    %cst_22 = arith.constant 0.000000e+00 : f32
    %31 = vector.broadcast %cst_22 : f32 to vector<4x32xf32>
    %32 = arith.maximumf %30, %31 : vector<4x32xf32>
    %c1 = arith.constant 1 : index
    %c0_23 = arith.constant 0 : index
    %c0_24 = arith.constant 0 : index
    %33 = vector.load %arg5[%c1, %c0_23, %c0_24] : memref<2x32x64xf32, #tpu.memory_space<vmem>>, vector<1x32x64xf32>
    %34 = vector.shape_cast %33 : vector<1x32x64xf32> to vector<32x64xf32>
    %cst_25 = arith.constant dense<0.000000e+00> : vector<4x64xf32>
    %35 = tpu.matmul %32, %34, %cst_25 {dimension_numbers = #tpu.dot_dimension_numbers<[1], [0], [0], [1], [0, 0, 1, 1], [], []>, precision = #tpu.contract_precision<fp32>} : vector<4x32xf32>, vector<32x64xf32>, vector<4x64xf32> -> vector<4x64xf32>
    %36 = math.tanh %35 : vector<4x64xf32>
    %c1_26 = arith.constant 1 : index
    %c0_27 = arith.constant 0 : index
    %c0_28 = arith.constant 0 : index
    %37 = vector.load %arg6[%c1_26, %c0_27, %c0_28] : memref<2x64x4xf32, #tpu.memory_space<vmem>>, vector<1x64x4xf32>
    %38 = vector.shape_cast %37 : vector<1x64x4xf32> to vector<64x4xf32>
    %cst_29 = arith.constant dense<0.000000e+00> : vector<4x4xf32>
    %39 = tpu.matmul %36, %38, %cst_29 {dimension_numbers = #tpu.dot_dimension_numbers<[1], [0], [0], [1], [0, 0, 1, 1], [], []>, precision = #tpu.contract_precision<fp32>} : vector<4x64xf32>, vector<64x4xf32>, vector<4x4xf32> -> vector<4x4xf32>
    %cst_30 = arith.constant dense<0xFF800000> : vector<4xf32>
    %40 = vector.multi_reduction <maximumf>, %39, %cst_30 [0] : vector<4x4xf32> to vector<4xf32>
    %41 = vector.shape_cast %40 : vector<4xf32> to vector<1x4xf32>
    %42 = vector.broadcast %41 : vector<1x4xf32> to vector<4x4xf32>
    %43 = arith.subf %39, %42 : vector<4x4xf32>
    %44 = math.exp %43 : vector<4x4xf32>
    %cst_31 = arith.constant dense<0.000000e+00> : vector<4xf32>
    %45 = vector.multi_reduction <add>, %44, %cst_31 [0] : vector<4x4xf32> to vector<4xf32>
    %46 = vector.shape_cast %45 : vector<4xf32> to vector<1x4xf32>
    %47 = tpu.reciprocal %46 {approx = true} : vector<1x4xf32> -> vector<1x4xf32>
    %48 = vector.broadcast %47 : vector<1x4xf32> to vector<4x4xf32>
    %49 = arith.mulf %44, %48 : vector<4x4xf32>
    %cst_32 = arith.constant dense<0.000000e+00> : vector<4x32xf32>
    %50 = tpu.matmul %49, %32, %cst_32 {dimension_numbers = #tpu.dot_dimension_numbers<[0], [0], [1], [1], [0, 1, 1, 1], [], []>, precision = #tpu.contract_precision<fp32>} : vector<4x4xf32>, vector<4x32xf32>, vector<4x32xf32> -> vector<4x32xf32>
    %cst_33 = arith.constant 0.000000e+00 : f32
    %51 = vector.broadcast %cst_33 : f32 to vector<4x32xf32>
    %52 = arith.maximumf %50, %51 : vector<4x32xf32>
    %53 = vector.extract_strided_slice %52 {offsets = [0, 0], sizes = [1, 32], strides = [1, 1]} : vector<4x32xf32> to vector<1x32xf32>
    %c0_34 = arith.constant 0 : index
    %c0_35 = arith.constant 0 : index
    %c0_36 = arith.constant 0 : index
    %54 = vector.load %arg7[%c0_34, %c0_35, %c0_36] : memref<4x32x5xf32, #tpu.memory_space<vmem>>, vector<1x32x5xf32>
    %55 = vector.shape_cast %54 : vector<1x32x5xf32> to vector<32x5xf32>
    %cst_37 = arith.constant dense<0.000000e+00> : vector<1x5xf32>
    %56 = tpu.matmul %53, %55, %cst_37 {dimension_numbers = #tpu.dot_dimension_numbers<[1], [0], [0], [1], [0, 0, 1, 1], [], []>, precision = #tpu.contract_precision<fp32>} : vector<1x32xf32>, vector<32x5xf32>, vector<1x5xf32> -> vector<1x5xf32>
    %57 = vector.extract_strided_slice %52 {offsets = [1, 0], sizes = [1, 32], strides = [1, 1]} : vector<4x32xf32> to vector<1x32xf32>
    %c1_38 = arith.constant 1 : index
    %c0_39 = arith.constant 0 : index
    %c0_40 = arith.constant 0 : index
    %58 = vector.load %arg7[%c1_38, %c0_39, %c0_40] : memref<4x32x5xf32, #tpu.memory_space<vmem>>, vector<1x32x5xf32>
    %59 = vector.shape_cast %58 : vector<1x32x5xf32> to vector<32x5xf32>
    %cst_41 = arith.constant dense<0.000000e+00> : vector<1x5xf32>
    %60 = tpu.matmul %57, %59, %cst_41 {dimension_numbers = #tpu.dot_dimension_numbers<[1], [0], [0], [1], [0, 0, 1, 1], [], []>, precision = #tpu.contract_precision<fp32>} : vector<1x32xf32>, vector<32x5xf32>, vector<1x5xf32> -> vector<1x5xf32>
    %61 = arith.addf %56, %60 : vector<1x5xf32>
    %62 = vector.extract_strided_slice %52 {offsets = [2, 0], sizes = [1, 32], strides = [1, 1]} : vector<4x32xf32> to vector<1x32xf32>
    %c2 = arith.constant 2 : index
    %c0_42 = arith.constant 0 : index
    %c0_43 = arith.constant 0 : index
    %63 = vector.load %arg7[%c2, %c0_42, %c0_43] : memref<4x32x5xf32, #tpu.memory_space<vmem>>, vector<1x32x5xf32>
    %64 = vector.shape_cast %63 : vector<1x32x5xf32> to vector<32x5xf32>
    %cst_44 = arith.constant dense<0.000000e+00> : vector<1x5xf32>
    %65 = tpu.matmul %62, %64, %cst_44 {dimension_numbers = #tpu.dot_dimension_numbers<[1], [0], [0], [1], [0, 0, 1, 1], [], []>, precision = #tpu.contract_precision<fp32>} : vector<1x32xf32>, vector<32x5xf32>, vector<1x5xf32> -> vector<1x5xf32>
    %66 = arith.addf %61, %65 : vector<1x5xf32>
    %67 = vector.extract_strided_slice %52 {offsets = [3, 0], sizes = [1, 32], strides = [1, 1]} : vector<4x32xf32> to vector<1x32xf32>
    %c3 = arith.constant 3 : index
    %c0_45 = arith.constant 0 : index
    %c0_46 = arith.constant 0 : index
    %68 = vector.load %arg7[%c3, %c0_45, %c0_46] : memref<4x32x5xf32, #tpu.memory_space<vmem>>, vector<1x32x5xf32>
    %69 = vector.shape_cast %68 : vector<1x32x5xf32> to vector<32x5xf32>
    %cst_47 = arith.constant dense<0.000000e+00> : vector<1x5xf32>
    %70 = tpu.matmul %67, %69, %cst_47 {dimension_numbers = #tpu.dot_dimension_numbers<[1], [0], [0], [1], [0, 0, 1, 1], [], []>, precision = #tpu.contract_precision<fp32>} : vector<1x32xf32>, vector<32x5xf32>, vector<1x5xf32> -> vector<1x5xf32>
    %71 = arith.addf %66, %70 : vector<1x5xf32>
    %c0_48 = arith.constant 0 : index
    %c0_49 = arith.constant 0 : index
    %72 = vector.load %arg8[%c0_48, %c0_49] : memref<1x5xf32, #tpu.memory_space<vmem>>, vector<1x5xf32>
    %73 = arith.addf %71, %72 : vector<1x5xf32>
    %cst_50 = arith.constant 0.000000e+00 : f32
    %74 = vector.broadcast %cst_50 : f32 to vector<1x5xf32>
    %75 = arith.maximumf %73, %74 : vector<1x5xf32>
    %c0_51 = arith.constant 0 : index
    %c0_52 = arith.constant 0 : index
    %c0_53 = arith.constant 0 : index
    %76 = vector.load %arg9[%c0_51, %c0_52, %c0_53] : memref<1x1x5xf32, #tpu.memory_space<vmem>>, vector<1x1x5xf32>
    %77 = vector.shape_cast %76 : vector<1x1x5xf32> to vector<1x5xf32>
    %78 = vector.shape_cast %75 : vector<1x5xf32> to vector<1x1x5xf32>
    tpu.vector_store %arg9[%c0_51, %c0_52, %c0_53], %78 {strides = array<i32>} : memref<1x1x5xf32, #tpu.memory_space<vmem>>, vector<1x1x5xf32>,
    return
  }
  func.func @transform_0(%arg0: i32) -> (i32, i32, i32) {
    %c0_i32 = arith.constant 0 : i32
    %c0_i32_0 = arith.constant 0 : i32
    %c0_i32_1 = arith.constant 0 : i32
    return %arg0, %c0_i32, %c0_i32_0 : i32, i32, i32
  }
  func.func @transform_1(%arg0: i32) -> (i32, i32, i32) {
    %c0_i32 = arith.constant 0 : i32
    %c0_i32_0 = arith.constant 0 : i32
    %c0_i32_1 = arith.constant 0 : i32
    return %arg0, %c0_i32, %c0_i32_0 : i32, i32, i32
  }
  func.func @transform_2(%arg0: i32) -> (i32, i32) {
    %c0_i32 = arith.constant 0 : i32
    %c0_i32_0 = arith.constant 0 : i32
    %c0_i32_1 = arith.constant 0 : i32
    return %c0_i32, %c0_i32_0 : i32, i32
  }
  func.func @transform_3(%arg0: i32) -> (i32, i32) {
    %c0_i32 = arith.constant 0 : i32
    %c0_i32_0 = arith.constant 0 : i32
    %c0_i32_1 = arith.constant 0 : i32
    return %c0_i32, %c0_i32_0 : i32, i32
  }
  func.func @transform_4(%arg0: i32) -> (i32, i32, i32) {
    %c0_i32 = arith.constant 0 : i32
    %c0_i32_0 = arith.constant 0 : i32
    %c0_i32_1 = arith.constant 0 : i32
    %c0_i32_2 = arith.constant 0 : i32
    return %c0_i32, %c0_i32_0, %c0_i32_1 : i32, i32, i32
  }
  func.func @transform_5(%arg0: i32) -> (i32, i32, i32) {
    %c0_i32 = arith.constant 0 : i32
    %c0_i32_0 = arith.constant 0 : i32
    %c0_i32_1 = arith.constant 0 : i32
    %c0_i32_2 = arith.constant 0 : i32
    return %c0_i32, %c0_i32_0, %c0_i32_1 : i32, i32, i32
  }
  func.func @transform_6(%arg0: i32) -> (i32, i32, i32) {
    %c0_i32 = arith.constant 0 : i32
    %c0_i32_0 = arith.constant 0 : i32
    %c0_i32_1 = arith.constant 0 : i32
    %c0_i32_2 = arith.constant 0 : i32
    return %c0_i32, %c0_i32_0, %c0_i32_1 : i32, i32, i32
  }
  func.func @transform_7(%arg0: i32) -> (i32, i32) {
    %c0_i32 = arith.constant 0 : i32
    %c0_i32_0 = arith.constant 0 : i32
    %c0_i32_1 = arith.constant 0 : i32
    return %c0_i32, %c0_i32_0 : i32, i32
  }
  func.func @transform_8(%arg0: i32) -> (i32, i32, i32) {
    %c0_i32 = arith.constant 0 : i32
    %c0_i32_0 = arith.constant 0 : i32
    %c0_i32_1 = arith.constant 0 : i32
    return %arg0, %c0_i32, %c0_i32_0 : i32, i32, i32
  }
}

</mosaic_0001>

<llo_original>
// kernel: mili_forward.1
$region0: #{mili_forward.1}
  #allocation0 [shape = 'u32[]', space=smem, size = 0x4, offset = 0x4, fixed_abs, tag = 'smem constant byte address 0x4 - core index']
  #allocation1 [shape = 'u32[144,128]{1,0:T(1,128)}', space=vmem, size = 0x12000, scoped, tag = 'internal scratch']
  %s0 = inlined_call_operand.vmem [shape: f32[2,8,12], index: 0, kind: input, shape index: {}]
  %s1 = inlined_call_operand.vmem [shape: f32[2,8,4], index: 1, kind: input, shape index: {}]
  %s2 = inlined_call_operand.vmem [shape: f32[12,32], index: 2, kind: input, shape index: {}]
  %s3 = inlined_call_operand.vmem [shape: f32[1,32], index: 3, kind: input, shape index: {}]
  %s4 = inlined_call_operand.vmem [shape: f32[2,32,64], index: 4, kind: input, shape index: {}]
  %s5 = inlined_call_operand.vmem [shape: f32[2,64,4], index: 5, kind: input, shape index: {}]
  %s6 = inlined_call_operand.vmem [shape: f32[4,32,5], index: 6, kind: input, shape index: {}]
  %s7 = inlined_call_operand.vmem [shape: f32[1,5], index: 7, kind: input, shape index: {}]
  %s8 = inlined_call_operand.hbm [shape: f32[2,1,5], index: 8, kind: output, shape index: {}]
  %s9 = sld [smem:[#allocation0]]
  $region65: #{mili_forward.1} parent=0
    _
  %s11 = ssub.s32 1, %s9
  %s12 = scalar_select 0, %s11, %s9
  $region1: #{mili_forward.1} parent=0
    #allocation2 [shape = 'u8[1024]{0}', space=vmem, size = 0x400, scoped, tag = 'output window, operand 0']
    #allocation3 [shape = 's32[2]{0}', space=sflag, size = 0x8, scoped, tag = 'scoped memory for mili_forward.1']
    %13 = vsyncpa [#allocation3], 0
    %s14 = scalar_lea.sflag [#allocation3], 1
    %15 = vsyncpa %s14, 0
    loop: start=0, step=1, limit=4
    $region2: #{mili_forward.1} parent=1 // loop_pre_header
      _
    $region3: #{mili_forward.1} parent=1 // loop_header
      %s17 = sphi 0, %s21
      %p18 = scmp.ge.s32.totalorder %s17, 4
      %s27 = sphi 0, %s29
      %s30 = sphi 0, %s27
      %s31 = sphi 0, %s30
      %s47 = sphi 0, %s31
      %s53 = sphi 0, %s55
      %s56 = sphi 0, %s53
      %s57 = sphi 0, %s56
      %s73 = sphi 0, %s57
      %s77 = sphi 0, %s77
      %s79 = sphi 0, %s77
      %s80 = sphi 0, %s79
      %s94 = sphi 0, %s80
      %s98 = sphi 0, %s98
      %s100 = sphi 0, %s98
      %s101 = sphi 0, %s100
      %s115 = sphi 0, %s101
      %s119 = sphi 0, %s119
      %s121 = sphi 0, %s119
      %s122 = sphi 0, %s121
      %s136 = sphi 0, %s122
      %s140 = sphi 0, %s140
      %s142 = sphi 0, %s140
      %s143 = sphi 0, %s142
      %s157 = sphi 0, %s143
      %s161 = sphi 0, %s161
      %s163 = sphi 0, %s161
      %s164 = sphi 0, %s163
      %s178 = sphi 0, %s164
      %s182 = sphi 0, %s182
      %s184 = sphi 0, %s182
      %s185 = sphi 0, %s184
      %s199 = sphi 0, %s185
      %s205 = sphi 0, %s207
      %s208 = sphi 0, %s205
      %s209 = sphi 0, %s208
      %s225 = sphi 0, %s209
    $region4: #{mili_forward.1} parent=1 // loop_header_branch
      %20 = sbr.rel (%p18) target = $region8
    $region5: #{mili_forward.1} parent=1 // loop_body
      %s22 = ssub.s32 %s17, 1
      %s23 = ssub.s32 %s17, 2
      %s24 = sadd.s32 %s17, 1
      %s25 = ssub.s32 %s17, %s24
      %p26 = scmp.eq.s32.totalorder %s25, 0
      %s28 = sadd.s32 %s27, 1
      %s29 = scalar_select %p26, %s27, %s28
      %p32 = pneg %p26
      %p33 = scmp.eq.s32.totalorder %s17, 1
      %p34 = por %p32, %p33
      %p35 = scmp.ne.s32.totalorder %s27, %s30
      %p36 = scmp.eq.s32.totalorder %s17, 0
      %p37 = por %p35, %p36
      %p38 = scmp.ne.s32.totalorder %s27, %s30
      %p39 = scmp.eq.s32.totalorder %s22, 1
      %p40 = por %p38, %p39
      %p41 = scmp.ne.s32.totalorder %s30, %s31
      %p42 = scmp.eq.s32.totalorder %s22, 0
      %p43 = por %p41, %p42
      %p44 = scmp.ne.s32.totalorder %s30, %s31
      %p45 = scmp.eq.s32.totalorder %s23, 1
      %p46 = por %p44, %p45
      %p48 = scmp.ne.s32.totalorder %s31, %s47
      %p49 = scmp.eq.s32.totalorder %s23, 0
      %p50 = por %p48, %p49
      %s51 = ssub.s32 %s17, %s24
      %p52 = scmp.eq.s32.totalorder %s51, 0
      %s54 = sadd.s32 %s53, 1
      %s55 = scalar_select %p52, %s53, %s54
      %p58 = pneg %p52
      %p59 = scmp.eq.s32.totalorder %s17, 1
      %p60 = por %p58, %p59
      %p61 = scmp.ne.s32.totalorder %s53, %s56
      %p62 = scmp.eq.s32.totalorder %s17, 0
      %p63 = por %p61, %p62
      %p64 = scmp.ne.s32.totalorder %s53, %s56
      %p65 = scmp.eq.s32.totalorder %s22, 1
      %p66 = por %p64, %p65
      %p67 = scmp.ne.s32.totalorder %s56, %s57
      %p68 = scmp.eq.s32.totalorder %s22, 0
      %p69 = por %p67, %p68
      %p70 = scmp.ne.s32.totalorder %s56, %s57
      %p71 = scmp.eq.s32.totalorder %s23, 1
      %p72 = por %p70, %p71
      %p74 = scmp.ne.s32.totalorder %s57, %s73
      %p75 = scmp.eq.s32.totalorder %s23, 0
      %p76 = por %p74, %p75
      %s78 = sadd.s32 %s77, 1
      %p81 = scmp.eq.s32.totalorder %s17, 1
      %p82 = scmp.ne.s32.totalorder %s77, %s79
      %p83 = scmp.eq.s32.totalorder %s17, 0
      %p84 = por %p82, %p83
      %p85 = scmp.ne.s32.totalorder %s77, %s79
      %p86 = scmp.eq.s32.totalorder %s22, 1
      %p87 = por %p85, %p86
      %p88 = scmp.ne.s32.totalorder %s79, %s80
      %p89 = scmp.eq.s32.totalorder %s22, 0
      %p90 = por %p88, %p89
      %p91 = scmp.ne.s32.totalorder %s79, %s80
      %p92 = scmp.eq.s32.totalorder %s23, 1
      %p93 = por %p91, %p92
      %p95 = scmp.ne.s32.totalorder %s80, %s94
      %p96 = scmp.eq.s32.totalorder %s23, 0
      %p97 = por %p95, %p96
      %s99 = sadd.s32 %s98, 1
      %p102 = scmp.eq.s32.totalorder %s17, 1
      %p103 = scmp.ne.s32.totalorder %s98, %s100
      %p104 = scmp.eq.s32.totalorder %s17, 0
      %p105 = por %p103, %p104
      %p106 = scmp.ne.s32.totalorder %s98, %s100
      %p107 = scmp.eq.s32.totalorder %s22, 1
      %p108 = por %p106, %p107
      %p109 = scmp.ne.s32.totalorder %s100, %s101
      %p110 = scmp.eq.s32.totalorder %s22, 0
      %p111 = por %p109, %p110
      %p112 = scmp.ne.s32.totalorder %s100, %s101
      %p113 = scmp.eq.s32.totalorder %s23, 1
      %p114 = por %p112, %p113
      %p116 = scmp.ne.s32.totalorder %s101, %s115
      %p117 = scmp.eq.s32.totalorder %s23, 0
      %p118 = por %p116, %p117
      %s120 = sadd.s32 %s119, 1
      %p123 = scmp.eq.s32.totalorder %s17, 1
      %p124 = scmp.ne.s32.totalorder %s119, %s121
      %p125 = scmp.eq.s32.totalorder %s17, 0
      %p126 = por %p124, %p125
      %p127 = scmp.ne.s32.totalorder %s119, %s121
      %p128 = scmp.eq.s32.totalorder %s22, 1
      %p129 = por %p127, %p128
      %p130 = scmp.ne.s32.totalorder %s121, %s122
      %p131 = scmp.eq.s32.totalorder %s22, 0
      %p132 = por %p130, %p131
      %p133 = scmp.ne.s32.totalorder %s121, %s122
      %p134 = scmp.eq.s32.totalorder %s23, 1
      %p135 = por %p133, %p134
      %p137 = scmp.ne.s32.totalorder %s122, %s136
      %p138 = scmp.eq.s32.totalorder %s23, 0
      %p139 = por %p137, %p138
      %s141 = sadd.s32 %s140, 1
      %p144 = scmp.eq.s32.totalorder %s17, 1
      %p145 = scmp.ne.s32.totalorder %s140, %s142
      %p146 = scmp.eq.s32.totalorder %s17, 0
      %p147 = por %p145, %p146
      %p148 = scmp.ne.s32.totalorder %s140, %s142
      %p149 = scmp.eq.s32.totalorder %s22, 1
      %p150 = por %p148, %p149
      %p151 = scmp.ne.s32.totalorder %s142, %s143
      %p152 = scmp.eq.s32.totalorder %s22, 0
      %p153 = por %p151, %p152
      %p154 = scmp.ne.s32.totalorder %s142, %s143
      %p155 = scmp.eq.s32.totalorder %s23, 1
      %p156 = por %p154, %p155
      %p158 = scmp.ne.s32.totalorder %s143, %s157
      %p159 = scmp.eq.s32.totalorder %s23, 0
      %p160 = por %p158, %p159
      %s162 = sadd.s32 %s161, 1
      %p165 = scmp.eq.s32.totalorder %s17, 1
      %p166 = scmp.ne.s32.totalorder %s161, %s163
      %p167 = scmp.eq.s32.totalorder %s17, 0
      %p168 = por %p166, %p167
      %p169 = scmp.ne.s32.totalorder %s161, %s163
      %p170 = scmp.eq.s32.totalorder %s22, 1
      %p171 = por %p169, %p170
      %p172 = scmp.ne.s32.totalorder %s163, %s164
      %p173 = scmp.eq.s32.totalorder %s22, 0
      %p174 = por %p172, %p173
      %p175 = scmp.ne.s32.totalorder %s163, %s164
      %p176 = scmp.eq.s32.totalorder %s23, 1
      %p177 = por %p175, %p176
      %p179 = scmp.ne.s32.totalorder %s164, %s178
      %p180 = scmp.eq.s32.totalorder %s23, 0
      %p181 = por %p179, %p180
      %s183 = sadd.s32 %s182, 1
      %p186 = scmp.eq.s32.totalorder %s17, 1
      %p187 = scmp.ne.s32.totalorder %s182, %s184
      %p188 = scmp.eq.s32.totalorder %s17, 0
      %p189 = por %p187, %p188
      %p190 = scmp.ne.s32.totalorder %s182, %s184
      %p191 = scmp.eq.s32.totalorder %s22, 1
      %p192 = por %p190, %p191
      %p193 = scmp.ne.s32.totalorder %s184, %s185
      %p194 = scmp.eq.s32.totalorder %s22, 0
      %p195 = por %p193, %p194
      %p196 = scmp.ne.s32.totalorder %s184, %s185
      %p197 = scmp.eq.s32.totalorder %s23, 1
      %p198 = por %p196, %p197
      %p200 = scmp.ne.s32.totalorder %s185, %s199
      %p201 = scmp.eq.s32.totalorder %s23, 0
      %p202 = por %p200, %p201
      %s203 = ssub.s32 %s17, %s24
      %p204 = scmp.eq.s32.totalorder %s203, 0
      %s206 = sadd.s32 %s205, 1
      %s207 = scalar_select %p204, %s205, %s206
      %p210 = pneg %p204
      %p211 = scmp.eq.s32.totalorder %s17, 1
      %p212 = por %p210, %p211
      %p213 = scmp.ne.s32.totalorder %s205, %s208
      %p214 = scmp.eq.s32.totalorder %s17, 0
      %p215 = por %p213, %p214
      %p216 = scmp.ne.s32.totalorder %s205, %s208
      %p217 = scmp.eq.s32.totalorder %s22, 1
      %p218 = por %p216, %p217
      %p219 = scmp.ne.s32.totalorder %s208, %s209
      %p220 = scmp.eq.s32.totalorder %s22, 0
      %p221 = por %p219, %p220
      %p222 = scmp.ne.s32.totalorder %s208, %s209
      %p223 = scmp.eq.s32.totalorder %s23, 1
      %p224 = por %p222, %p223
      %p226 = scmp.ne.s32.totalorder %s209, %s225
      %p227 = scmp.eq.s32.totalorder %s23, 0
      %p228 = por %p226, %p227
      %p229 = scmp.le.s32.totalorder 1, %s17
      %p230 = scmp.lt.s32.totalorder %s17, 3
      %p231 = pnand %p229, %p230
      %p232 = pneg %p231
      // Predicated region
      $region9: #{mili_forward.1} parent=5 // pred_check
        _
      $region10: #{mili_forward.1} parent=5 // pred_check_branch
        %234 = sbr.rel (%p231) target = $region12
      $region11: #{mili_forward.1} parent=5 // pred_region
        %s235 = ssub.s32 %s17, 1
        // Predicated region
        $region13: #{mili_forward.1} parent=11 // pred_check
          %p236 = pneg %p90
        $region14: #{mili_forward.1} parent=11 // pred_check_branch
          %238 = sbr.rel (%p236) target = $region16
        $region15: #{mili_forward.1} parent=11 // pred_region
          _
        $region16: #{mili_forward.1} parent=11 // pred_fallthru
          _
        // Predicated region
        $region17: #{mili_forward.1} parent=11 // pred_check
          %p239 = pneg %p111
        $region18: #{mili_forward.1} parent=11 // pred_check_branch
          %241 = sbr.rel (%p239) target = $region20
        $region19: #{mili_forward.1} parent=11 // pred_region
          _
        $region20: #{mili_forward.1} parent=11 // pred_fallthru
          _
        // Predicated region
        $region21: #{mili_forward.1} parent=11 // pred_check
          %p242 = pneg %p132
        $region22: #{mili_forward.1} parent=11 // pred_check_branch
          %244 = sbr.rel (%p242) target = $region24
        $region23: #{mili_forward.1} parent=11 // pred_region
          _
        $region24: #{mili_forward.1} parent=11 // pred_fallthru
          _
        // Predicated region
        $region25: #{mili_forward.1} parent=11 // pred_check
          %p245 = pneg %p153
        $region26: #{mili_forward.1} parent=11 // pred_check_branch
          %247 = sbr.rel (%p245) target = $region28
        $region27: #{mili_forward.1} parent=11 // pred_region
          _
        $region28: #{mili_forward.1} parent=11 // pred_fallthru
          _
        // Predicated region
        $region29: #{mili_forward.1} parent=11 // pred_check
          %p248 = pneg %p174
        $region30: #{mili_forward.1} parent=11 // pred_check_branch
          %250 = sbr.rel (%p248) target = $region32
        $region31: #{mili_forward.1} parent=11 // pred_region
          _
        $region32: #{mili_forward.1} parent=11 // pred_fallthru
          _
        // Predicated region
        $region33: #{mili_forward.1} parent=11 // pred_check
          %p251 = pneg %p195
        $region34: #{mili_forward.1} parent=11 // pred_check_branch
          %253 = sbr.rel (%p251) target = $region36
        $region35: #{mili_forward.1} parent=11 // pred_region
          _
        $region36: #{mili_forward.1} parent=11 // pred_fallthru
          _
      $region12: #{mili_forward.1} parent=5 // pred_fallthru
        _
      %p254 = scmp.lt.s32.totalorder %s17, 2
      // Predicated region
      $region37: #{mili_forward.1} parent=5 // pred_check
        %p255 = pneg %p254
      $region38: #{mili_forward.1} parent=5 // pred_check_branch
        %257 = sbr.rel (%p255) target = $region40
      $region39: #{mili_forward.1} parent=5 // pred_region
        // Predicated region
        $region41: #{mili_forward.1} parent=39 // pred_check
          %p258 = pneg %p37
        $region42: #{mili_forward.1} parent=39 // pred_check_branch
          %260 = sbr.rel (%p258) target = $region44
        $region43: #{mili_forward.1} parent=39 // pred_region
          %p261 = scmp.lt.s32.totalorder %s17, 1
          %s262 = scalar_select %p261, %s17, 1
          %s263 = smul.addr %s262, 8
          %s264 = scalar_lea.vmem %s0, %s263
        $region44: #{mili_forward.1} parent=39 // pred_fallthru
          _
        // Predicated region
        $region45: #{mili_forward.1} parent=39 // pred_check
          %p265 = pneg %p63
        $region46: #{mili_forward.1} parent=39 // pred_check_branch
          %267 = sbr.rel (%p265) target = $region48
        $region47: #{mili_forward.1} parent=39 // pred_region
          %p268 = scmp.lt.s32.totalorder %s17, 1
          %s269 = scalar_select %p268, %s17, 1
          %s270 = smul.addr %s269, 8
          %s271 = scalar_lea.vmem %s1, %s270
        $region48: #{mili_forward.1} parent=39 // pred_fallthru
          _
      $region40: #{mili_forward.1} parent=5 // pred_fallthru
        _
      %p272 = scmp.le.s32.totalorder 1, %s17
      %p273 = scmp.lt.s32.totalorder %s17, 3
      %p274 = pnand %p272, %p273
      %p275 = pneg %p274
      // Predicated region
      $region49: #{mili_forward.1} parent=5 // pred_check
        _
      $region50: #{mili_forward.1} parent=5 // pred_check_branch
        %277 = sbr.rel (%p274) target = $region52
      $region51: #{mili_forward.1} parent=5 // pred_region
        %s278 = ssub.s32 %s17, 1
        %p279 = scmp.lt.s32.totalorder %s22, 1
        %s280 = scalar_select %p279, %s22, 1
        %s281 = smul.addr %s280, 8
        %s282 = scalar_lea.vmem %s0, %s281
        %p283 = pneg %p43
        %p284 = pneg %p40
        %p285 = scmp.lt.s32.totalorder %s22, 1
        %s286 = scalar_select %p285, %s22, 1
        %s287 = smul.addr %s286, 8
        %s288 = scalar_lea.vmem %s1, %s287
        %p289 = pneg %p69
        %p290 = pneg %p66
        %p291 = pneg %p90
        %p292 = pneg %p87
        %p293 = pneg %p111
        %p294 = pneg %p108
        %p295 = pneg %p132
        %p296 = pneg %p129
        %p297 = pneg %p153
        %p298 = pneg %p150
        %p299 = pneg %p174
        %p300 = pneg %p171
        %p301 = pneg %p195
        %p302 = pneg %p192
        %p303 = pneg %p221
        %p304 = pneg %p218
        %s305 = sand.u32 %s208, 1
        %s306 = scalar_lea.sflag [#allocation3], %s305
        %s307 = sand.u32 %s208, 1
        %s308 = scalar_lea.vmem [#allocation2], %s307
        %p309 = scmp.lt.s32.totalorder %s22, 1
        %s310 = scalar_select %p309, %s22, 1
        %s311 = smul.addr %s310, 8
        %s312 = scalar_lea.vmem %s0, %s311
        %p313 = scmp.lt.s32.totalorder %s22, 1
        %s314 = scalar_select %p313, %s22, 1
        %s315 = smul.addr %s314, 8
        %s316 = scalar_lea.vmem %s1, %s315
        %v317 = vld [vmem:[%s312] sm:$0xff]
        %v318 = vld [vmem:[%s2] sm:$0xff]
        %v319 = vld [vmem:[%s2 + $0x8] sm:$0xf]
        %v320 = vld [vmem:[%s3] sm:$0x1]
        %v322 = vlaneseq
        %v323 = vshrl.u32 %v322, 7
        %v324 = vsub.s32 0, %v323
        %v325 = vrot.slane %v320, %v324
        %vm327 = vcmask 97280
        %v329 = vsel %vm327, %v317, 0
        %vm331 = vcmask 1043456
        %v333 = vsel %vm331, %v319, 0
        %335 = vmatprep.subr.mxu0 0.0
        %336 = vmatpush1.msra.mxu0 0.0
        %337 = vmatprep.subr.mxu0 0.0
        %338 = vmatpush1.msra.mxu0 0.0
        %339 = vmatprep.subr.mxu0 0.0
        %340 = vmatpush1.msra.mxu0 0.0
        %341 = vmatprep.subr.mxu0 0.0
        %342 = vmatpush1.msra.mxu0 0.0
        %343 = vmatprep.subr.mxu0 0.0
        %344 = vmatpush1.msra.mxu0 0.0
        %345 = vmatprep.subr.mxu0 0.0
        %346 = vmatpush1.msra.mxu0 0.0
        %347 = vmatprep.subr.mxu0 0.0
        %348 = vmatpush1.msra.mxu0 0.0
        %349 = vmatprep.subr.mxu0 0.0
        %350 = vmatpush1.msra.mxu0 0.0
        %351 = vmatprep.subr.mxu0 0.0
        %352 = vmatpush1.msra.mxu0 0.0
        %353 = vmatprep.subr.mxu0 0.0
        %354 = vmatpush1.msra.mxu0 0.0
        %355 = vmatprep.subr.mxu0 0.0
        %356 = vmatpush1.msra.mxu0 0.0
        %357 = vmatprep.subr.mxu0 0.0
        %358 = vmatpush1.msra.mxu0 0.0
        %359 = vmatprep.subr.mxu0 0.0
        %360 = vmatpush1.msra.mxu0 0.0
        %361 = vmatprep.subr.mxu0 0.0
        %362 = vmatpush1.msra.mxu0 0.0
        %363 = vmatprep.subr.mxu0 0.0
        %v364 = vand.u32 %v333, 4294901760
        %365 = vmatpush1.msra.mxu0 %v364
        %366 = vmatprep.subr.mxu0 0.0
        %v367 = vand.u32 %v318, 4294901760
        %368 = vmatpush1.msra.mxu0 %v367
        %369 = vmatprep.subr.mxu0 0.0
        %370 = vmatpush2.msra.mxu0 0.0
        %371 = vmatprep.subr.mxu0 0.0
        %372 = vmatpush2.msra.mxu0 0.0
        %373 = vmatprep.subr.mxu0 0.0
        %374 = vmatpush2.msra.mxu0 0.0
        %375 = vmatprep.subr.mxu0 0.0
        %376 = vmatpush2.msra.mxu0 0.0
        %377 = vmatprep.subr.mxu0 0.0
        %378 = vmatpush2.msra.mxu0 0.0
        %379 = vmatprep.subr.mxu0 0.0
        %380 = vmatpush2.msra.mxu0 0.0
        %381 = vmatprep.subr.mxu0 0.0
        %382 = vmatpush2.msra.mxu0 0.0
        %383 = vmatprep.subr.mxu0 0.0
        %384 = vmatpush2.msra.mxu0 0.0
        %385 = vmatprep.subr.mxu0 0.0
        %386 = vmatpush2.msra.mxu0 0.0
        %387 = vmatprep.subr.mxu0 0.0
        %388 = vmatpush2.msra.mxu0 0.0
        %389 = vmatprep.subr.mxu0 0.0
        %390 = vmatpush2.msra.mxu0 0.0
        %391 = vmatprep.subr.mxu0 0.0
        %392 = vmatpush2.msra.mxu0 0.0
        %393 = vmatprep.subr.mxu0 0.0
        %394 = vmatpush2.msra.mxu0 0.0
        %395 = vmatprep.subr.mxu0 0.0
        %396 = vmatpush2.msra.mxu0 0.0
        %397 = vmatprep.subr.mxu0 0.0
        %398 = vmatpush2.msra.mxu0 0.0
        %399 = vmatprep.subr.mxu0 0.0
        %400 = vmatpush2.msra.mxu0 0.0
        %401 = vmatprep.mubr.f32.mxu0 0.0
        %v402 = vand.u32 %v329, 4294901760
        %v403 = vsub.f32 %v329, %v402
        %v404 = vand.u32 %v403, 4294901760
        %v405 = vsub.f32 %v403, %v404
        %v406 = vand.u32 %v405, 4294901760
        %407 = vmatmul.mubr.f32.gmra.mxu0 %v406
        %v408 = vpop.f32.mrf.mxu0
        %v409 = vadd.f32 %v325, %v408
        %v410 = vpop.f32.mrf.mxu0
        %411 = vdwg.mxu0
        %412 = vmatprep.subr.mxu0 0.0
        %413 = vmatpush1.msra.mxu0 0.0
        %414 = vmatprep.subr.mxu0 0.0
        %415 = vmatpush1.msra.mxu0 0.0
        %416 = vmatprep.subr.mxu0 0.0
        %417 = vmatpush1.msra.mxu0 0.0
        %418 = vmatprep.subr.mxu0 0.0
        %419 = vmatpush1.msra.mxu0 0.0
        %420 = vmatprep.subr.mxu0 0.0
        %421 = vmatpush1.msra.mxu0 0.0
        %422 = vmatprep.subr.mxu0 0.0
        %423 = vmatpush1.msra.mxu0 0.0
        %424 = vmatprep.subr.mxu0 0.0
        %425 = vmatpush1.msra.mxu0 0.0
        %426 = vmatprep.subr.mxu0 0.0
        %427 = vmatpush1.msra.mxu0 0.0
        %428 = vmatprep.subr.mxu0 0.0
        %429 = vmatpush1.msra.mxu0 0.0
        %430 = vmatprep.subr.mxu0 0.0
        %431 = vmatpush1.msra.mxu0 0.0
        %432 = vmatprep.subr.mxu0 0.0
        %433 = vmatpush1.msra.mxu0 0.0
        %434 = vmatprep.subr.mxu0 0.0
        %435 = vmatpush1.msra.mxu0 0.0
        %436 = vmatprep.subr.mxu0 0.0
        %437 = vmatpush1.msra.mxu0 0.0
        %438 = vmatprep.subr.mxu0 0.0
        %439 = vmatpush1.msra.mxu0 0.0
        %440 = vmatprep.subr.mxu0 0.0
        %v441 = vand.u32 %v333, 4294901760
        %v442 = vsub.f32 %v333, %v441
        %v443 = vand.u32 %v442, 4294901760
        %v444 = vsub.f32 %v442, %v443
        %v445 = vand.u32 %v444, 4294901760
        %446 = vmatpush1.msra.mxu0 %v445
        %447 = vmatprep.subr.mxu0 0.0
        %v448 = vand.u32 %v318, 4294901760
        %v449 = vsub.f32 %v318, %v448
        %v450 = vand.u32 %v449, 4294901760
        %v451 = vsub.f32 %v449, %v450
        %v452 = vand.u32 %v451, 4294901760
        %453 = vmatpush1.msra.mxu0 %v452
        %454 = vmatprep.subr.mxu0 0.0
        %455 = vmatpush2.msra.mxu0 0.0
        %456 = vmatprep.subr.mxu0 0.0
        %457 = vmatpush2.msra.mxu0 0.0
        %458 = vmatprep.subr.mxu0 0.0
        %459 = vmatpush2.msra.mxu0 0.0
        %460 = vmatprep.subr.mxu0 0.0
        %461 = vmatpush2.msra.mxu0 0.0
        %462 = vmatprep.subr.mxu0 0.0
        %463 = vmatpush2.msra.mxu0 0.0
        %464 = vmatprep.subr.mxu0 0.0
        %465 = vmatpush2.msra.mxu0 0.0
        %466 = vmatprep.subr.mxu0 0.0
        %467 = vmatpush2.msra.mxu0 0.0
        %468 = vmatprep.subr.mxu0 0.0
        %469 = vmatpush2.msra.mxu0 0.0
        %470 = vmatprep.subr.mxu0 0.0
        %471 = vmatpush2.msra.mxu0 0.0
        %472 = vmatprep.subr.mxu0 0.0
        %473 = vmatpush2.msra.mxu0 0.0
        %474 = vmatprep.subr.mxu0 0.0
        %475 = vmatpush2.msra.mxu0 0.0
        %476 = vmatprep.subr.mxu0 0.0
        %477 = vmatpush2.msra.mxu0 0.0
        %478 = vmatprep.subr.mxu0 0.0
        %479 = vmatpush2.msra.mxu0 0.0
        %480 = vmatprep.subr.mxu0 0.0
        %481 = vmatpush2.msra.mxu0 0.0
        %482 = vmatprep.subr.mxu0 0.0
        %483 = vmatpush2.msra.mxu0 0.0
        %484 = vmatprep.subr.mxu0 0.0
        %485 = vmatpush2.msra.mxu0 0.0
        %486 = vmatprep.mubr.f32.mxu0 0.0
        %v487 = vand.u32 %v329, 4294901760
        %488 = vmatmul.mubr.f32.gmra.mxu0 %v487
        %v489 = vpop.f32.mrf.mxu0
        %v490 = vadd.f32 %v409, %v489
        %v491 = vpop.f32.mrf.mxu0
        %492 = vdwg.mxu0
        %493 = vmatprep.subr.mxu0 0.0
        %494 = vmatpush1.msra.mxu0 0.0
        %495 = vmatprep.subr.mxu0 0.0
        %496 = vmatpush1.msra.mxu0 0.0
        %497 = vmatprep.subr.mxu0 0.0
        %498 = vmatpush1.msra.mxu0 0.0
        %499 = vmatprep.subr.mxu0 0.0
        %500 = vmatpush1.msra.mxu0 0.0
        %501 = vmatprep.subr.mxu0 0.0
        %502 = vmatpush1.msra.mxu0 0.0
        %503 = vmatprep.subr.mxu0 0.0
        %504 = vmatpush1.msra.mxu0 0.0
        %505 = vmatprep.subr.mxu0 0.0
        %506 = vmatpush1.msra.mxu0 0.0
        %507 = vmatprep.subr.mxu0 0.0
        %508 = vmatpush1.msra.mxu0 0.0
        %509 = vmatprep.subr.mxu0 0.0
        %510 = vmatpush1.msra.mxu0 0.0
        %511 = vmatprep.subr.mxu0 0.0
        %512 = vmatpush1.msra.mxu0 0.0
        %513 = vmatprep.subr.mxu0 0.0
        %514 = vmatpush1.msra.mxu0 0.0
        %515 = vmatprep.subr.mxu0 0.0
        %516 = vmatpush1.msra.mxu0 0.0
        %517 = vmatprep.subr.mxu0 0.0
        %518 = vmatpush1.msra.mxu0 0.0
        %519 = vmatprep.subr.mxu0 0.0
        %520 = vmatpush1.msra.mxu0 0.0
        %521 = vmatprep.subr.mxu0 0.0
        %v522 = vand.u32 %v333, 4294901760
        %v523 = vsub.f32 %v333, %v522
        %524 = vmatpush1.msra.mxu0 %v523
        %525 = vmatprep.subr.mxu0 0.0
        %v526 = vand.u32 %v318, 4294901760
        %v527 = vsub.f32 %v318, %v526
        %528 = vmatpush1.msra.mxu0 %v527
        %529 = vmatprep.subr.mxu0 0.0
        %530 = vmatpush2.msra.mxu0 0.0
        %531 = vmatprep.subr.mxu0 0.0
        %532 = vmatpush2.msra.mxu0 0.0
        %533 = vmatprep.subr.mxu0 0.0
        %534 = vmatpush2.msra.mxu0 0.0
        %535 = vmatprep.subr.mxu0 0.0
        %536 = vmatpush2.msra.mxu0 0.0
        %537 = vmatprep.subr.mxu0 0.0
        %538 = vmatpush2.msra.mxu0 0.0
        %539 = vmatprep.subr.mxu0 0.0
        %540 = vmatpush2.msra.mxu0 0.0
        %541 = vmatprep.subr.mxu0 0.0
        %542 = vmatpush2.msra.mxu0 0.0
        %543 = vmatprep.subr.mxu0 0.0
        %544 = vmatpush2.msra.mxu0 0.0
        %545 = vmatprep.subr.mxu0 0.0
        %546 = vmatpush2.msra.mxu0 0.0
        %547 = vmatprep.subr.mxu0 0.0
        %548 = vmatpush2.msra.mxu0 0.0
        %549 = vmatprep.subr.mxu0 0.0
        %550 = vmatpush2.msra.mxu0 0.0
        %551 = vmatprep.subr.mxu0 0.0
        %552 = vmatpush2.msra.mxu0 0.0
        %553 = vmatprep.subr.mxu0 0.0
        %554 = vmatpush2.msra.mxu0 0.0
        %555 = vmatprep.subr.mxu0 0.0
        %556 = vmatpush2.msra.mxu0 0.0
        %557 = vmatprep.subr.mxu0 0.0
        %558 = vmatpush2.msra.mxu0 0.0
        %559 = vmatprep.subr.mxu0 0.0
        %560 = vmatpush2.msra.mxu0 0.0
        %561 = vmatprep.mubr.f32.mxu0 0.0
        %v562 = vand.u32 %v329, 4294901760
        %v563 = vsub.f32 %v329, %v562
        %564 = vmatmul.mubr.f32.gmra.mxu0 %v563
        %v565 = vpop.f32.mrf.mxu0
        %v566 = vadd.f32 %v490, %v565
        %v567 = vpop.f32.mrf.mxu0
        %568 = vdwg.mxu0
        %569 = vmatprep.subr.mxu0 0.0
        %570 = vmatpush1.msra.mxu0 0.0
        %571 = vmatprep.subr.mxu0 0.0
        %572 = vmatpush1.msra.mxu0 0.0
        %573 = vmatprep.subr.mxu0 0.0
        %574 = vmatpush1.msra.mxu0 0.0
        %575 = vmatprep.subr.mxu0 0.0
        %576 = vmatpush1.msra.mxu0 0.0
        %577 = vmatprep.subr.mxu0 0.0
        %578 = vmatpush1.msra.mxu0 0.0
        %579 = vmatprep.subr.mxu0 0.0
        %580 = vmatpush1.msra.mxu0 0.0
        %581 = vmatprep.subr.mxu0 0.0
        %582 = vmatpush1.msra.mxu0 0.0
        %583 = vmatprep.subr.mxu0 0.0
        %584 = vmatpush1.msra.mxu0 0.0
        %585 = vmatprep.subr.mxu0 0.0
        %586 = vmatpush1.msra.mxu0 0.0
        %587 = vmatprep.subr.mxu0 0.0
        %588 = vmatpush1.msra.mxu0 0.0
        %589 = vmatprep.subr.mxu0 0.0
        %590 = vmatpush1.msra.mxu0 0.0
        %591 = vmatprep.subr.mxu0 0.0
        %592 = vmatpush1.msra.mxu0 0.0
        %593 = vmatprep.subr.mxu0 0.0
        %594 = vmatpush1.msra.mxu0 0.0
        %595 = vmatprep.subr.mxu0 0.0
        %596 = vmatpush1.msra.mxu0 0.0
        %597 = vmatprep.subr.mxu0 0.0
        %v598 = vand.u32 %v333, 4294901760
        %599 = vmatpush1.msra.mxu0 %v598
        %600 = vmatprep.subr.mxu0 0.0
        %v601 = vand.u32 %v318, 4294901760
        %602 = vmatpush1.msra.mxu0 %v601
        %603 = vmatprep.subr.mxu0 0.0
        %604 = vmatpush2.msra.mxu0 0.0
        %605 = vmatprep.subr.mxu0 0.0
        %606 = vmatpush2.msra.mxu0 0.0
        %607 = vmatprep.subr.mxu0 0.0
        %608 = vmatpush2.msra.mxu0 0.0
        %609 = vmatprep.subr.mxu0 0.0
        %610 = vmatpush2.msra.mxu0 0.0
        %611 = vmatprep.subr.mxu0 0.0
        %612 = vmatpush2.msra.mxu0 0.0
        %613 = vmatprep.subr.mxu0 0.0
        %614 = vmatpush2.msra.mxu0 0.0
        %615 = vmatprep.subr.mxu0 0.0
        %616 = vmatpush2.msra.mxu0 0.0
        %617 = vmatprep.subr.mxu0 0.0
        %618 = vmatpush2.msra.mxu0 0.0
        %619 = vmatprep.subr.mxu0 0.0
        %620 = vmatpush2.msra.mxu0 0.0
        %621 = vmatprep.subr.mxu0 0.0
        %622 = vmatpush2.msra.mxu0 0.0
        %623 = vmatprep.subr.mxu0 0.0
        %624 = vmatpush2.msra.mxu0 0.0
        %625 = vmatprep.subr.mxu0 0.0
        %626 = vmatpush2.msra.mxu0 0.0
        %627 = vmatprep.subr.mxu0 0.0
        %628 = vmatpush2.msra.mxu0 0.0
        %629 = vmatprep.subr.mxu0 0.0
        %630 = vmatpush2.msra.mxu0 0.0
        %631 = vmatprep.subr.mxu0 0.0
        %632 = vmatpush2.msra.mxu0 0.0
        %633 = vmatprep.subr.mxu0 0.0
        %634 = vmatpush2.msra.mxu0 0.0
        %635 = vmatprep.mubr.f32.mxu0 0.0
        %v636 = vand.u32 %v329, 4294901760
        %v637 = vsub.f32 %v329, %v636
        %v638 = vand.u32 %v637, 4294901760
        %639 = vmatmul.mubr.f32.gmra.mxu0 %v638
        %v640 = vpop.f32.mrf.mxu0
        %v641 = vadd.f32 %v566, %v640
        %v642 = vpop.f32.mrf.mxu0
        %643 = vdwg.mxu0
        %644 = vmatprep.subr.mxu0 0.0
        %645 = vmatpush1.msra.mxu0 0.0
        %646 = vmatprep.subr.mxu0 0.0
        %647 = vmatpush1.msra.mxu0 0.0
        %648 = vmatprep.subr.mxu0 0.0
        %649 = vmatpush1.msra.mxu0 0.0
        %650 = vmatprep.subr.mxu0 0.0
        %651 = vmatpush1.msra.mxu0 0.0
        %652 = vmatprep.subr.mxu0 0.0
        %653 = vmatpush1.msra.mxu0 0.0
        %654 = vmatprep.subr.mxu0 0.0
        %655 = vmatpush1.msra.mxu0 0.0
        %656 = vmatprep.subr.mxu0 0.0
        %657 = vmatpush1.msra.mxu0 0.0
        %658 = vmatprep.subr.mxu0 0.0
        %659 = vmatpush1.msra.mxu0 0.0
        %660 = vmatprep.subr.mxu0 0.0
        %661 = vmatpush1.msra.mxu0 0.0
        %662 = vmatprep.subr.mxu0 0.0
        %663 = vmatpush1.msra.mxu0 0.0
        %664 = vmatprep.subr.mxu0 0.0
        %665 = vmatpush1.msra.mxu0 0.0
        %666 = vmatprep.subr.mxu0 0.0
        %667 = vmatpush1.msra.mxu0 0.0
        %668 = vmatprep.subr.mxu0 0.0
        %669 = vmatpush1.msra.mxu0 0.0
        %670 = vmatprep.subr.mxu0 0.0
        %671 = vmatpush1.msra.mxu0 0.0
        %672 = vmatprep.subr.mxu0 0.0
        %v673 = vand.u32 %v333, 4294901760
        %v674 = vsub.f32 %v333, %v673
        %v675 = vand.u32 %v674, 4294901760
        %676 = vmatpush1.msra.mxu0 %v675
        %677 = vmatprep.subr.mxu0 0.0
        %v678 = vand.u32 %v318, 4294901760
        %v679 = vsub.f32 %v318, %v678
        %v680 = vand.u32 %v679, 4294901760
        %681 = vmatpush1.msra.mxu0 %v680
        %682 = vmatprep.subr.mxu0 0.0
        %683 = vmatpush2.msra.mxu0 0.0
        %684 = vmatprep.subr.mxu0 0.0
        %685 = vmatpush2.msra.mxu0 0.0
        %686 = vmatprep.subr.mxu0 0.0
        %687 = vmatpush2.msra.mxu0 0.0
        %688 = vmatprep.subr.mxu0 0.0
        %689 = vmatpush2.msra.mxu0 0.0
        %690 = vmatprep.subr.mxu0 0.0
        %691 = vmatpush2.msra.mxu0 0.0
        %692 = vmatprep.subr.mxu0 0.0
        %693 = vmatpush2.msra.mxu0 0.0
        %694 = vmatprep.subr.mxu0 0.0
        %695 = vmatpush2.msra.mxu0 0.0
        %696 = vmatprep.subr.mxu0 0.0
        %697 = vmatpush2.msra.mxu0 0.0
        %698 = vmatprep.subr.mxu0 0.0
        %699 = vmatpush2.msra.mxu0 0.0
        %700 = vmatprep.subr.mxu0 0.0
        %701 = vmatpush2.msra.mxu0 0.0
        %702 = vmatprep.subr.mxu0 0.0
        %703 = vmatpush2.msra.mxu0 0.0
        %704 = vmatprep.subr.mxu0 0.0
        %705 = vmatpush2.msra.mxu0 0.0
        %706 = vmatprep.subr.mxu0 0.0
        %707 = vmatpush2.msra.mxu0 0.0
        %708 = vmatprep.subr.mxu0 0.0
        %709 = vmatpush2.msra.mxu0 0.0
        %710 = vmatprep.subr.mxu0 0.0
        %711 = vmatpush2.msra.mxu0 0.0
        %712 = vmatprep.subr.mxu0 0.0
        %713 = vmatpush2.msra.mxu0 0.0
        %714 = vmatprep.mubr.f32.mxu0 0.0
        %v715 = vand.u32 %v329, 4294901760
        %716 = vmatmul.mubr.f32.gmra.mxu0 %v715
        %v717 = vpop.f32.mrf.mxu0
        %v718 = vadd.f32 %v641, %v717
        %v719 = vpop.f32.mrf.mxu0
        %720 = vdwg.mxu0
        %721 = vmatprep.subr.mxu0 0.0
        %722 = vmatpush1.msra.mxu0 0.0
        %723 = vmatprep.subr.mxu0 0.0
        %724 = vmatpush1.msra.mxu0 0.0
        %725 = vmatprep.subr.mxu0 0.0
        %726 = vmatpush1.msra.mxu0 0.0
        %727 = vmatprep.subr.mxu0 0.0
        %728 = vmatpush1.msra.mxu0 0.0
        %729 = vmatprep.subr.mxu0 0.0
        %730 = vmatpush1.msra.mxu0 0.0
        %731 = vmatprep.subr.mxu0 0.0
        %732 = vmatpush1.msra.mxu0 0.0
        %733 = vmatprep.subr.mxu0 0.0
        %734 = vmatpush1.msra.mxu0 0.0
        %735 = vmatprep.subr.mxu0 0.0
        %736 = vmatpush1.msra.mxu0 0.0
        %737 = vmatprep.subr.mxu0 0.0
        %738 = vmatpush1.msra.mxu0 0.0
        %739 = vmatprep.subr.mxu0 0.0
        %740 = vmatpush1.msra.mxu0 0.0
        %741 = vmatprep.subr.mxu0 0.0
        %742 = vmatpush1.msra.mxu0 0.0
        %743 = vmatprep.subr.mxu0 0.0
        %744 = vmatpush1.msra.mxu0 0.0
        %745 = vmatprep.subr.mxu0 0.0
        %746 = vmatpush1.msra.mxu0 0.0
        %747 = vmatprep.subr.mxu0 0.0
        %748 = vmatpush1.msra.mxu0 0.0
        %749 = vmatprep.subr.mxu0 0.0
        %v750 = vand.u32 %v333, 4294901760
        %751 = vmatpush1.msra.mxu0 %v750
        %752 = vmatprep.subr.mxu0 0.0
        %v753 = vand.u32 %v318, 4294901760
        %754 = vmatpush1.msra.mxu0 %v753
        %755 = vmatprep.subr.mxu0 0.0
        %756 = vmatpush2.msra.mxu0 0.0
        %757 = vmatprep.subr.mxu0 0.0
        %758 = vmatpush2.msra.mxu0 0.0
        %759 = vmatprep.subr.mxu0 0.0
        %760 = vmatpush2.msra.mxu0 0.0
        %761 = vmatprep.subr.mxu0 0.0
        %762 = vmatpush2.msra.mxu0 0.0
        %763 = vmatprep.subr.mxu0 0.0
        %764 = vmatpush2.msra.mxu0 0.0
        %765 = vmatprep.subr.mxu0 0.0
        %766 = vmatpush2.msra.mxu0 0.0
        %767 = vmatprep.subr.mxu0 0.0
        %768 = vmatpush2.msra.mxu0 0.0
        %769 = vmatprep.subr.mxu0 0.0
        %770 = vmatpush2.msra.mxu0 0.0
        %771 = vmatprep.subr.mxu0 0.0
        %772 = vmatpush2.msra.mxu0 0.0
        %773 = vmatprep.subr.mxu0 0.0
        %774 = vmatpush2.msra.mxu0 0.0
        %775 = vmatprep.subr.mxu0 0.0
        %776 = vmatpush2.msra.mxu0 0.0
        %777 = vmatprep.subr.mxu0 0.0
        %778 = vmatpush2.msra.mxu0 0.0
        %779 = vmatprep.subr.mxu0 0.0
        %780 = vmatpush2.msra.mxu0 0.0
        %781 = vmatprep.subr.mxu0 0.0
        %782 = vmatpush2.msra.mxu0 0.0
        %783 = vmatprep.subr.mxu0 0.0
        %784 = vmatpush2.msra.mxu0 0.0
        %785 = vmatprep.subr.mxu0 0.0
        %786 = vmatpush2.msra.mxu0 0.0
        %787 = vmatprep.mubr.f32.mxu0 0.0
        %v788 = vand.u32 %v329, 4294901760
        %789 = vmatmul.mubr.f32.gmra.mxu0 %v788
        %v790 = vpop.f32.mrf.mxu0
        %v791 = vadd.f32 %v718, %v790
        %v792 = vpop.f32.mrf.mxu0
        %793 = vdwg.mxu0
        %v794 = vld [vmem:[%s4] sm:$0xff]
        %v795 = vld [vmem:[%s4 + $0x8] sm:$0xff]
        %v796 = vld [vmem:[%s4 + $0x10] sm:$0xff]
        %v797 = vld [vmem:[%s4 + $0x18] sm:$0xff]
        %vm798 = vcmask 261120
        %v800 = vsel %vm798, %v791, 0
        %802 = vmatprep.subr.mxu0 0.0
        %803 = vmatpush1.msra.mxu0 0.0
        %804 = vmatprep.subr.mxu0 0.0
        %805 = vmatpush1.msra.mxu0 0.0
        %806 = vmatprep.subr.mxu0 0.0
        %807 = vmatpush1.msra.mxu0 0.0
        %808 = vmatprep.subr.mxu0 0.0
        %809 = vmatpush1.msra.mxu0 0.0
        %810 = vmatprep.subr.mxu0 0.0
        %811 = vmatpush1.msra.mxu0 0.0
        %812 = vmatprep.subr.mxu0 0.0
        %813 = vmatpush1.msra.mxu0 0.0
        %814 = vmatprep.subr.mxu0 0.0
        %815 = vmatpush1.msra.mxu0 0.0
        %816 = vmatprep.subr.mxu0 0.0
        %817 = vmatpush1.msra.mxu0 0.0
        %818 = vmatprep.subr.mxu0 0.0
        %819 = vmatpush1.msra.mxu0 0.0
        %820 = vmatprep.subr.mxu0 0.0
        %821 = vmatpush1.msra.mxu0 0.0
        %822 = vmatprep.subr.mxu0 0.0
        %823 = vmatpush1.msra.mxu0 0.0
        %824 = vmatprep.subr.mxu0 0.0
        %825 = vmatpush1.msra.mxu0 0.0
        %826 = vmatprep.subr.mxu0 0.0
        %v827 = vand.u32 %v797, 4294901760
        %828 = vmatpush1.msra.mxu0 %v827
        %829 = vmatprep.subr.mxu0 0.0
        %v830 = vand.u32 %v796, 4294901760
        %831 = vmatpush1.msra.mxu0 %v830
        %832 = vmatprep.subr.mxu0 0.0
        %v833 = vand.u32 %v795, 4294901760
        %834 = vmatpush1.msra.mxu0 %v833
        %835 = vmatprep.subr.mxu0 0.0
        %v836 = vand.u32 %v794, 4294901760
        %837 = vmatpush1.msra.mxu0 %v836
        %838 = vmatprep.subr.mxu0 0.0
        %839 = vmatpush2.msra.mxu0 0.0
        %840 = vmatprep.subr.mxu0 0.0
        %841 = vmatpush2.msra.mxu0 0.0
        %842 = vmatprep.subr.mxu0 0.0
        %843 = vmatpush2.msra.mxu0 0.0
        %844 = vmatprep.subr.mxu0 0.0
        %845 = vmatpush2.msra.mxu0 0.0
        %846 = vmatprep.subr.mxu0 0.0
        %847 = vmatpush2.msra.mxu0 0.0
        %848 = vmatprep.subr.mxu0 0.0
        %849 = vmatpush2.msra.mxu0 0.0
        %850 = vmatprep.subr.mxu0 0.0
        %851 = vmatpush2.msra.mxu0 0.0
        %852 = vmatprep.subr.mxu0 0.0
        %853 = vmatpush2.msra.mxu0 0.0
        %854 = vmatprep.subr.mxu0 0.0
        %855 = vmatpush2.msra.mxu0 0.0
        %856 = vmatprep.subr.mxu0 0.0
        %857 = vmatpush2.msra.mxu0 0.0
        %858 = vmatprep.subr.mxu0 0.0
        %859 = vmatpush2.msra.mxu0 0.0
        %860 = vmatprep.subr.mxu0 0.0
        %861 = vmatpush2.msra.mxu0 0.0
        %862 = vmatprep.subr.mxu0 0.0
        %863 = vmatpush2.msra.mxu0 0.0
        %864 = vmatprep.subr.mxu0 0.0
        %865 = vmatpush2.msra.mxu0 0.0
        %866 = vmatprep.subr.mxu0 0.0
        %867 = vmatpush2.msra.mxu0 0.0
        %868 = vmatprep.subr.mxu0 0.0
        %869 = vmatpush2.msra.mxu0 0.0
        %870 = vmatprep.mubr.f32.mxu0 0.0
        %v871 = vand.u32 %v800, 4294901760
        %v872 = vsub.f32 %v800, %v871
        %v873 = vand.u32 %v872, 4294901760
        %v874 = vsub.f32 %v872, %v873
        %v875 = vand.u32 %v874, 4294901760
        %876 = vmatmul.mubr.f32.gmra.mxu0 %v875
        %v877 = vpop.f32.mrf.mxu0
        %v878 = vadd.f32 0.0, %v877
        %v879 = vpop.f32.mrf.mxu0
        %880 = vdwg.mxu0
        %881 = vmatprep.subr.mxu0 0.0
        %882 = vmatpush1.msra.mxu0 0.0
        %883 = vmatprep.subr.mxu0 0.0
        %884 = vmatpush1.msra.mxu0 0.0
        %885 = vmatprep.subr.mxu0 0.0
        %886 = vmatpush1.msra.mxu0 0.0
        %887 = vmatprep.subr.mxu0 0.0
        %888 = vmatpush1.msra.mxu0 0.0
        %889 = vmatprep.subr.mxu0 0.0
        %890 = vmatpush1.msra.mxu0 0.0
        %891 = vmatprep.subr.mxu0 0.0
        %892 = vmatpush1.msra.mxu0 0.0
        %893 = vmatprep.subr.mxu0 0.0
        %894 = vmatpush1.msra.mxu0 0.0
        %895 = vmatprep.subr.mxu0 0.0
        %896 = vmatpush1.msra.mxu0 0.0
        %897 = vmatprep.subr.mxu0 0.0
        %898 = vmatpush1.msra.mxu0 0.0
        %899 = vmatprep.subr.mxu0 0.0
        %900 = vmatpush1.msra.mxu0 0.0
        %901 = vmatprep.subr.mxu0 0.0
        %902 = vmatpush1.msra.mxu0 0.0
        %903 = vmatprep.subr.mxu0 0.0
        %904 = vmatpush1.msra.mxu0 0.0
        %905 = vmatprep.subr.mxu0 0.0
        %v906 = vand.u32 %v797, 4294901760
        %v907 = vsub.f32 %v797, %v906
        %v908 = vand.u32 %v907, 4294901760
        %v909 = vsub.f32 %v907, %v908
        %v910 = vand.u32 %v909, 4294901760
        %911 = vmatpush1.msra.mxu0 %v910
        %912 = vmatprep.subr.mxu0 0.0
        %v913 = vand.u32 %v796, 4294901760
        %v914 = vsub.f32 %v796, %v913
        %v915 = vand.u32 %v914, 4294901760
        %v916 = vsub.f32 %v914, %v915
        %v917 = vand.u32 %v916, 4294901760
        %918 = vmatpush1.msra.mxu0 %v917
        %919 = vmatprep.subr.mxu0 0.0
        %v920 = vand.u32 %v795, 4294901760
        %v921 = vsub.f32 %v795, %v920
        %v922 = vand.u32 %v921, 4294901760
        %v923 = vsub.f32 %v921, %v922
        %v924 = vand.u32 %v923, 4294901760
        %925 = vmatpush1.msra.mxu0 %v924
        %926 = vmatprep.subr.mxu0 0.0
        %v927 = vand.u32 %v794, 4294901760
        %v928 = vsub.f32 %v794, %v927
        %v929 = vand.u32 %v928, 4294901760
        %v930 = vsub.f32 %v928, %v929
        %v931 = vand.u32 %v930, 4294901760
        %932 = vmatpush1.msra.mxu0 %v931
        %933 = vmatprep.subr.mxu0 0.0
        %934 = vmatpush2.msra.mxu0 0.0
        %935 = vmatprep.subr.mxu0 0.0
        %936 = vmatpush2.msra.mxu0 0.0
        %937 = vmatprep.subr.mxu0 0.0
        %938 = vmatpush2.msra.mxu0 0.0
        %939 = vmatprep.subr.mxu0 0.0
        %940 = vmatpush2.msra.mxu0 0.0
        %941 = vmatprep.subr.mxu0 0.0
        %942 = vmatpush2.msra.mxu0 0.0
        %943 = vmatprep.subr.mxu0 0.0
        %944 = vmatpush2.msra.mxu0 0.0
        %945 = vmatprep.subr.mxu0 0.0
        %946 = vmatpush2.msra.mxu0 0.0
        %947 = vmatprep.subr.mxu0 0.0
        %948 = vmatpush2.msra.mxu0 0.0
        %949 = vmatprep.subr.mxu0 0.0
        %950 = vmatpush2.msra.mxu0 0.0
        %951 = vmatprep.subr.mxu0 0.0
        %952 = vmatpush2.msra.mxu0 0.0
        %953 = vmatprep.subr.mxu0 0.0
        %954 = vmatpush2.msra.mxu0 0.0
        %955 = vmatprep.subr.mxu0 0.0
        %956 = vmatpush2.msra.mxu0 0.0
        %957 = vmatprep.subr.mxu0 0.0
        %958 = vmatpush2.msra.mxu0 0.0
        %959 = vmatprep.subr.mxu0 0.0
        %960 = vmatpush2.msra.mxu0 0.0
        %961 = vmatprep.subr.mxu0 0.0
        %962 = vmatpush2.msra.mxu0 0.0
        %963 = vmatprep.subr.mxu0 0.0
        %964 = vmatpush2.msra.mxu0 0.0
        %965 = vmatprep.mubr.f32.mxu0 0.0
        %v966 = vand.u32 %v800, 4294901760
        %967 = vmatmul.mubr.f32.gmra.mxu0 %v966
        %v968 = vpop.f32.mrf.mxu0
        %v969 = vadd.f32 %v878, %v968
        %v970 = vpop.f32.mrf.mxu0
        %971 = vdwg.mxu0
        %972 = vmatprep.subr.mxu0 0.0
        %973 = vmatpush1.msra.mxu0 0.0
        %974 = vmatprep.subr.mxu0 0.0
        %975 = vmatpush1.msra.mxu0 0.0
        %976 = vmatprep.subr.mxu0 0.0
        %977 = vmatpush1.msra.mxu0 0.0
        %978 = vmatprep.subr.mxu0 0.0
        %979 = vmatpush1.msra.mxu0 0.0
        %980 = vmatprep.subr.mxu0 0.0
        %981 = vmatpush1.msra.mxu0 0.0
        %982 = vmatprep.subr.mxu0 0.0
        %983 = vmatpush1.msra.mxu0 0.0
        %984 = vmatprep.subr.mxu0 0.0
        %985 = vmatpush1.msra.mxu0 0.0
        %986 = vmatprep.subr.mxu0 0.0
        %987 = vmatpush1.msra.mxu0 0.0
        %988 = vmatprep.subr.mxu0 0.0
        %989 = vmatpush1.msra.mxu0 0.0
        %990 = vmatprep.subr.mxu0 0.0
        %991 = vmatpush1.msra.mxu0 0.0
        %992 = vmatprep.subr.mxu0 0.0
        %993 = vmatpush1.msra.mxu0 0.0
        %994 = vmatprep.subr.mxu0 0.0
        %995 = vmatpush1.msra.mxu0 0.0
        %996 = vmatprep.subr.mxu0 0.0
        %v997 = vand.u32 %v797, 4294901760
        %v998 = vsub.f32 %v797, %v997
        %999 = vmatpush1.msra.mxu0 %v998
        %1000 = vmatprep.subr.mxu0 0.0
        %v1001 = vand.u32 %v796, 4294901760
        %v1002 = vsub.f32 %v796, %v1001
        %1003 = vmatpush1.msra.mxu0 %v1002
        %1004 = vmatprep.subr.mxu0 0.0
        %v1005 = vand.u32 %v795, 4294901760
        %v1006 = vsub.f32 %v795, %v1005
        %1007 = vmatpush1.msra.mxu0 %v1006
        %1008 = vmatprep.subr.mxu0 0.0
        %v1009 = vand.u32 %v794, 4294901760
        %v1010 = vsub.f32 %v794, %v1009
        %1011 = vmatpush1.msra.mxu0 %v1010
        %1012 = vmatprep.subr.mxu0 0.0
        %1013 = vmatpush2.msra.mxu0 0.0
        %1014 = vmatprep.subr.mxu0 0.0
        %1015 = vmatpush2.msra.mxu0 0.0
        %1016 = vmatprep.subr.mxu0 0.0
        %1017 = vmatpush2.msra.mxu0 0.0
        %1018 = vmatprep.subr.mxu0 0.0
        %1019 = vmatpush2.msra.mxu0 0.0
        %1020 = vmatprep.subr.mxu0 0.0
        %1021 = vmatpush2.msra.mxu0 0.0
        %1022 = vmatprep.subr.mxu0 0.0
        %1023 = vmatpush2.msra.mxu0 0.0
        %1024 = vmatprep.subr.mxu0 0.0
        %1025 = vmatpush2.msra.mxu0 0.0
        %1026 = vmatprep.subr.mxu0 0.0
        %1027 = vmatpush2.msra.mxu0 0.0
        %1028 = vmatprep.subr.mxu0 0.0
        %1029 = vmatpush2.msra.mxu0 0.0
        %1030 = vmatprep.subr.mxu0 0.0
        %1031 = vmatpush2.msra.mxu0 0.0
        %1032 = vmatprep.subr.mxu0 0.0
        %1033 = vmatpush2.msra.mxu0 0.0
        %1034 = vmatprep.subr.mxu0 0.0
        %1035 = vmatpush2.msra.mxu0 0.0
        %1036 = vmatprep.subr.mxu0 0.0
        %1037 = vmatpush2.msra.mxu0 0.0
        %1038 = vmatprep.subr.mxu0 0.0
        %1039 = vmatpush2.msra.mxu0 0.0
        %1040 = vmatprep.subr.mxu0 0.0
        %1041 = vmatpush2.msra.mxu0 0.0
        %1042 = vmatprep.subr.mxu0 0.0
        %1043 = vmatpush2.msra.mxu0 0.0
        %1044 = vmatprep.mubr.f32.mxu0 0.0
        %v1045 = vand.u32 %v800, 4294901760
        %v1046 = vsub.f32 %v800, %v1045
        %1047 = vmatmul.mubr.f32.gmra.mxu0 %v1046
        %v1048 = vpop.f32.mrf.mxu0
        %v1049 = vadd.f32 %v969, %v1048
        %v1050 = vpop.f32.mrf.mxu0
        %1051 = vdwg.mxu0
        %1052 = vmatprep.subr.mxu0 0.0
        %1053 = vmatpush1.msra.mxu0 0.0
        %1054 = vmatprep.subr.mxu0 0.0
        %1055 = vmatpush1.msra.mxu0 0.0
        %1056 = vmatprep.subr.mxu0 0.0
        %1057 = vmatpush1.msra.mxu0 0.0
        %1058 = vmatprep.subr.mxu0 0.0
        %1059 = vmatpush1.msra.mxu0 0.0
        %1060 = vmatprep.subr.mxu0 0.0
        %1061 = vmatpush1.msra.mxu0 0.0
        %1062 = vmatprep.subr.mxu0 0.0
        %1063 = vmatpush1.msra.mxu0 0.0
        %1064 = vmatprep.subr.mxu0 0.0
        %1065 = vmatpush1.msra.mxu0 0.0
        %1066 = vmatprep.subr.mxu0 0.0
        %1067 = vmatpush1.msra.mxu0 0.0
        %1068 = vmatprep.subr.mxu0 0.0
        %1069 = vmatpush1.msra.mxu0 0.0
        %1070 = vmatprep.subr.mxu0 0.0
        %1071 = vmatpush1.msra.mxu0 0.0
        %1072 = vmatprep.subr.mxu0 0.0
        %1073 = vmatpush1.msra.mxu0 0.0
        %1074 = vmatprep.subr.mxu0 0.0
        %1075 = vmatpush1.msra.mxu0 0.0
        %1076 = vmatprep.subr.mxu0 0.0
        %v1077 = vand.u32 %v797, 4294901760
        %1078 = vmatpush1.msra.mxu0 %v1077
        %1079 = vmatprep.subr.mxu0 0.0
        %v1080 = vand.u32 %v796, 4294901760
        %1081 = vmatpush1.msra.mxu0 %v1080
        %1082 = vmatprep.subr.mxu0 0.0
        %v1083 = vand.u32 %v795, 4294901760
        %1084 = vmatpush1.msra.mxu0 %v1083
        %1085 = vmatprep.subr.mxu0 0.0
        %v1086 = vand.u32 %v794, 4294901760
        %1087 = vmatpush1.msra.mxu0 %v1086
        %1088 = vmatprep.subr.mxu0 0.0
        %1089 = vmatpush2.msra.mxu0 0.0
        %1090 = vmatprep.subr.mxu0 0.0
        %1091 = vmatpush2.msra.mxu0 0.0
        %1092 = vmatprep.subr.mxu0 0.0
        %1093 = vmatpush2.msra.mxu0 0.0
        %1094 = vmatprep.subr.mxu0 0.0
        %1095 = vmatpush2.msra.mxu0 0.0
        %1096 = vmatprep.subr.mxu0 0.0
        %1097 = vmatpush2.msra.mxu0 0.0
        %1098 = vmatprep.subr.mxu0 0.0
        %1099 = vmatpush2.msra.mxu0 0.0
        %1100 = vmatprep.subr.mxu0 0.0
        %1101 = vmatpush2.msra.mxu0 0.0
        %1102 = vmatprep.subr.mxu0 0.0
        %1103 = vmatpush2.msra.mxu0 0.0
        %1104 = vmatprep.subr.mxu0 0.0
        %1105 = vmatpush2.msra.mxu0 0.0
        %1106 = vmatprep.subr.mxu0 0.0
        %1107 = vmatpush2.msra.mxu0 0.0
        %1108 = vmatprep.subr.mxu0 0.0
        %1109 = vmatpush2.msra.mxu0 0.0
        %1110 = vmatprep.subr.mxu0 0.0
        %1111 = vmatpush2.msra.mxu0 0.0
        %1112 = vmatprep.subr.mxu0 0.0
        %1113 = vmatpush2.msra.mxu0 0.0
        %1114 = vmatprep.subr.mxu0 0.0
        %1115 = vmatpush2.msra.mxu0 0.0
        %1116 = vmatprep.subr.mxu0 0.0
        %1117 = vmatpush2.msra.mxu0 0.0
        %1118 = vmatprep.subr.mxu0 0.0
        %1119 = vmatpush2.msra.mxu0 0.0
        %1120 = vmatprep.mubr.f32.mxu0 0.0
        %v1121 = vand.u32 %v800, 4294901760
        %v1122 = vsub.f32 %v800, %v1121
        %v1123 = vand.u32 %v1122, 4294901760
        %1124 = vmatmul.mubr.f32.gmra.mxu0 %v1123
        %v1125 = vpop.f32.mrf.mxu0
        %v1126 = vadd.f32 %v1049, %v1125
        %v1127 = vpop.f32.mrf.mxu0
        %1128 = vdwg.mxu0
        %1129 = vmatprep.subr.mxu0 0.0
        %1130 = vmatpush1.msra.mxu0 0.0
        %1131 = vmatprep.subr.mxu0 0.0
        %1132 = vmatpush1.msra.mxu0 0.0
        %1133 = vmatprep.subr.mxu0 0.0
        %1134 = vmatpush1.msra.mxu0 0.0
        %1135 = vmatprep.subr.mxu0 0.0
        %1136 = vmatpush1.msra.mxu0 0.0
        %1137 = vmatprep.subr.mxu0 0.0
        %1138 = vmatpush1.msra.mxu0 0.0
        %1139 = vmatprep.subr.mxu0 0.0
        %1140 = vmatpush1.msra.mxu0 0.0
        %1141 = vmatprep.subr.mxu0 0.0
        %1142 = vmatpush1.msra.mxu0 0.0
        %1143 = vmatprep.subr.mxu0 0.0
        %1144 = vmatpush1.msra.mxu0 0.0
        %1145 = vmatprep.subr.mxu0 0.0
        %1146 = vmatpush1.msra.mxu0 0.0
        %1147 = vmatprep.subr.mxu0 0.0
        %1148 = vmatpush1.msra.mxu0 0.0
        %1149 = vmatprep.subr.mxu0 0.0
        %1150 = vmatpush1.msra.mxu0 0.0
        %1151 = vmatprep.subr.mxu0 0.0
        %1152 = vmatpush1.msra.mxu0 0.0
        %1153 = vmatprep.subr.mxu0 0.0
        %v1154 = vand.u32 %v797, 4294901760
        %v1155 = vsub.f32 %v797, %v1154
        %v1156 = vand.u32 %v1155, 4294901760
        %1157 = vmatpush1.msra.mxu0 %v1156
        %1158 = vmatprep.subr.mxu0 0.0
        %v1159 = vand.u32 %v796, 4294901760
        %v1160 = vsub.f32 %v796, %v1159
        %v1161 = vand.u32 %v1160, 4294901760
        %1162 = vmatpush1.msra.mxu0 %v1161
        %1163 = vmatprep.subr.mxu0 0.0
        %v1164 = vand.u32 %v795, 4294901760
        %v1165 = vsub.f32 %v795, %v1164
        %v1166 = vand.u32 %v1165, 4294901760
        %1167 = vmatpush1.msra.mxu0 %v1166
        %1168 = vmatprep.subr.mxu0 0.0
        %v1169 = vand.u32 %v794, 4294901760
        %v1170 = vsub.f32 %v794, %v1169
        %v1171 = vand.u32 %v1170, 4294901760
        %1172 = vmatpush1.msra.mxu0 %v1171
        %1173 = vmatprep.subr.mxu0 0.0
        %1174 = vmatpush2.msra.mxu0 0.0
        %1175 = vmatprep.subr.mxu0 0.0
        %1176 = vmatpush2.msra.mxu0 0.0
        %1177 = vmatprep.subr.mxu0 0.0
        %1178 = vmatpush2.msra.mxu0 0.0
        %1179 = vmatprep.subr.mxu0 0.0
        %1180 = vmatpush2.msra.mxu0 0.0
        %1181 = vmatprep.subr.mxu0 0.0
        %1182 = vmatpush2.msra.mxu0 0.0
        %1183 = vmatprep.subr.mxu0 0.0
        %1184 = vmatpush2.msra.mxu0 0.0
        %1185 = vmatprep.subr.mxu0 0.0
        %1186 = vmatpush2.msra.mxu0 0.0
        %1187 = vmatprep.subr.mxu0 0.0
        %1188 = vmatpush2.msra.mxu0 0.0
        %1189 = vmatprep.subr.mxu0 0.0
        %1190 = vmatpush2.msra.mxu0 0.0
        %1191 = vmatprep.subr.mxu0 0.0
        %1192 = vmatpush2.msra.mxu0 0.0
        %1193 = vmatprep.subr.mxu0 0.0
        %1194 = vmatpush2.msra.mxu0 0.0
        %1195 = vmatprep.subr.mxu0 0.0
        %1196 = vmatpush2.msra.mxu0 0.0
        %1197 = vmatprep.subr.mxu0 0.0
        %1198 = vmatpush2.msra.mxu0 0.0
        %1199 = vmatprep.subr.mxu0 0.0
        %1200 = vmatpush2.msra.mxu0 0.0
        %1201 = vmatprep.subr.mxu0 0.0
        %1202 = vmatpush2.msra.mxu0 0.0
        %1203 = vmatprep.subr.mxu0 0.0
        %1204 = vmatpush2.msra.mxu0 0.0
        %1205 = vmatprep.mubr.f32.mxu0 0.0
        %v1206 = vand.u32 %v800, 4294901760
        %1207 = vmatmul.mubr.f32.gmra.mxu0 %v1206
        %v1208 = vpop.f32.mrf.mxu0
        %v1209 = vadd.f32 %v1126, %v1208
        %v1210 = vpop.f32.mrf.mxu0
        %1211 = vdwg.mxu0
        %1212 = vmatprep.subr.mxu0 0.0
        %1213 = vmatpush1.msra.mxu0 0.0
        %1214 = vmatprep.subr.mxu0 0.0
        %1215 = vmatpush1.msra.mxu0 0.0
        %1216 = vmatprep.subr.mxu0 0.0
        %1217 = vmatpush1.msra.mxu0 0.0
        %1218 = vmatprep.subr.mxu0 0.0
        %1219 = vmatpush1.msra.mxu0 0.0
        %1220 = vmatprep.subr.mxu0 0.0
        %1221 = vmatpush1.msra.mxu0 0.0
        %1222 = vmatprep.subr.mxu0 0.0
        %1223 = vmatpush1.msra.mxu0 0.0
        %1224 = vmatprep.subr.mxu0 0.0
        %1225 = vmatpush1.msra.mxu0 0.0
        %1226 = vmatprep.subr.mxu0 0.0
        %1227 = vmatpush1.msra.mxu0 0.0
        %1228 = vmatprep.subr.mxu0 0.0
        %1229 = vmatpush1.msra.mxu0 0.0
        %1230 = vmatprep.subr.mxu0 0.0
        %1231 = vmatpush1.msra.mxu0 0.0
        %1232 = vmatprep.subr.mxu0 0.0
        %1233 = vmatpush1.msra.mxu0 0.0
        %1234 = vmatprep.subr.mxu0 0.0
        %1235 = vmatpush1.msra.mxu0 0.0
        %1236 = vmatprep.subr.mxu0 0.0
        %v1237 = vand.u32 %v797, 4294901760
        %1238 = vmatpush1.msra.mxu0 %v1237
        %1239 = vmatprep.subr.mxu0 0.0
        %v1240 = vand.u32 %v796, 4294901760
        %1241 = vmatpush1.msra.mxu0 %v1240
        %1242 = vmatprep.subr.mxu0 0.0
        %v1243 = vand.u32 %v795, 4294901760
        %1244 = vmatpush1.msra.mxu0 %v1243
        %1245 = vmatprep.subr.mxu0 0.0
        %v1246 = vand.u32 %v794, 4294901760
        %1247 = vmatpush1.msra.mxu0 %v1246
        %1248 = vmatprep.subr.mxu0 0.0
        %1249 = vmatpush2.msra.mxu0 0.0
        %1250 = vmatprep.subr.mxu0 0.0
        %1251 = vmatpush2.msra.mxu0 0.0
        %1252 = vmatprep.subr.mxu0 0.0
        %1253 = vmatpush2.msra.mxu0 0.0
        %1254 = vmatprep.subr.mxu0 0.0
        %1255 = vmatpush2.msra.mxu0 0.0
        %1256 = vmatprep.subr.mxu0 0.0
        %1257 = vmatpush2.msra.mxu0 0.0
        %1258 = vmatprep.subr.mxu0 0.0
        %1259 = vmatpush2.msra.mxu0 0.0
        %1260 = vmatprep.subr.mxu0 0.0
        %1261 = vmatpush2.msra.mxu0 0.0
        %1262 = vmatprep.subr.mxu0 0.0
        %1263 = vmatpush2.msra.mxu0 0.0
        %1264 = vmatprep.subr.mxu0 0.0
        %1265 = vmatpush2.msra.mxu0 0.0
        %1266 = vmatprep.subr.mxu0 0.0
        %1267 = vmatpush2.msra.mxu0 0.0
        %1268 = vmatprep.subr.mxu0 0.0
        %1269 = vmatpush2.msra.mxu0 0.0
        %1270 = vmatprep.subr.mxu0 0.0
        %1271 = vmatpush2.msra.mxu0 0.0
        %1272 = vmatprep.subr.mxu0 0.0
        %1273 = vmatpush2.msra.mxu0 0.0
        %1274 = vmatprep.subr.mxu0 0.0
        %1275 = vmatpush2.msra.mxu0 0.0
        %1276 = vmatprep.subr.mxu0 0.0
        %1277 = vmatpush2.msra.mxu0 0.0
        %1278 = vmatprep.subr.mxu0 0.0
        %1279 = vmatpush2.msra.mxu0 0.0
        %1280 = vmatprep.mubr.f32.mxu0 0.0
        %v1281 = vand.u32 %v800, 4294901760
        %1282 = vmatmul.mubr.f32.gmra.mxu0 %v1281
        %v1283 = vpop.f32.mrf.mxu0
        %v1284 = vadd.f32 %v1209, %v1283
        %v1285 = vpop.f32.mrf.mxu0
        %1286 = vdwg.mxu0
        %v1287 = vtanh.pop %v1284
        %v1288 = vld [vmem:[%s5] sm:$0xff]
        %v1289 = vld [vmem:[%s5 + $0x8] sm:$0xff]
        %v1290 = vld [vmem:[%s5 + $0x10] sm:$0xff]
        %v1291 = vld [vmem:[%s5 + $0x18] sm:$0xff]
        %v1292 = vld [vmem:[%s5 + $0x20] sm:$0xff]
        %v1293 = vld [vmem:[%s5 + $0x28] sm:$0xff]
        %v1294 = vld [vmem:[%s5 + $0x30] sm:$0xff]
        %v1295 = vld [vmem:[%s5 + $0x38] sm:$0xff]
        %vm1296 = vcmask 523264
        %v1298 = vsel %vm1296, %v1287, 0
        %1300 = vmatprep.subr.mxu0 0.0
        %1301 = vmatpush1.msra.mxu0 0.0
        %1302 = vmatprep.subr.mxu0 0.0
        %1303 = vmatpush1.msra.mxu0 0.0
        %1304 = vmatprep.subr.mxu0 0.0
        %1305 = vmatpush1.msra.mxu0 0.0
        %1306 = vmatprep.subr.mxu0 0.0
        %1307 = vmatpush1.msra.mxu0 0.0
        %1308 = vmatprep.subr.mxu0 0.0
        %1309 = vmatpush1.msra.mxu0 0.0
        %1310 = vmatprep.subr.mxu0 0.0
        %1311 = vmatpush1.msra.mxu0 0.0
        %1312 = vmatprep.subr.mxu0 0.0
        %1313 = vmatpush1.msra.mxu0 0.0
        %1314 = vmatprep.subr.mxu0 0.0
        %1315 = vmatpush1.msra.mxu0 0.0
        %1316 = vmatprep.subr.mxu0 0.0
        %v1317 = vand.u32 %v1295, 4294901760
        %1318 = vmatpush1.msra.mxu0 %v1317
        %1319 = vmatprep.subr.mxu0 0.0
        %v1320 = vand.u32 %v1294, 4294901760
        %1321 = vmatpush1.msra.mxu0 %v1320
        %1322 = vmatprep.subr.mxu0 0.0
        %v1323 = vand.u32 %v1293, 4294901760
        %1324 = vmatpush1.msra.mxu0 %v1323
        %1325 = vmatprep.subr.mxu0 0.0
        %v1326 = vand.u32 %v1292, 4294901760
        %1327 = vmatpush1.msra.mxu0 %v1326
        %1328 = vmatprep.subr.mxu0 0.0
        %v1329 = vand.u32 %v1291, 4294901760
        %1330 = vmatpush1.msra.mxu0 %v1329
        %1331 = vmatprep.subr.mxu0 0.0
        %v1332 = vand.u32 %v1290, 4294901760
        %1333 = vmatpush1.msra.mxu0 %v1332
        %1334 = vmatprep.subr.mxu0 0.0
        %v1335 = vand.u32 %v1289, 4294901760
        %1336 = vmatpush1.msra.mxu0 %v1335
        %1337 = vmatprep.subr.mxu0 0.0
        %v1338 = vand.u32 %v1288, 4294901760
        %1339 = vmatpush1.msra.mxu0 %v1338
        %1340 = vmatprep.subr.mxu0 0.0
        %1341 = vmatpush2.msra.mxu0 0.0
        %1342 = vmatprep.subr.mxu0 0.0
        %1343 = vmatpush2.msra.mxu0 0.0
        %1344 = vmatprep.subr.mxu0 0.0
        %1345 = vmatpush2.msra.mxu0 0.0
        %1346 = vmatprep.subr.mxu0 0.0
        %1347 = vmatpush2.msra.mxu0 0.0
        %1348 = vmatprep.subr.mxu0 0.0
        %1349 = vmatpush2.msra.mxu0 0.0
        %1350 = vmatprep.subr.mxu0 0.0
        %1351 = vmatpush2.msra.mxu0 0.0
        %1352 = vmatprep.subr.mxu0 0.0
        %1353 = vmatpush2.msra.mxu0 0.0
        %1354 = vmatprep.subr.mxu0 0.0
        %1355 = vmatpush2.msra.mxu0 0.0
        %1356 = vmatprep.subr.mxu0 0.0
        %1357 = vmatpush2.msra.mxu0 0.0
        %1358 = vmatprep.subr.mxu0 0.0
        %1359 = vmatpush2.msra.mxu0 0.0
        %1360 = vmatprep.subr.mxu0 0.0
        %1361 = vmatpush2.msra.mxu0 0.0
        %1362 = vmatprep.subr.mxu0 0.0
        %1363 = vmatpush2.msra.mxu0 0.0
        %1364 = vmatprep.subr.mxu0 0.0
        %1365 = vmatpush2.msra.mxu0 0.0
        %1366 = vmatprep.subr.mxu0 0.0
        %1367 = vmatpush2.msra.mxu0 0.0
        %1368 = vmatprep.subr.mxu0 0.0
        %1369 = vmatpush2.msra.mxu0 0.0
        %1370 = vmatprep.subr.mxu0 0.0
        %1371 = vmatpush2.msra.mxu0 0.0
        %1372 = vmatprep.mubr.f32.mxu0 0.0
        %v1373 = vand.u32 %v1298, 4294901760
        %v1374 = vsub.f32 %v1298, %v1373
        %v1375 = vand.u32 %v1374, 4294901760
        %v1376 = vsub.f32 %v1374, %v1375
        %v1377 = vand.u32 %v1376, 4294901760
        %1378 = vmatmul.mubr.f32.gmra.mxu0 %v1377
        %v1379 = vpop.f32.mrf.mxu0
        %v1380 = vadd.f32 0.0, %v1379
        %v1381 = vpop.f32.mrf.mxu0
        %1382 = vdwg.mxu0
        %1383 = vmatprep.subr.mxu0 0.0
        %1384 = vmatpush1.msra.mxu0 0.0
        %1385 = vmatprep.subr.mxu0 0.0
        %1386 = vmatpush1.msra.mxu0 0.0
        %1387 = vmatprep.subr.mxu0 0.0
        %1388 = vmatpush1.msra.mxu0 0.0
        %1389 = vmatprep.subr.mxu0 0.0
        %1390 = vmatpush1.msra.mxu0 0.0
        %1391 = vmatprep.subr.mxu0 0.0
        %1392 = vmatpush1.msra.mxu0 0.0
        %1393 = vmatprep.subr.mxu0 0.0
        %1394 = vmatpush1.msra.mxu0 0.0
        %1395 = vmatprep.subr.mxu0 0.0
        %1396 = vmatpush1.msra.mxu0 0.0
        %1397 = vmatprep.subr.mxu0 0.0
        %1398 = vmatpush1.msra.mxu0 0.0
        %1399 = vmatprep.subr.mxu0 0.0
        %v1400 = vand.u32 %v1295, 4294901760
        %v1401 = vsub.f32 %v1295, %v1400
        %v1402 = vand.u32 %v1401, 4294901760
        %v1403 = vsub.f32 %v1401, %v1402
        %v1404 = vand.u32 %v1403, 4294901760
        %1405 = vmatpush1.msra.mxu0 %v1404
        %1406 = vmatprep.subr.mxu0 0.0
        %v1407 = vand.u32 %v1294, 4294901760
        %v1408 = vsub.f32 %v1294, %v1407
        %v1409 = vand.u32 %v1408, 4294901760
        %v1410 = vsub.f32 %v1408, %v1409
        %v1411 = vand.u32 %v1410, 4294901760
        %1412 = vmatpush1.msra.mxu0 %v1411
        %1413 = vmatprep.subr.mxu0 0.0
        %v1414 = vand.u32 %v1293, 4294901760
        %v1415 = vsub.f32 %v1293, %v1414
        %v1416 = vand.u32 %v1415, 4294901760
        %v1417 = vsub.f32 %v1415, %v1416
        %v1418 = vand.u32 %v1417, 4294901760
        %1419 = vmatpush1.msra.mxu0 %v1418
        %1420 = vmatprep.subr.mxu0 0.0
        %v1421 = vand.u32 %v1292, 4294901760
        %v1422 = vsub.f32 %v1292, %v1421
        %v1423 = vand.u32 %v1422, 4294901760
        %v1424 = vsub.f32 %v1422, %v1423
        %v1425 = vand.u32 %v1424, 4294901760
        %1426 = vmatpush1.msra.mxu0 %v1425
        %1427 = vmatprep.subr.mxu0 0.0
        %v1428 = vand.u32 %v1291, 4294901760
        %v1429 = vsub.f32 %v1291, %v1428
        %v1430 = vand.u32 %v1429, 4294901760
        %v1431 = vsub.f32 %v1429, %v1430
        %v1432 = vand.u32 %v1431, 4294901760
        %1433 = vmatpush1.msra.mxu0 %v1432
        %1434 = vmatprep.subr.mxu0 0.0
        %v1435 = vand.u32 %v1290, 4294901760
        %v1436 = vsub.f32 %v1290, %v1435
        %v1437 = vand.u32 %v1436, 4294901760
        %v1438 = vsub.f32 %v1436, %v1437
        %v1439 = vand.u32 %v1438, 4294901760
        %1440 = vmatpush1.msra.mxu0 %v1439
        %1441 = vmatprep.subr.mxu0 0.0
        %v1442 = vand.u32 %v1289, 4294901760
        %v1443 = vsub.f32 %v1289, %v1442
        %v1444 = vand.u32 %v1443, 4294901760
        %v1445 = vsub.f32 %v1443, %v1444
        %v1446 = vand.u32 %v1445, 4294901760
        %1447 = vmatpush1.msra.mxu0 %v1446
        %1448 = vmatprep.subr.mxu0 0.0
        %v1449 = vand.u32 %v1288, 4294901760
        %v1450 = vsub.f32 %v1288, %v1449
        %v1451 = vand.u32 %v1450, 4294901760
        %v1452 = vsub.f32 %v1450, %v1451
        %v1453 = vand.u32 %v1452, 4294901760
        %1454 = vmatpush1.msra.mxu0 %v1453
        %1455 = vmatprep.subr.mxu0 0.0
        %1456 = vmatpush2.msra.mxu0 0.0
        %1457 = vmatprep.subr.mxu0 0.0
        %1458 = vmatpush2.msra.mxu0 0.0
        %1459 = vmatprep.subr.mxu0 0.0
        %1460 = vmatpush2.msra.mxu0 0.0
        %1461 = vmatprep.subr.mxu0 0.0
        %1462 = vmatpush2.msra.mxu0 0.0
        %1463 = vmatprep.subr.mxu0 0.0
        %1464 = vmatpush2.msra.mxu0 0.0
        %1465 = vmatprep.subr.mxu0 0.0
        %1466 = vmatpush2.msra.mxu0 0.0
        %1467 = vmatprep.subr.mxu0 0.0
        %1468 = vmatpush2.msra.mxu0 0.0
        %1469 = vmatprep.subr.mxu0 0.0
        %1470 = vmatpush2.msra.mxu0 0.0
        %1471 = vmatprep.subr.mxu0 0.0
        %1472 = vmatpush2.msra.mxu0 0.0
        %1473 = vmatprep.subr.mxu0 0.0
        %1474 = vmatpush2.msra.mxu0 0.0
        %1475 = vmatprep.subr.mxu0 0.0
        %1476 = vmatpush2.msra.mxu0 0.0
        %1477 = vmatprep.subr.mxu0 0.0
        %1478 = vmatpush2.msra.mxu0 0.0
        %1479 = vmatprep.subr.mxu0 0.0
        %1480 = vmatpush2.msra.mxu0 0.0
        %1481 = vmatprep.subr.mxu0 0.0
        %1482 = vmatpush2.msra.mxu0 0.0
        %1483 = vmatprep.subr.mxu0 0.0
        %1484 = vmatpush2.msra.mxu0 0.0
        %1485 = vmatprep.subr.mxu0 0.0
        %1486 = vmatpush2.msra.mxu0 0.0
        %1487 = vmatprep.mubr.f32.mxu0 0.0
        %v1488 = vand.u32 %v1298, 4294901760
        %1489 = vmatmul.mubr.f32.gmra.mxu0 %v1488
        %v1490 = vpop.f32.mrf.mxu0
        %v1491 = vadd.f32 %v1380, %v1490
        %v1492 = vpop.f32.mrf.mxu0
        %1493 = vdwg.mxu0
        %1494 = vmatprep.subr.mxu0 0.0
        %1495 = vmatpush1.msra.mxu0 0.0
        %1496 = vmatprep.subr.mxu0 0.0
        %1497 = vmatpush1.msra.mxu0 0.0
        %1498 = vmatprep.subr.mxu0 0.0
        %1499 = vmatpush1.msra.mxu0 0.0
        %1500 = vmatprep.subr.mxu0 0.0
        %1501 = vmatpush1.msra.mxu0 0.0
        %1502 = vmatprep.subr.mxu0 0.0
        %1503 = vmatpush1.msra.mxu0 0.0
        %1504 = vmatprep.subr.mxu0 0.0
        %1505 = vmatpush1.msra.mxu0 0.0
        %1506 = vmatprep.subr.mxu0 0.0
        %1507 = vmatpush1.msra.mxu0 0.0
        %1508 = vmatprep.subr.mxu0 0.0
        %1509 = vmatpush1.msra.mxu0 0.0
        %1510 = vmatprep.subr.mxu0 0.0
        %v1511 = vand.u32 %v1295, 4294901760
        %v1512 = vsub.f32 %v1295, %v1511
        %1513 = vmatpush1.msra.mxu0 %v1512
        %1514 = vmatprep.subr.mxu0 0.0
        %v1515 = vand.u32 %v1294, 4294901760
        %v1516 = vsub.f32 %v1294, %v1515
        %1517 = vmatpush1.msra.mxu0 %v1516
        %1518 = vmatprep.subr.mxu0 0.0
        %v1519 = vand.u32 %v1293, 4294901760
        %v1520 = vsub.f32 %v1293, %v1519
        %1521 = vmatpush1.msra.mxu0 %v1520
        %1522 = vmatprep.subr.mxu0 0.0
        %v1523 = vand.u32 %v1292, 4294901760
        %v1524 = vsub.f32 %v1292, %v1523
        %1525 = vmatpush1.msra.mxu0 %v1524
        %1526 = vmatprep.subr.mxu0 0.0
        %v1527 = vand.u32 %v1291, 4294901760
        %v1528 = vsub.f32 %v1291, %v1527
        %1529 = vmatpush1.msra.mxu0 %v1528
        %1530 = vmatprep.subr.mxu0 0.0
        %v1531 = vand.u32 %v1290, 4294901760
        %v1532 = vsub.f32 %v1290, %v1531
        %1533 = vmatpush1.msra.mxu0 %v1532
        %1534 = vmatprep.subr.mxu0 0.0
        %v1535 = vand.u32 %v1289, 4294901760
        %v1536 = vsub.f32 %v1289, %v1535
        %1537 = vmatpush1.msra.mxu0 %v1536
        %1538 = vmatprep.subr.mxu0 0.0
        %v1539 = vand.u32 %v1288, 4294901760
        %v1540 = vsub.f32 %v1288, %v1539
        %1541 = vmatpush1.msra.mxu0 %v1540
        %1542 = vmatprep.subr.mxu0 0.0
        %1543 = vmatpush2.msra.mxu0 0.0
        %1544 = vmatprep.subr.mxu0 0.0
        %1545 = vmatpush2.msra.mxu0 0.0
        %1546 = vmatprep.subr.mxu0 0.0
        %1547 = vmatpush2.msra.mxu0 0.0
        %1548 = vmatprep.subr.mxu0 0.0
        %1549 = vmatpush2.msra.mxu0 0.0
        %1550 = vmatprep.subr.mxu0 0.0
        %1551 = vmatpush2.msra.mxu0 0.0
        %1552 = vmatprep.subr.mxu0 0.0
        %1553 = vmatpush2.msra.mxu0 0.0
        %1554 = vmatprep.subr.mxu0 0.0
        %1555 = vmatpush2.msra.mxu0 0.0
        %1556 = vmatprep.subr.mxu0 0.0
        %1557 = vmatpush2.msra.mxu0 0.0
        %1558 = vmatprep.subr.mxu0 0.0
        %1559 = vmatpush2.msra.mxu0 0.0
        %1560 = vmatprep.subr.mxu0 0.0
        %1561 = vmatpush2.msra.mxu0 0.0
        %1562 = vmatprep.subr.mxu0 0.0
        %1563 = vmatpush2.msra.mxu0 0.0
        %1564 = vmatprep.subr.mxu0 0.0
        %1565 = vmatpush2.msra.mxu0 0.0
        %1566 = vmatprep.subr.mxu0 0.0
        %1567 = vmatpush2.msra.mxu0 0.0
        %1568 = vmatprep.subr.mxu0 0.0
        %1569 = vmatpush2.msra.mxu0 0.0
        %1570 = vmatprep.subr.mxu0 0.0
        %1571 = vmatpush2.msra.mxu0 0.0
        %1572 = vmatprep.subr.mxu0 0.0
        %1573 = vmatpush2.msra.mxu0 0.0
        %1574 = vmatprep.mubr.f32.mxu0 0.0
        %v1575 = vand.u32 %v1298, 4294901760
        %v1576 = vsub.f32 %v1298, %v1575
        %1577 = vmatmul.mubr.f32.gmra.mxu0 %v1576
        %v1578 = vpop.f32.mrf.mxu0
        %v1579 = vadd.f32 %v1491, %v1578
        %v1580 = vpop.f32.mrf.mxu0
        %1581 = vdwg.mxu0
        %1582 = vmatprep.subr.mxu0 0.0
        %1583 = vmatpush1.msra.mxu0 0.0
        %1584 = vmatprep.subr.mxu0 0.0
        %1585 = vmatpush1.msra.mxu0 0.0
        %1586 = vmatprep.subr.mxu0 0.0
        %1587 = vmatpush1.msra.mxu0 0.0
        %1588 = vmatprep.subr.mxu0 0.0
        %1589 = vmatpush1.msra.mxu0 0.0
        %1590 = vmatprep.subr.mxu0 0.0
        %1591 = vmatpush1.msra.mxu0 0.0
        %1592 = vmatprep.subr.mxu0 0.0
        %1593 = vmatpush1.msra.mxu0 0.0
        %1594 = vmatprep.subr.mxu0 0.0
        %1595 = vmatpush1.msra.mxu0 0.0
        %1596 = vmatprep.subr.mxu0 0.0
        %1597 = vmatpush1.msra.mxu0 0.0
        %1598 = vmatprep.subr.mxu0 0.0
        %v1599 = vand.u32 %v1295, 4294901760
        %1600 = vmatpush1.msra.mxu0 %v1599
        %1601 = vmatprep.subr.mxu0 0.0
        %v1602 = vand.u32 %v1294, 4294901760
        %1603 = vmatpush1.msra.mxu0 %v1602
        %1604 = vmatprep.subr.mxu0 0.0
        %v1605 = vand.u32 %v1293, 4294901760
        %1606 = vmatpush1.msra.mxu0 %v1605
        %1607 = vmatprep.subr.mxu0 0.0
        %v1608 = vand.u32 %v1292, 4294901760
        %1609 = vmatpush1.msra.mxu0 %v1608
        %1610 = vmatprep.subr.mxu0 0.0
        %v1611 = vand.u32 %v1291, 4294901760
        %1612 = vmatpush1.msra.mxu0 %v1611
        %1613 = vmatprep.subr.mxu0 0.0
        %v1614 = vand.u32 %v1290, 4294901760
        %1615 = vmatpush1.msra.mxu0 %v1614
        %1616 = vmatprep.subr.mxu0 0.0
        %v1617 = vand.u32 %v1289, 4294901760
        %1618 = vmatpush1.msra.mxu0 %v1617
        %1619 = vmatprep.subr.mxu0 0.0
        %v1620 = vand.u32 %v1288, 4294901760
        %1621 = vmatpush1.msra.mxu0 %v1620
        %1622 = vmatprep.subr.mxu0 0.0
        %1623 = vmatpush2.msra.mxu0 0.0
        %1624 = vmatprep.subr.mxu0 0.0
        %1625 = vmatpush2.msra.mxu0 0.0
        %1626 = vmatprep.subr.mxu0 0.0
        %1627 = vmatpush2.msra.mxu0 0.0
        %1628 = vmatprep.subr.mxu0 0.0
        %1629 = vmatpush2.msra.mxu0 0.0
        %1630 = vmatprep.subr.mxu0 0.0
        %1631 = vmatpush2.msra.mxu0 0.0
        %1632 = vmatprep.subr.mxu0 0.0
        %1633 = vmatpush2.msra.mxu0 0.0
        %1634 = vmatprep.subr.mxu0 0.0
        %1635 = vmatpush2.msra.mxu0 0.0
        %1636 = vmatprep.subr.mxu0 0.0
        %1637 = vmatpush2.msra.mxu0 0.0
        %1638 = vmatprep.subr.mxu0 0.0
        %1639 = vmatpush2.msra.mxu0 0.0
        %1640 = vmatprep.subr.mxu0 0.0
        %1641 = vmatpush2.msra.mxu0 0.0
        %1642 = vmatprep.subr.mxu0 0.0
        %1643 = vmatpush2.msra.mxu0 0.0
        %1644 = vmatprep.subr.mxu0 0.0
        %1645 = vmatpush2.msra.mxu0 0.0
        %1646 = vmatprep.subr.mxu0 0.0
        %1647 = vmatpush2.msra.mxu0 0.0
        %1648 = vmatprep.subr.mxu0 0.0
        %1649 = vmatpush2.msra.mxu0 0.0
        %1650 = vmatprep.subr.mxu0 0.0
        %1651 = vmatpush2.msra.mxu0 0.0
        %1652 = vmatprep.subr.mxu0 0.0
        %1653 = vmatpush2.msra.mxu0 0.0
        %1654 = vmatprep.mubr.f32.mxu0 0.0
        %v1655 = vand.u32 %v1298, 4294901760
        %v1656 = vsub.f32 %v1298, %v1655
        %v1657 = vand.u32 %v1656, 4294901760
        %1658 = vmatmul.mubr.f32.gmra.mxu0 %v1657
        %v1659 = vpop.f32.mrf.mxu0
        %v1660 = vadd.f32 %v1579, %v1659
        %v1661 = vpop.f32.mrf.mxu0
        %1662 = vdwg.mxu0
        %1663 = vmatprep.subr.mxu0 0.0
        %1664 = vmatpush1.msra.mxu0 0.0
        %1665 = vmatprep.subr.mxu0 0.0
        %1666 = vmatpush1.msra.mxu0 0.0
        %1667 = vmatprep.subr.mxu0 0.0
        %1668 = vmatpush1.msra.mxu0 0.0
        %1669 = vmatprep.subr.mxu0 0.0
        %1670 = vmatpush1.msra.mxu0 0.0
        %1671 = vmatprep.subr.mxu0 0.0
        %1672 = vmatpush1.msra.mxu0 0.0
        %1673 = vmatprep.subr.mxu0 0.0
        %1674 = vmatpush1.msra.mxu0 0.0
        %1675 = vmatprep.subr.mxu0 0.0
        %1676 = vmatpush1.msra.mxu0 0.0
        %1677 = vmatprep.subr.mxu0 0.0
        %1678 = vmatpush1.msra.mxu0 0.0
        %1679 = vmatprep.subr.mxu0 0.0
        %v1680 = vand.u32 %v1295, 4294901760
        %v1681 = vsub.f32 %v1295, %v1680
        %v1682 = vand.u32 %v1681, 4294901760
        %1683 = vmatpush1.msra.mxu0 %v1682
        %1684 = vmatprep.subr.mxu0 0.0
        %v1685 = vand.u32 %v1294, 4294901760
        %v1686 = vsub.f32 %v1294, %v1685
        %v1687 = vand.u32 %v1686, 4294901760
        %1688 = vmatpush1.msra.mxu0 %v1687
        %1689 = vmatprep.subr.mxu0 0.0
        %v1690 = vand.u32 %v1293, 4294901760
        %v1691 = vsub.f32 %v1293, %v1690
        %v1692 = vand.u32 %v1691, 4294901760
        %1693 = vmatpush1.msra.mxu0 %v1692
        %1694 = vmatprep.subr.mxu0 0.0
        %v1695 = vand.u32 %v1292, 4294901760
        %v1696 = vsub.f32 %v1292, %v1695
        %v1697 = vand.u32 %v1696, 4294901760
        %1698 = vmatpush1.msra.mxu0 %v1697
        %1699 = vmatprep.subr.mxu0 0.0
        %v1700 = vand.u32 %v1291, 4294901760
        %v1701 = vsub.f32 %v1291, %v1700
        %v1702 = vand.u32 %v1701, 4294901760
        %1703 = vmatpush1.msra.mxu0 %v1702
        %1704 = vmatprep.subr.mxu0 0.0
        %v1705 = vand.u32 %v1290, 4294901760
        %v1706 = vsub.f32 %v1290, %v1705
        %v1707 = vand.u32 %v1706, 4294901760
        %1708 = vmatpush1.msra.mxu0 %v1707
        %1709 = vmatprep.subr.mxu0 0.0
        %v1710 = vand.u32 %v1289, 4294901760
        %v1711 = vsub.f32 %v1289, %v1710
        %v1712 = vand.u32 %v1711, 4294901760
        %1713 = vmatpush1.msra.mxu0 %v1712
        %1714 = vmatprep.subr.mxu0 0.0
        %v1715 = vand.u32 %v1288, 4294901760
        %v1716 = vsub.f32 %v1288, %v1715
        %v1717 = vand.u32 %v1716, 4294901760
        %1718 = vmatpush1.msra.mxu0 %v1717
        %1719 = vmatprep.subr.mxu0 0.0
        %1720 = vmatpush2.msra.mxu0 0.0
        %1721 = vmatprep.subr.mxu0 0.0
        %1722 = vmatpush2.msra.mxu0 0.0
        %1723 = vmatprep.subr.mxu0 0.0
        %1724 = vmatpush2.msra.mxu0 0.0
        %1725 = vmatprep.subr.mxu0 0.0
        %1726 = vmatpush2.msra.mxu0 0.0
        %1727 = vmatprep.subr.mxu0 0.0
        %1728 = vmatpush2.msra.mxu0 0.0
        %1729 = vmatprep.subr.mxu0 0.0
        %1730 = vmatpush2.msra.mxu0 0.0
        %1731 = vmatprep.subr.mxu0 0.0
        %1732 = vmatpush2.msra.mxu0 0.0
        %1733 = vmatprep.subr.mxu0 0.0
        %1734 = vmatpush2.msra.mxu0 0.0
        %1735 = vmatprep.subr.mxu0 0.0
        %1736 = vmatpush2.msra.mxu0 0.0
        %1737 = vmatprep.subr.mxu0 0.0
        %1738 = vmatpush2.msra.mxu0 0.0
        %1739 = vmatprep.subr.mxu0 0.0
        %1740 = vmatpush2.msra.mxu0 0.0
        %1741 = vmatprep.subr.mxu0 0.0
        %1742 = vmatpush2.msra.mxu0 0.0
        %1743 = vmatprep.subr.mxu0 0.0
        %1744 = vmatpush2.msra.mxu0 0.0
        %1745 = vmatprep.subr.mxu0 0.0
        %1746 = vmatpush2.msra.mxu0 0.0
        %1747 = vmatprep.subr.mxu0 0.0
        %1748 = vmatpush2.msra.mxu0 0.0
        %1749 = vmatprep.subr.mxu0 0.0
        %1750 = vmatpush2.msra.mxu0 0.0
        %1751 = vmatprep.mubr.f32.mxu0 0.0
        %v1752 = vand.u32 %v1298, 4294901760
        %1753 = vmatmul.mubr.f32.gmra.mxu0 %v1752
        %v1754 = vpop.f32.mrf.mxu0
        %v1755 = vadd.f32 %v1660, %v1754
        %v1756 = vpop.f32.mrf.mxu0
        %1757 = vdwg.mxu0
        %1758 = vmatprep.subr.mxu0 0.0
        %1759 = vmatpush1.msra.mxu0 0.0
        %1760 = vmatprep.subr.mxu0 0.0
        %1761 = vmatpush1.msra.mxu0 0.0
        %1762 = vmatprep.subr.mxu0 0.0
        %1763 = vmatpush1.msra.mxu0 0.0
        %1764 = vmatprep.subr.mxu0 0.0
        %1765 = vmatpush1.msra.mxu0 0.0
        %1766 = vmatprep.subr.mxu0 0.0
        %1767 = vmatpush1.msra.mxu0 0.0
        %1768 = vmatprep.subr.mxu0 0.0
        %1769 = vmatpush1.msra.mxu0 0.0
        %1770 = vmatprep.subr.mxu0 0.0
        %1771 = vmatpush1.msra.mxu0 0.0
        %1772 = vmatprep.subr.mxu0 0.0
        %1773 = vmatpush1.msra.mxu0 0.0
        %1774 = vmatprep.subr.mxu0 0.0
        %v1775 = vand.u32 %v1295, 4294901760
        %1776 = vmatpush1.msra.mxu0 %v1775
        %1777 = vmatprep.subr.mxu0 0.0
        %v1778 = vand.u32 %v1294, 4294901760
        %1779 = vmatpush1.msra.mxu0 %v1778
        %1780 = vmatprep.subr.mxu0 0.0
        %v1781 = vand.u32 %v1293, 4294901760
        %1782 = vmatpush1.msra.mxu0 %v1781
        %1783 = vmatprep.subr.mxu0 0.0
        %v1784 = vand.u32 %v1292, 4294901760
        %1785 = vmatpush1.msra.mxu0 %v1784
        %1786 = vmatprep.subr.mxu0 0.0
        %v1787 = vand.u32 %v1291, 4294901760
        %1788 = vmatpush1.msra.mxu0 %v1787
        %1789 = vmatprep.subr.mxu0 0.0
        %v1790 = vand.u32 %v1290, 4294901760
        %1791 = vmatpush1.msra.mxu0 %v1790
        %1792 = vmatprep.subr.mxu0 0.0
        %v1793 = vand.u32 %v1289, 4294901760
        %1794 = vmatpush1.msra.mxu0 %v1793
        %1795 = vmatprep.subr.mxu0 0.0
        %v1796 = vand.u32 %v1288, 4294901760
        %1797 = vmatpush1.msra.mxu0 %v1796
        %1798 = vmatprep.subr.mxu0 0.0
        %1799 = vmatpush2.msra.mxu0 0.0
        %1800 = vmatprep.subr.mxu0 0.0
        %1801 = vmatpush2.msra.mxu0 0.0
        %1802 = vmatprep.subr.mxu0 0.0
        %1803 = vmatpush2.msra.mxu0 0.0
        %1804 = vmatprep.subr.mxu0 0.0
        %1805 = vmatpush2.msra.mxu0 0.0
        %1806 = vmatprep.subr.mxu0 0.0
        %1807 = vmatpush2.msra.mxu0 0.0
        %1808 = vmatprep.subr.mxu0 0.0
        %1809 = vmatpush2.msra.mxu0 0.0
        %1810 = vmatprep.subr.mxu0 0.0
        %1811 = vmatpush2.msra.mxu0 0.0
        %1812 = vmatprep.subr.mxu0 0.0
        %1813 = vmatpush2.msra.mxu0 0.0
        %1814 = vmatprep.subr.mxu0 0.0
        %1815 = vmatpush2.msra.mxu0 0.0
        %1816 = vmatprep.subr.mxu0 0.0
        %1817 = vmatpush2.msra.mxu0 0.0
        %1818 = vmatprep.subr.mxu0 0.0
        %1819 = vmatpush2.msra.mxu0 0.0
        %1820 = vmatprep.subr.mxu0 0.0
        %1821 = vmatpush2.msra.mxu0 0.0
        %1822 = vmatprep.subr.mxu0 0.0
        %1823 = vmatpush2.msra.mxu0 0.0
        %1824 = vmatprep.subr.mxu0 0.0
        %1825 = vmatpush2.msra.mxu0 0.0
        %1826 = vmatprep.subr.mxu0 0.0
        %1827 = vmatpush2.msra.mxu0 0.0
        %1828 = vmatprep.subr.mxu0 0.0
        %1829 = vmatpush2.msra.mxu0 0.0
        %1830 = vmatprep.mubr.f32.mxu0 0.0
        %v1831 = vand.u32 %v1298, 4294901760
        %1832 = vmatmul.mubr.f32.gmra.mxu0 %v1831
        %v1833 = vpop.f32.mrf.mxu0
        %v1834 = vadd.f32 %v1755, %v1833
        %v1835 = vpop.f32.mrf.mxu0
        %1836 = vdwg.mxu0
        %v1837 = vld [vmem:[%s316] sm:$0xff]
        %vm1838 = vcmp.gt.f32.partialorder %v1837, 0.5
        %v1839 = vsel %vm1838, %v1834, -1e+30
        %vm1840 = vcmask 31744
        %v1841 = vsel %vm1840, %v1839, -inf
        %v1842 = vrot.slane %v1841, 4
        %v1843 = vmax.f32 %v1841, %v1842
        %v1844 = vrot.slane %v1843, 2
        %v1845 = vmax.f32 %v1843, %v1844
        %v1846 = vrot.slane %v1845, 1
        %v1847 = vmax.f32 %v1845, %v1846
        %v1848 = vsub.f32 %v1839, %v1847
        %v1849 = vmul.f32 %v1848, 1.442695
        %v1850 = vpow.pop %v1849
        %v1851 = vsel %vm1840, %v1850, 0.0
        %v1852 = vrot.slane %v1851, 4
        %v1853 = vadd.f32 %v1851, %v1852
        %v1854 = vrot.slane %v1853, 2
        %v1855 = vadd.f32 %v1853, %v1854
        %v1856 = vrot.slane %v1855, 1
        %v1857 = vadd.f32 %v1855, %v1856
        %v1858 = vrcp.pop %v1857
        %v1859 = vmul.f32 %v1850, %v1858
        %1860 = vxpose.xlu0.b32.start [1/16] %v1859, 128
        %1861 = vxpose.xlu0.b32.cont [2/16] 0.0, 128
        %1862 = vxpose.xlu0.b32.cont [3/16] 0.0, 128
        %1863 = vxpose.xlu0.b32.cont [4/16] 0.0, 128
        %1864 = vxpose.xlu0.b32.cont [5/16] 0.0, 128
        %1865 = vxpose.xlu0.b32.cont [6/16] 0.0, 128
        %1866 = vxpose.xlu0.b32.cont [7/16] 0.0, 128
        %1867 = vxpose.xlu0.b32.cont [8/16] 0.0, 128
        %1868 = vxpose.xlu0.b32.cont [9/16] 0.0, 128
        %1869 = vxpose.xlu0.b32.cont [10/16] 0.0, 128
        %1870 = vxpose.xlu0.b32.cont [11/16] 0.0, 128
        %1871 = vxpose.xlu0.b32.cont [12/16] 0.0, 128
        %1872 = vxpose.xlu0.b32.cont [13/16] 0.0, 128
        %1873 = vxpose.xlu0.b32.cont [14/16] 0.0, 128
        %1874 = vxpose.xlu0.b32.cont [15/16] 0.0, 128
        %1875 = vxpose.xlu0.b32.end [16/16] 0.0, 128
        %v1876 = vpop.trf.xlu0
        %v1877 = vpop.trf.xlu0
        %v1878 = vpop.trf.xlu0
        %v1879 = vpop.trf.xlu0
        %v1880 = vpop.trf.xlu0
        %v1881 = vpop.trf.xlu0
        %v1882 = vpop.trf.xlu0
        %v1883 = vpop.trf.xlu0
        %v1884 = vpop.trf.xlu0
        %v1885 = vpop.trf.xlu0
        %v1886 = vpop.trf.xlu0
        %v1887 = vpop.trf.xlu0
        %v1888 = vpop.trf.xlu0
        %v1889 = vpop.trf.xlu0
        %v1890 = vpop.trf.xlu0
        %v1891 = vpop.trf.xlu0
        %vm1892 = vcmask 64512
        %v1894 = vsel %vm1892, %v1876, 0
        %1896 = vmatprep.subr.mxu0 0.0
        %1897 = vmatpush1.msra.mxu0 0.0
        %1898 = vmatprep.subr.mxu0 0.0
        %1899 = vmatpush1.msra.mxu0 0.0
        %1900 = vmatprep.subr.mxu0 0.0
        %1901 = vmatpush1.msra.mxu0 0.0
        %1902 = vmatprep.subr.mxu0 0.0
        %1903 = vmatpush1.msra.mxu0 0.0
        %1904 = vmatprep.subr.mxu0 0.0
        %1905 = vmatpush1.msra.mxu0 0.0
        %1906 = vmatprep.subr.mxu0 0.0
        %1907 = vmatpush1.msra.mxu0 0.0
        %1908 = vmatprep.subr.mxu0 0.0
        %1909 = vmatpush1.msra.mxu0 0.0
        %1910 = vmatprep.subr.mxu0 0.0
        %1911 = vmatpush1.msra.mxu0 0.0
        %1912 = vmatprep.subr.mxu0 0.0
        %1913 = vmatpush1.msra.mxu0 0.0
        %1914 = vmatprep.subr.mxu0 0.0
        %1915 = vmatpush1.msra.mxu0 0.0
        %1916 = vmatprep.subr.mxu0 0.0
        %1917 = vmatpush1.msra.mxu0 0.0
        %1918 = vmatprep.subr.mxu0 0.0
        %1919 = vmatpush1.msra.mxu0 0.0
        %1920 = vmatprep.subr.mxu0 0.0
        %1921 = vmatpush1.msra.mxu0 0.0
        %1922 = vmatprep.subr.mxu0 0.0
        %1923 = vmatpush1.msra.mxu0 0.0
        %1924 = vmatprep.subr.mxu0 0.0
        %1925 = vmatpush1.msra.mxu0 0.0
        %1926 = vmatprep.subr.mxu0 0.0
        %v1927 = vand.u32 %v791, 4294901760
        %1928 = vmatpush1.msra.mxu0 %v1927
        %1929 = vmatprep.subr.mxu0 0.0
        %1930 = vmatpush2.msra.mxu0 0.0
        %1931 = vmatprep.subr.mxu0 0.0
        %1932 = vmatpush2.msra.mxu0 0.0
        %1933 = vmatprep.subr.mxu0 0.0
        %1934 = vmatpush2.msra.mxu0 0.0
        %1935 = vmatprep.subr.mxu0 0.0
        %1936 = vmatpush2.msra.mxu0 0.0
        %1937 = vmatprep.subr.mxu0 0.0
        %1938 = vmatpush2.msra.mxu0 0.0
        %1939 = vmatprep.subr.mxu0 0.0
        %1940 = vmatpush2.msra.mxu0 0.0
        %1941 = vmatprep.subr.mxu0 0.0
        %1942 = vmatpush2.msra.mxu0 0.0
        %1943 = vmatprep.subr.mxu0 0.0
        %1944 = vmatpush2.msra.mxu0 0.0
        %1945 = vmatprep.subr.mxu0 0.0
        %1946 = vmatpush2.msra.mxu0 0.0
        %1947 = vmatprep.subr.mxu0 0.0
        %1948 = vmatpush2.msra.mxu0 0.0
        %1949 = vmatprep.subr.mxu0 0.0
        %1950 = vmatpush2.msra.mxu0 0.0
        %1951 = vmatprep.subr.mxu0 0.0
        %1952 = vmatpush2.msra.mxu0 0.0
        %1953 = vmatprep.subr.mxu0 0.0
        %1954 = vmatpush2.msra.mxu0 0.0
        %1955 = vmatprep.subr.mxu0 0.0
        %1956 = vmatpush2.msra.mxu0 0.0
        %1957 = vmatprep.subr.mxu0 0.0
        %1958 = vmatpush2.msra.mxu0 0.0
        %1959 = vmatprep.subr.mxu0 0.0
        %1960 = vmatpush2.msra.mxu0 0.0
        %1961 = vmatprep.mubr.f32.mxu0 0.0
        %v1962 = vand.u32 %v1894, 4294901760
        %v1963 = vsub.f32 %v1894, %v1962
        %v1964 = vand.u32 %v1963, 4294901760
        %v1965 = vsub.f32 %v1963, %v1964
        %v1966 = vand.u32 %v1965, 4294901760
        %1967 = vmatmul.mubr.f32.gmra.mxu0 %v1966
        %v1968 = vpop.f32.mrf.mxu0
        %v1969 = vadd.f32 0.0, %v1968
        %v1970 = vpop.f32.mrf.mxu0
        %1971 = vdwg.mxu0
        %1972 = vmatprep.subr.mxu0 0.0
        %1973 = vmatpush1.msra.mxu0 0.0
        %1974 = vmatprep.subr.mxu0 0.0
        %1975 = vmatpush1.msra.mxu0 0.0
        %1976 = vmatprep.subr.mxu0 0.0
        %1977 = vmatpush1.msra.mxu0 0.0
        %1978 = vmatprep.subr.mxu0 0.0
        %1979 = vmatpush1.msra.mxu0 0.0
        %1980 = vmatprep.subr.mxu0 0.0
        %1981 = vmatpush1.msra.mxu0 0.0
        %1982 = vmatprep.subr.mxu0 0.0
        %1983 = vmatpush1.msra.mxu0 0.0
        %1984 = vmatprep.subr.mxu0 0.0
        %1985 = vmatpush1.msra.mxu0 0.0
        %1986 = vmatprep.subr.mxu0 0.0
        %1987 = vmatpush1.msra.mxu0 0.0
        %1988 = vmatprep.subr.mxu0 0.0
        %1989 = vmatpush1.msra.mxu0 0.0
        %1990 = vmatprep.subr.mxu0 0.0
        %1991 = vmatpush1.msra.mxu0 0.0
        %1992 = vmatprep.subr.mxu0 0.0
        %1993 = vmatpush1.msra.mxu0 0.0
        %1994 = vmatprep.subr.mxu0 0.0
        %1995 = vmatpush1.msra.mxu0 0.0
        %1996 = vmatprep.subr.mxu0 0.0
        %1997 = vmatpush1.msra.mxu0 0.0
        %1998 = vmatprep.subr.mxu0 0.0
        %1999 = vmatpush1.msra.mxu0 0.0
        %2000 = vmatprep.subr.mxu0 0.0
        %2001 = vmatpush1.msra.mxu0 0.0
        %2002 = vmatprep.subr.mxu0 0.0
        %v2003 = vand.u32 %v791, 4294901760
        %v2004 = vsub.f32 %v791, %v2003
        %v2005 = vand.u32 %v2004, 4294901760
        %v2006 = vsub.f32 %v2004, %v2005
        %v2007 = vand.u32 %v2006, 4294901760
        %2008 = vmatpush1.msra.mxu0 %v2007
        %2009 = vmatprep.subr.mxu0 0.0
        %2010 = vmatpush2.msra.mxu0 0.0
        %2011 = vmatprep.subr.mxu0 0.0
        %2012 = vmatpush2.msra.mxu0 0.0
        %2013 = vmatprep.subr.mxu0 0.0
        %2014 = vmatpush2.msra.mxu0 0.0
        %2015 = vmatprep.subr.mxu0 0.0
        %2016 = vmatpush2.msra.mxu0 0.0
        %2017 = vmatprep.subr.mxu0 0.0
        %2018 = vmatpush2.msra.mxu0 0.0
        %2019 = vmatprep.subr.mxu0 0.0
        %2020 = vmatpush2.msra.mxu0 0.0
        %2021 = vmatprep.subr.mxu0 0.0
        %2022 = vmatpush2.msra.mxu0 0.0
        %2023 = vmatprep.subr.mxu0 0.0
        %2024 = vmatpush2.msra.mxu0 0.0
        %2025 = vmatprep.subr.mxu0 0.0
        %2026 = vmatpush2.msra.mxu0 0.0
        %2027 = vmatprep.subr.mxu0 0.0
        %2028 = vmatpush2.msra.mxu0 0.0
        %2029 = vmatprep.subr.mxu0 0.0
        %2030 = vmatpush2.msra.mxu0 0.0
        %2031 = vmatprep.subr.mxu0 0.0
        %2032 = vmatpush2.msra.mxu0 0.0
        %2033 = vmatprep.subr.mxu0 0.0
        %2034 = vmatpush2.msra.mxu0 0.0
        %2035 = vmatprep.subr.mxu0 0.0
        %2036 = vmatpush2.msra.mxu0 0.0
        %2037 = vmatprep.subr.mxu0 0.0
        %2038 = vmatpush2.msra.mxu0 0.0
        %2039 = vmatprep.subr.mxu0 0.0
        %2040 = vmatpush2.msra.mxu0 0.0
        %2041 = vmatprep.mubr.f32.mxu0 0.0
        %v2042 = vand.u32 %v1894, 4294901760
        %2043 = vmatmul.mubr.f32.gmra.mxu0 %v2042
        %v2044 = vpop.f32.mrf.mxu0
        %v2045 = vadd.f32 %v1969, %v2044
        %v2046 = vpop.f32.mrf.mxu0
        %2047 = vdwg.mxu0
        %2048 = vmatprep.subr.mxu0 0.0
        %2049 = vmatpush1.msra.mxu0 0.0
        %2050 = vmatprep.subr.mxu0 0.0
        %2051 = vmatpush1.msra.mxu0 0.0
        %2052 = vmatprep.subr.mxu0 0.0
        %2053 = vmatpush1.msra.mxu0 0.0
        %2054 = vmatprep.subr.mxu0 0.0
        %2055 = vmatpush1.msra.mxu0 0.0
        %2056 = vmatprep.subr.mxu0 0.0
        %2057 = vmatpush1.msra.mxu0 0.0
        %2058 = vmatprep.subr.mxu0 0.0
        %2059 = vmatpush1.msra.mxu0 0.0
        %2060 = vmatprep.subr.mxu0 0.0
        %2061 = vmatpush1.msra.mxu0 0.0
        %2062 = vmatprep.subr.mxu0 0.0
        %2063 = vmatpush1.msra.mxu0 0.0
        %2064 = vmatprep.subr.mxu0 0.0
        %2065 = vmatpush1.msra.mxu0 0.0
        %2066 = vmatprep.subr.mxu0 0.0
        %2067 = vmatpush1.msra.mxu0 0.0
        %2068 = vmatprep.subr.mxu0 0.0
        %2069 = vmatpush1.msra.mxu0 0.0
        %2070 = vmatprep.subr.mxu0 0.0
        %2071 = vmatpush1.msra.mxu0 0.0
        %2072 = vmatprep.subr.mxu0 0.0
        %2073 = vmatpush1.msra.mxu0 0.0
        %2074 = vmatprep.subr.mxu0 0.0
        %2075 = vmatpush1.msra.mxu0 0.0
        %2076 = vmatprep.subr.mxu0 0.0
        %2077 = vmatpush1.msra.mxu0 0.0
        %2078 = vmatprep.subr.mxu0 0.0
        %v2079 = vand.u32 %v791, 4294901760
        %v2080 = vsub.f32 %v791, %v2079
        %2081 = vmatpush1.msra.mxu0 %v2080
        %2082 = vmatprep.subr.mxu0 0.0
        %2083 = vmatpush2.msra.mxu0 0.0
        %2084 = vmatprep.subr.mxu0 0.0
        %2085 = vmatpush2.msra.mxu0 0.0
        %2086 = vmatprep.subr.mxu0 0.0
        %2087 = vmatpush2.msra.mxu0 0.0
        %2088 = vmatprep.subr.mxu0 0.0
        %2089 = vmatpush2.msra.mxu0 0.0
        %2090 = vmatprep.subr.mxu0 0.0
        %2091 = vmatpush2.msra.mxu0 0.0
        %2092 = vmatprep.subr.mxu0 0.0
        %2093 = vmatpush2.msra.mxu0 0.0
        %2094 = vmatprep.subr.mxu0 0.0
        %2095 = vmatpush2.msra.mxu0 0.0
        %2096 = vmatprep.subr.mxu0 0.0
        %2097 = vmatpush2.msra.mxu0 0.0
        %2098 = vmatprep.subr.mxu0 0.0
        %2099 = vmatpush2.msra.mxu0 0.0
        %2100 = vmatprep.subr.mxu0 0.0
        %2101 = vmatpush2.msra.mxu0 0.0
        %2102 = vmatprep.subr.mxu0 0.0
        %2103 = vmatpush2.msra.mxu0 0.0
        %2104 = vmatprep.subr.mxu0 0.0
        %2105 = vmatpush2.msra.mxu0 0.0
        %2106 = vmatprep.subr.mxu0 0.0
        %2107 = vmatpush2.msra.mxu0 0.0
        %2108 = vmatprep.subr.mxu0 0.0
        %2109 = vmatpush2.msra.mxu0 0.0
        %2110 = vmatprep.subr.mxu0 0.0
        %2111 = vmatpush2.msra.mxu0 0.0
        %2112 = vmatprep.subr.mxu0 0.0
        %2113 = vmatpush2.msra.mxu0 0.0
        %2114 = vmatprep.mubr.f32.mxu0 0.0
        %v2115 = vand.u32 %v1894, 4294901760
        %v2116 = vsub.f32 %v1894, %v2115
        %2117 = vmatmul.mubr.f32.gmra.mxu0 %v2116
        %v2118 = vpop.f32.mrf.mxu0
        %v2119 = vadd.f32 %v2045, %v2118
        %v2120 = vpop.f32.mrf.mxu0
        %2121 = vdwg.mxu0
        %2122 = vmatprep.subr.mxu0 0.0
        %2123 = vmatpush1.msra.mxu0 0.0
        %2124 = vmatprep.subr.mxu0 0.0
        %2125 = vmatpush1.msra.mxu0 0.0
        %2126 = vmatprep.subr.mxu0 0.0
        %2127 = vmatpush1.msra.mxu0 0.0
        %2128 = vmatprep.subr.mxu0 0.0
        %2129 = vmatpush1.msra.mxu0 0.0
        %2130 = vmatprep.subr.mxu0 0.0
        %2131 = vmatpush1.msra.mxu0 0.0
        %2132 = vmatprep.subr.mxu0 0.0
        %2133 = vmatpush1.msra.mxu0 0.0
        %2134 = vmatprep.subr.mxu0 0.0
        %2135 = vmatpush1.msra.mxu0 0.0
        %2136 = vmatprep.subr.mxu0 0.0
        %2137 = vmatpush1.msra.mxu0 0.0
        %2138 = vmatprep.subr.mxu0 0.0
        %2139 = vmatpush1.msra.mxu0 0.0
        %2140 = vmatprep.subr.mxu0 0.0
        %2141 = vmatpush1.msra.mxu0 0.0
        %2142 = vmatprep.subr.mxu0 0.0
        %2143 = vmatpush1.msra.mxu0 0.0
        %2144 = vmatprep.subr.mxu0 0.0
        %2145 = vmatpush1.msra.mxu0 0.0
        %2146 = vmatprep.subr.mxu0 0.0
        %2147 = vmatpush1.msra.mxu0 0.0
        %2148 = vmatprep.subr.mxu0 0.0
        %2149 = vmatpush1.msra.mxu0 0.0
        %2150 = vmatprep.subr.mxu0 0.0
        %2151 = vmatpush1.msra.mxu0 0.0
        %2152 = vmatprep.subr.mxu0 0.0
        %v2153 = vand.u32 %v791, 4294901760
        %2154 = vmatpush1.msra.mxu0 %v2153
        %2155 = vmatprep.subr.mxu0 0.0
        %2156 = vmatpush2.msra.mxu0 0.0
        %2157 = vmatprep.subr.mxu0 0.0
        %2158 = vmatpush2.msra.mxu0 0.0
        %2159 = vmatprep.subr.mxu0 0.0
        %2160 = vmatpush2.msra.mxu0 0.0
        %2161 = vmatprep.subr.mxu0 0.0
        %2162 = vmatpush2.msra.mxu0 0.0
        %2163 = vmatprep.subr.mxu0 0.0
        %2164 = vmatpush2.msra.mxu0 0.0
        %2165 = vmatprep.subr.mxu0 0.0
        %2166 = vmatpush2.msra.mxu0 0.0
        %2167 = vmatprep.subr.mxu0 0.0
        %2168 = vmatpush2.msra.mxu0 0.0
        %2169 = vmatprep.subr.mxu0 0.0
        %2170 = vmatpush2.msra.mxu0 0.0
        %2171 = vmatprep.subr.mxu0 0.0
        %2172 = vmatpush2.msra.mxu0 0.0
        %2173 = vmatprep.subr.mxu0 0.0
        %2174 = vmatpush2.msra.mxu0 0.0
        %2175 = vmatprep.subr.mxu0 0.0
        %2176 = vmatpush2.msra.mxu0 0.0
        %2177 = vmatprep.subr.mxu0 0.0
        %2178 = vmatpush2.msra.mxu0 0.0
        %2179 = vmatprep.subr.mxu0 0.0
        %2180 = vmatpush2.msra.mxu0 0.0
        %2181 = vmatprep.subr.mxu0 0.0
        %2182 = vmatpush2.msra.mxu0 0.0
        %2183 = vmatprep.subr.mxu0 0.0
        %2184 = vmatpush2.msra.mxu0 0.0
        %2185 = vmatprep.subr.mxu0 0.0
        %2186 = vmatpush2.msra.mxu0 0.0
        %2187 = vmatprep.mubr.f32.mxu0 0.0
        %v2188 = vand.u32 %v1894, 4294901760
        %v2189 = vsub.f32 %v1894, %v2188
        %v2190 = vand.u32 %v2189, 4294901760
        %2191 = vmatmul.mubr.f32.gmra.mxu0 %v2190
        %v2192 = vpop.f32.mrf.mxu0
        %v2193 = vadd.f32 %v2119, %v2192
        %v2194 = vpop.f32.mrf.mxu0
        %2195 = vdwg.mxu0
        %2196 = vmatprep.subr.mxu0 0.0
        %2197 = vmatpush1.msra.mxu0 0.0
        %2198 = vmatprep.subr.mxu0 0.0
        %2199 = vmatpush1.msra.mxu0 0.0
        %2200 = vmatprep.subr.mxu0 0.0
        %2201 = vmatpush1.msra.mxu0 0.0
        %2202 = vmatprep.subr.mxu0 0.0
        %2203 = vmatpush1.msra.mxu0 0.0
        %2204 = vmatprep.subr.mxu0 0.0
        %2205 = vmatpush1.msra.mxu0 0.0
        %2206 = vmatprep.subr.mxu0 0.0
        %2207 = vmatpush1.msra.mxu0 0.0
        %2208 = vmatprep.subr.mxu0 0.0
        %2209 = vmatpush1.msra.mxu0 0.0
        %2210 = vmatprep.subr.mxu0 0.0
        %2211 = vmatpush1.msra.mxu0 0.0
        %2212 = vmatprep.subr.mxu0 0.0
        %2213 = vmatpush1.msra.mxu0 0.0
        %2214 = vmatprep.subr.mxu0 0.0
        %2215 = vmatpush1.msra.mxu0 0.0
        %2216 = vmatprep.subr.mxu0 0.0
        %2217 = vmatpush1.msra.mxu0 0.0
        %2218 = vmatprep.subr.mxu0 0.0
        %2219 = vmatpush1.msra.mxu0 0.0
        %2220 = vmatprep.subr.mxu0 0.0
        %2221 = vmatpush1.msra.mxu0 0.0
        %2222 = vmatprep.subr.mxu0 0.0
        %2223 = vmatpush1.msra.mxu0 0.0
        %2224 = vmatprep.subr.mxu0 0.0
        %2225 = vmatpush1.msra.mxu0 0.0
        %2226 = vmatprep.subr.mxu0 0.0
        %v2227 = vand.u32 %v791, 4294901760
        %v2228 = vsub.f32 %v791, %v2227
        %v2229 = vand.u32 %v2228, 4294901760
        %2230 = vmatpush1.msra.mxu0 %v2229
        %2231 = vmatprep.subr.mxu0 0.0
        %2232 = vmatpush2.msra.mxu0 0.0
        %2233 = vmatprep.subr.mxu0 0.0
        %2234 = vmatpush2.msra.mxu0 0.0
        %2235 = vmatprep.subr.mxu0 0.0
        %2236 = vmatpush2.msra.mxu0 0.0
        %2237 = vmatprep.subr.mxu0 0.0
        %2238 = vmatpush2.msra.mxu0 0.0
        %2239 = vmatprep.subr.mxu0 0.0
        %2240 = vmatpush2.msra.mxu0 0.0
        %2241 = vmatprep.subr.mxu0 0.0
        %2242 = vmatpush2.msra.mxu0 0.0
        %2243 = vmatprep.subr.mxu0 0.0
        %2244 = vmatpush2.msra.mxu0 0.0
        %2245 = vmatprep.subr.mxu0 0.0
        %2246 = vmatpush2.msra.mxu0 0.0
        %2247 = vmatprep.subr.mxu0 0.0
        %2248 = vmatpush2.msra.mxu0 0.0
        %2249 = vmatprep.subr.mxu0 0.0
        %2250 = vmatpush2.msra.mxu0 0.0
        %2251 = vmatprep.subr.mxu0 0.0
        %2252 = vmatpush2.msra.mxu0 0.0
        %2253 = vmatprep.subr.mxu0 0.0
        %2254 = vmatpush2.msra.mxu0 0.0
        %2255 = vmatprep.subr.mxu0 0.0
        %2256 = vmatpush2.msra.mxu0 0.0
        %2257 = vmatprep.subr.mxu0 0.0
        %2258 = vmatpush2.msra.mxu0 0.0
        %2259 = vmatprep.subr.mxu0 0.0
        %2260 = vmatpush2.msra.mxu0 0.0
        %2261 = vmatprep.subr.mxu0 0.0
        %2262 = vmatpush2.msra.mxu0 0.0
        %2263 = vmatprep.mubr.f32.mxu0 0.0
        %v2264 = vand.u32 %v1894, 4294901760
        %2265 = vmatmul.mubr.f32.gmra.mxu0 %v2264
        %v2266 = vpop.f32.mrf.mxu0
        %v2267 = vadd.f32 %v2193, %v2266
        %v2268 = vpop.f32.mrf.mxu0
        %2269 = vdwg.mxu0
        %2270 = vmatprep.subr.mxu0 0.0
        %2271 = vmatpush1.msra.mxu0 0.0
        %2272 = vmatprep.subr.mxu0 0.0
        %2273 = vmatpush1.msra.mxu0 0.0
        %2274 = vmatprep.subr.mxu0 0.0
        %2275 = vmatpush1.msra.mxu0 0.0
        %2276 = vmatprep.subr.mxu0 0.0
        %2277 = vmatpush1.msra.mxu0 0.0
        %2278 = vmatprep.subr.mxu0 0.0
        %2279 = vmatpush1.msra.mxu0 0.0
        %2280 = vmatprep.subr.mxu0 0.0
        %2281 = vmatpush1.msra.mxu0 0.0
        %2282 = vmatprep.subr.mxu0 0.0
        %2283 = vmatpush1.msra.mxu0 0.0
        %2284 = vmatprep.subr.mxu0 0.0
        %2285 = vmatpush1.msra.mxu0 0.0
        %2286 = vmatprep.subr.mxu0 0.0
        %2287 = vmatpush1.msra.mxu0 0.0
        %2288 = vmatprep.subr.mxu0 0.0
        %2289 = vmatpush1.msra.mxu0 0.0
        %2290 = vmatprep.subr.mxu0 0.0
        %2291 = vmatpush1.msra.mxu0 0.0
        %2292 = vmatprep.subr.mxu0 0.0
        %2293 = vmatpush1.msra.mxu0 0.0
        %2294 = vmatprep.subr.mxu0 0.0
        %2295 = vmatpush1.msra.mxu0 0.0
        %2296 = vmatprep.subr.mxu0 0.0
        %2297 = vmatpush1.msra.mxu0 0.0
        %2298 = vmatprep.subr.mxu0 0.0
        %2299 = vmatpush1.msra.mxu0 0.0
        %2300 = vmatprep.subr.mxu0 0.0
        %v2301 = vand.u32 %v791, 4294901760
        %2302 = vmatpush1.msra.mxu0 %v2301
        %2303 = vmatprep.subr.mxu0 0.0
        %2304 = vmatpush2.msra.mxu0 0.0
        %2305 = vmatprep.subr.mxu0 0.0
        %2306 = vmatpush2.msra.mxu0 0.0
        %2307 = vmatprep.subr.mxu0 0.0
        %2308 = vmatpush2.msra.mxu0 0.0
        %2309 = vmatprep.subr.mxu0 0.0
        %2310 = vmatpush2.msra.mxu0 0.0
        %2311 = vmatprep.subr.mxu0 0.0
        %2312 = vmatpush2.msra.mxu0 0.0
        %2313 = vmatprep.subr.mxu0 0.0
        %2314 = vmatpush2.msra.mxu0 0.0
        %2315 = vmatprep.subr.mxu0 0.0
        %2316 = vmatpush2.msra.mxu0 0.0
        %2317 = vmatprep.subr.mxu0 0.0
        %2318 = vmatpush2.msra.mxu0 0.0
        %2319 = vmatprep.subr.mxu0 0.0
        %2320 = vmatpush2.msra.mxu0 0.0
        %2321 = vmatprep.subr.mxu0 0.0
        %2322 = vmatpush2.msra.mxu0 0.0
        %2323 = vmatprep.subr.mxu0 0.0
        %2324 = vmatpush2.msra.mxu0 0.0
        %2325 = vmatprep.subr.mxu0 0.0
        %2326 = vmatpush2.msra.mxu0 0.0
        %2327 = vmatprep.subr.mxu0 0.0
        %2328 = vmatpush2.msra.mxu0 0.0
        %2329 = vmatprep.subr.mxu0 0.0
        %2330 = vmatpush2.msra.mxu0 0.0
        %2331 = vmatprep.subr.mxu0 0.0
        %2332 = vmatpush2.msra.mxu0 0.0
        %2333 = vmatprep.subr.mxu0 0.0
        %2334 = vmatpush2.msra.mxu0 0.0
        %2335 = vmatprep.mubr.f32.mxu0 0.0
        %v2336 = vand.u32 %v1894, 4294901760
        %2337 = vmatmul.mubr.f32.gmra.mxu0 %v2336
        %v2338 = vpop.f32.mrf.mxu0
        %v2339 = vadd.f32 %v2267, %v2338
        %v2340 = vpop.f32.mrf.mxu0
        %2341 = vdwg.mxu0
        %v2342 = vmax.f32 %v2339, 0.0
        %s2343 = scalar_lea.vmem %s4, 32
        %v2344 = vld [vmem:[%s2343] sm:$0xff]
        %v2345 = vld [vmem:[%s2343 + $0x8] sm:$0xff]
        %v2346 = vld [vmem:[%s2343 + $0x10] sm:$0xff]
        %v2347 = vld [vmem:[%s2343 + $0x18] sm:$0xff]
        %v2349 = vsel %vm798, %v2342, 0
        %2351 = vmatprep.subr.mxu0 0.0
        %2352 = vmatpush1.msra.mxu0 0.0
        %2353 = vmatprep.subr.mxu0 0.0
        %2354 = vmatpush1.msra.mxu0 0.0
        %2355 = vmatprep.subr.mxu0 0.0
        %2356 = vmatpush1.msra.mxu0 0.0
        %2357 = vmatprep.subr.mxu0 0.0
        %2358 = vmatpush1.msra.mxu0 0.0
        %2359 = vmatprep.subr.mxu0 0.0
        %2360 = vmatpush1.msra.mxu0 0.0
        %2361 = vmatprep.subr.mxu0 0.0
        %2362 = vmatpush1.msra.mxu0 0.0
        %2363 = vmatprep.subr.mxu0 0.0
        %2364 = vmatpush1.msra.mxu0 0.0
        %2365 = vmatprep.subr.mxu0 0.0
        %2366 = vmatpush1.msra.mxu0 0.0
        %2367 = vmatprep.subr.mxu0 0.0
        %2368 = vmatpush1.msra.mxu0 0.0
        %2369 = vmatprep.subr.mxu0 0.0
        %2370 = vmatpush1.msra.mxu0 0.0
        %2371 = vmatprep.subr.mxu0 0.0
        %2372 = vmatpush1.msra.mxu0 0.0
        %2373 = vmatprep.subr.mxu0 0.0
        %2374 = vmatpush1.msra.mxu0 0.0
        %2375 = vmatprep.subr.mxu0 0.0
        %v2376 = vand.u32 %v2347, 4294901760
        %2377 = vmatpush1.msra.mxu0 %v2376
        %2378 = vmatprep.subr.mxu0 0.0
        %v2379 = vand.u32 %v2346, 4294901760
        %2380 = vmatpush1.msra.mxu0 %v2379
        %2381 = vmatprep.subr.mxu0 0.0
        %v2382 = vand.u32 %v2345, 4294901760
        %2383 = vmatpush1.msra.mxu0 %v2382
        %2384 = vmatprep.subr.mxu0 0.0
        %v2385 = vand.u32 %v2344, 4294901760
        %2386 = vmatpush1.msra.mxu0 %v2385
        %2387 = vmatprep.subr.mxu0 0.0
        %2388 = vmatpush2.msra.mxu0 0.0
        %2389 = vmatprep.subr.mxu0 0.0
        %2390 = vmatpush2.msra.mxu0 0.0
        %2391 = vmatprep.subr.mxu0 0.0
        %2392 = vmatpush2.msra.mxu0 0.0
        %2393 = vmatprep.subr.mxu0 0.0
        %2394 = vmatpush2.msra.mxu0 0.0
        %2395 = vmatprep.subr.mxu0 0.0
        %2396 = vmatpush2.msra.mxu0 0.0
        %2397 = vmatprep.subr.mxu0 0.0
        %2398 = vmatpush2.msra.mxu0 0.0
        %2399 = vmatprep.subr.mxu0 0.0
        %2400 = vmatpush2.msra.mxu0 0.0
        %2401 = vmatprep.subr.mxu0 0.0
        %2402 = vmatpush2.msra.mxu0 0.0
        %2403 = vmatprep.subr.mxu0 0.0
        %2404 = vmatpush2.msra.mxu0 0.0
        %2405 = vmatprep.subr.mxu0 0.0
        %2406 = vmatpush2.msra.mxu0 0.0
        %2407 = vmatprep.subr.mxu0 0.0
        %2408 = vmatpush2.msra.mxu0 0.0
        %2409 = vmatprep.subr.mxu0 0.0
        %2410 = vmatpush2.msra.mxu0 0.0
        %2411 = vmatprep.subr.mxu0 0.0
        %2412 = vmatpush2.msra.mxu0 0.0
        %2413 = vmatprep.subr.mxu0 0.0
        %2414 = vmatpush2.msra.mxu0 0.0
        %2415 = vmatprep.subr.mxu0 0.0
        %2416 = vmatpush2.msra.mxu0 0.0
        %2417 = vmatprep.subr.mxu0 0.0
        %2418 = vmatpush2.msra.mxu0 0.0
        %2419 = vmatprep.mubr.f32.mxu0 0.0
        %v2420 = vand.u32 %v2349, 4294901760
        %v2421 = vsub.f32 %v2349, %v2420
        %v2422 = vand.u32 %v2421, 4294901760
        %v2423 = vsub.f32 %v2421, %v2422
        %v2424 = vand.u32 %v2423, 4294901760
        %2425 = vmatmul.mubr.f32.gmra.mxu0 %v2424
        %v2426 = vpop.f32.mrf.mxu0
        %v2427 = vadd.f32 0.0, %v2426
        %v2428 = vpop.f32.mrf.mxu0
        %2429 = vdwg.mxu0
        %2430 = vmatprep.subr.mxu0 0.0
        %2431 = vmatpush1.msra.mxu0 0.0
        %2432 = vmatprep.subr.mxu0 0.0
        %2433 = vmatpush1.msra.mxu0 0.0
        %2434 = vmatprep.subr.mxu0 0.0
        %2435 = vmatpush1.msra.mxu0 0.0
        %2436 = vmatprep.subr.mxu0 0.0
        %2437 = vmatpush1.msra.mxu0 0.0
        %2438 = vmatprep.subr.mxu0 0.0
        %2439 = vmatpush1.msra.mxu0 0.0
        %2440 = vmatprep.subr.mxu0 0.0
        %2441 = vmatpush1.msra.mxu0 0.0
        %2442 = vmatprep.subr.mxu0 0.0
        %2443 = vmatpush1.msra.mxu0 0.0
        %2444 = vmatprep.subr.mxu0 0.0
        %2445 = vmatpush1.msra.mxu0 0.0
        %2446 = vmatprep.subr.mxu0 0.0
        %2447 = vmatpush1.msra.mxu0 0.0
        %2448 = vmatprep.subr.mxu0 0.0
        %2449 = vmatpush1.msra.mxu0 0.0
        %2450 = vmatprep.subr.mxu0 0.0
        %2451 = vmatpush1.msra.mxu0 0.0
        %2452 = vmatprep.subr.mxu0 0.0
        %2453 = vmatpush1.msra.mxu0 0.0
        %2454 = vmatprep.subr.mxu0 0.0
        %v2455 = vand.u32 %v2347, 4294901760
        %v2456 = vsub.f32 %v2347, %v2455
        %v2457 = vand.u32 %v2456, 4294901760
        %v2458 = vsub.f32 %v2456, %v2457
        %v2459 = vand.u32 %v2458, 4294901760
        %2460 = vmatpush1.msra.mxu0 %v2459
        %2461 = vmatprep.subr.mxu0 0.0
        %v2462 = vand.u32 %v2346, 4294901760
        %v2463 = vsub.f32 %v2346, %v2462
        %v2464 = vand.u32 %v2463, 4294901760
        %v2465 = vsub.f32 %v2463, %v2464
        %v2466 = vand.u32 %v2465, 4294901760
        %2467 = vmatpush1.msra.mxu0 %v2466
        %2468 = vmatprep.subr.mxu0 0.0
        %v2469 = vand.u32 %v2345, 4294901760
        %v2470 = vsub.f32 %v2345, %v2469
        %v2471 = vand.u32 %v2470, 4294901760
        %v2472 = vsub.f32 %v2470, %v2471
        %v2473 = vand.u32 %v2472, 4294901760
        %2474 = vmatpush1.msra.mxu0 %v2473
        %2475 = vmatprep.subr.mxu0 0.0
        %v2476 = vand.u32 %v2344, 4294901760
        %v2477 = vsub.f32 %v2344, %v2476
        %v2478 = vand.u32 %v2477, 4294901760
        %v2479 = vsub.f32 %v2477, %v2478
        %v2480 = vand.u32 %v2479, 4294901760
        %2481 = vmatpush1.msra.mxu0 %v2480
        %2482 = vmatprep.subr.mxu0 0.0
        %2483 = vmatpush2.msra.mxu0 0.0
        %2484 = vmatprep.subr.mxu0 0.0
        %2485 = vmatpush2.msra.mxu0 0.0
        %2486 = vmatprep.subr.mxu0 0.0
        %2487 = vmatpush2.msra.mxu0 0.0
        %2488 = vmatprep.subr.mxu0 0.0
        %2489 = vmatpush2.msra.mxu0 0.0
        %2490 = vmatprep.subr.mxu0 0.0
        %2491 = vmatpush2.msra.mxu0 0.0
        %2492 = vmatprep.subr.mxu0 0.0
        %2493 = vmatpush2.msra.mxu0 0.0
        %2494 = vmatprep.subr.mxu0 0.0
        %2495 = vmatpush2.msra.mxu0 0.0
        %2496 = vmatprep.subr.mxu0 0.0
        %2497 = vmatpush2.msra.mxu0 0.0
        %2498 = vmatprep.subr.mxu0 0.0
        %2499 = vmatpush2.msra.mxu0 0.0
        %2500 = vmatprep.subr.mxu0 0.0
        %2501 = vmatpush2.msra.mxu0 0.0
        %2502 = vmatprep.subr.mxu0 0.0
        %2503 = vmatpush2.msra.mxu0 0.0
        %2504 = vmatprep.subr.mxu0 0.0
        %2505 = vmatpush2.msra.mxu0 0.0
        %2506 = vmatprep.subr.mxu0 0.0
        %2507 = vmatpush2.msra.mxu0 0.0
        %2508 = vmatprep.subr.mxu0 0.0
        %2509 = vmatpush2.msra.mxu0 0.0
        %2510 = vmatprep.subr.mxu0 0.0
        %2511 = vmatpush2.msra.mxu0 0.0
        %2512 = vmatprep.subr.mxu0 0.0
        %2513 = vmatpush2.msra.mxu0 0.0
        %2514 = vmatprep.mubr.f32.mxu0 0.0
        %v2515 = vand.u32 %v2349, 4294901760
        %2516 = vmatmul.mubr.f32.gmra.mxu0 %v2515
        %v2517 = vpop.f32.mrf.mxu0
        %v2518 = vadd.f32 %v2427, %v2517
        %v2519 = vpop.f32.mrf.mxu0
        %2520 = vdwg.mxu0
        %2521 = vmatprep.subr.mxu0 0.0
        %2522 = vmatpush1.msra.mxu0 0.0
        %2523 = vmatprep.subr.mxu0 0.0
        %2524 = vmatpush1.msra.mxu0 0.0
        %2525 = vmatprep.subr.mxu0 0.0
        %2526 = vmatpush1.msra.mxu0 0.0
        %2527 = vmatprep.subr.mxu0 0.0
        %2528 = vmatpush1.msra.mxu0 0.0
        %2529 = vmatprep.subr.mxu0 0.0
        %2530 = vmatpush1.msra.mxu0 0.0
        %2531 = vmatprep.subr.mxu0 0.0
        %2532 = vmatpush1.msra.mxu0 0.0
        %2533 = vmatprep.subr.mxu0 0.0
        %2534 = vmatpush1.msra.mxu0 0.0
        %2535 = vmatprep.subr.mxu0 0.0
        %2536 = vmatpush1.msra.mxu0 0.0
        %2537 = vmatprep.subr.mxu0 0.0
        %2538 = vmatpush1.msra.mxu0 0.0
        %2539 = vmatprep.subr.mxu0 0.0
        %2540 = vmatpush1.msra.mxu0 0.0
        %2541 = vmatprep.subr.mxu0 0.0
        %2542 = vmatpush1.msra.mxu0 0.0
        %2543 = vmatprep.subr.mxu0 0.0
        %2544 = vmatpush1.msra.mxu0 0.0
        %2545 = vmatprep.subr.mxu0 0.0
        %v2546 = vand.u32 %v2347, 4294901760
        %v2547 = vsub.f32 %v2347, %v2546
        %2548 = vmatpush1.msra.mxu0 %v2547
        %2549 = vmatprep.subr.mxu0 0.0
        %v2550 = vand.u32 %v2346, 4294901760
        %v2551 = vsub.f32 %v2346, %v2550
        %2552 = vmatpush1.msra.mxu0 %v2551
        %2553 = vmatprep.subr.mxu0 0.0
        %v2554 = vand.u32 %v2345, 4294901760
        %v2555 = vsub.f32 %v2345, %v2554
        %2556 = vmatpush1.msra.mxu0 %v2555
        %2557 = vmatprep.subr.mxu0 0.0
        %v2558 = vand.u32 %v2344, 4294901760
        %v2559 = vsub.f32 %v2344, %v2558
        %2560 = vmatpush1.msra.mxu0 %v2559
        %2561 = vmatprep.subr.mxu0 0.0
        %2562 = vmatpush2.msra.mxu0 0.0
        %2563 = vmatprep.subr.mxu0 0.0
        %2564 = vmatpush2.msra.mxu0 0.0
        %2565 = vmatprep.subr.mxu0 0.0
        %2566 = vmatpush2.msra.mxu0 0.0
        %2567 = vmatprep.subr.mxu0 0.0
        %2568 = vmatpush2.msra.mxu0 0.0
        %2569 = vmatprep.subr.mxu0 0.0
        %2570 = vmatpush2.msra.mxu0 0.0
        %2571 = vmatprep.subr.mxu0 0.0
        %2572 = vmatpush2.msra.mxu0 0.0
        %2573 = vmatprep.subr.mxu0 0.0
        %2574 = vmatpush2.msra.mxu0 0.0
        %2575 = vmatprep.subr.mxu0 0.0
        %2576 = vmatpush2.msra.mxu0 0.0
        %2577 = vmatprep.subr.mxu0 0.0
        %2578 = vmatpush2.msra.mxu0 0.0
        %2579 = vmatprep.subr.mxu0 0.0
        %2580 = vmatpush2.msra.mxu0 0.0
        %2581 = vmatprep.subr.mxu0 0.0
        %2582 = vmatpush2.msra.mxu0 0.0
        %2583 = vmatprep.subr.mxu0 0.0
        %2584 = vmatpush2.msra.mxu0 0.0
        %2585 = vmatprep.subr.mxu0 0.0
        %2586 = vmatpush2.msra.mxu0 0.0
        %2587 = vmatprep.subr.mxu0 0.0
        %2588 = vmatpush2.msra.mxu0 0.0
        %2589 = vmatprep.subr.mxu0 0.0
        %2590 = vmatpush2.msra.mxu0 0.0
        %2591 = vmatprep.subr.mxu0 0.0
        %2592 = vmatpush2.msra.mxu0 0.0
        %2593 = vmatprep.mubr.f32.mxu0 0.0
        %v2594 = vand.u32 %v2349, 4294901760
        %v2595 = vsub.f32 %v2349, %v2594
        %2596 = vmatmul.mubr.f32.gmra.mxu0 %v2595
        %v2597 = vpop.f32.mrf.mxu0
        %v2598 = vadd.f32 %v2518, %v2597
        %v2599 = vpop.f32.mrf.mxu0
        %2600 = vdwg.mxu0
        %2601 = vmatprep.subr.mxu0 0.0
        %2602 = vmatpush1.msra.mxu0 0.0
        %2603 = vmatprep.subr.mxu0 0.0
        %2604 = vmatpush1.msra.mxu0 0.0
        %2605 = vmatprep.subr.mxu0 0.0
        %2606 = vmatpush1.msra.mxu0 0.0
        %2607 = vmatprep.subr.mxu0 0.0
        %2608 = vmatpush1.msra.mxu0 0.0
        %2609 = vmatprep.subr.mxu0 0.0
        %2610 = vmatpush1.msra.mxu0 0.0
        %2611 = vmatprep.subr.mxu0 0.0
        %2612 = vmatpush1.msra.mxu0 0.0
        %2613 = vmatprep.subr.mxu0 0.0
        %2614 = vmatpush1.msra.mxu0 0.0
        %2615 = vmatprep.subr.mxu0 0.0
        %2616 = vmatpush1.msra.mxu0 0.0
        %2617 = vmatprep.subr.mxu0 0.0
        %2618 = vmatpush1.msra.mxu0 0.0
        %2619 = vmatprep.subr.mxu0 0.0
        %2620 = vmatpush1.msra.mxu0 0.0
        %2621 = vmatprep.subr.mxu0 0.0
        %2622 = vmatpush1.msra.mxu0 0.0
        %2623 = vmatprep.subr.mxu0 0.0
        %2624 = vmatpush1.msra.mxu0 0.0
        %2625 = vmatprep.subr.mxu0 0.0
        %v2626 = vand.u32 %v2347, 4294901760
        %2627 = vmatpush1.msra.mxu0 %v2626
        %2628 = vmatprep.subr.mxu0 0.0
        %v2629 = vand.u32 %v2346, 4294901760
        %2630 = vmatpush1.msra.mxu0 %v2629
        %2631 = vmatprep.subr.mxu0 0.0
        %v2632 = vand.u32 %v2345, 4294901760
        %2633 = vmatpush1.msra.mxu0 %v2632
        %2634 = vmatprep.subr.mxu0 0.0
        %v2635 = vand.u32 %v2344, 4294901760
        %2636 = vmatpush1.msra.mxu0 %v2635
        %2637 = vmatprep.subr.mxu0 0.0
        %2638 = vmatpush2.msra.mxu0 0.0
        %2639 = vmatprep.subr.mxu0 0.0
        %2640 = vmatpush2.msra.mxu0 0.0
        %2641 = vmatprep.subr.mxu0 0.0
        %2642 = vmatpush2.msra.mxu0 0.0
        %2643 = vmatprep.subr.mxu0 0.0
        %2644 = vmatpush2.msra.mxu0 0.0
        %2645 = vmatprep.subr.mxu0 0.0
        %2646 = vmatpush2.msra.mxu0 0.0
        %2647 = vmatprep.subr.mxu0 0.0
        %2648 = vmatpush2.msra.mxu0 0.0
        %2649 = vmatprep.subr.mxu0 0.0
        %2650 = vmatpush2.msra.mxu0 0.0
        %2651 = vmatprep.subr.mxu0 0.0
        %2652 = vmatpush2.msra.mxu0 0.0
        %2653 = vmatprep.subr.mxu0 0.0
        %2654 = vmatpush2.msra.mxu0 0.0
        %2655 = vmatprep.subr.mxu0 0.0
        %2656 = vmatpush2.msra.mxu0 0.0
        %2657 = vmatprep.subr.mxu0 0.0
        %2658 = vmatpush2.msra.mxu0 0.0
        %2659 = vmatprep.subr.mxu0 0.0
        %2660 = vmatpush2.msra.mxu0 0.0
        %2661 = vmatprep.subr.mxu0 0.0
        %2662 = vmatpush2.msra.mxu0 0.0
        %2663 = vmatprep.subr.mxu0 0.0
        %2664 = vmatpush2.msra.mxu0 0.0
        %2665 = vmatprep.subr.mxu0 0.0
        %2666 = vmatpush2.msra.mxu0 0.0
        %2667 = vmatprep.subr.mxu0 0.0
        %2668 = vmatpush2.msra.mxu0 0.0
        %2669 = vmatprep.mubr.f32.mxu0 0.0
        %v2670 = vand.u32 %v2349, 4294901760
        %v2671 = vsub.f32 %v2349, %v2670
        %v2672 = vand.u32 %v2671, 4294901760
        %2673 = vmatmul.mubr.f32.gmra.mxu0 %v2672
        %v2674 = vpop.f32.mrf.mxu0
        %v2675 = vadd.f32 %v2598, %v2674
        %v2676 = vpop.f32.mrf.mxu0
        %2677 = vdwg.mxu0
        %2678 = vmatprep.subr.mxu0 0.0
        %2679 = vmatpush1.msra.mxu0 0.0
        %2680 = vmatprep.subr.mxu0 0.0
        %2681 = vmatpush1.msra.mxu0 0.0
        %2682 = vmatprep.subr.mxu0 0.0
        %2683 = vmatpush1.msra.mxu0 0.0
        %2684 = vmatprep.subr.mxu0 0.0
        %2685 = vmatpush1.msra.mxu0 0.0
        %2686 = vmatprep.subr.mxu0 0.0
        %2687 = vmatpush1.msra.mxu0 0.0
        %2688 = vmatprep.subr.mxu0 0.0
        %2689 = vmatpush1.msra.mxu0 0.0
        %2690 = vmatprep.subr.mxu0 0.0
        %2691 = vmatpush1.msra.mxu0 0.0
        %2692 = vmatprep.subr.mxu0 0.0
        %2693 = vmatpush1.msra.mxu0 0.0
        %2694 = vmatprep.subr.mxu0 0.0
        %2695 = vmatpush1.msra.mxu0 0.0
        %2696 = vmatprep.subr.mxu0 0.0
        %2697 = vmatpush1.msra.mxu0 0.0
        %2698 = vmatprep.subr.mxu0 0.0
        %2699 = vmatpush1.msra.mxu0 0.0
        %2700 = vmatprep.subr.mxu0 0.0
        %2701 = vmatpush1.msra.mxu0 0.0
        %2702 = vmatprep.subr.mxu0 0.0
        %v2703 = vand.u32 %v2347, 4294901760
        %v2704 = vsub.f32 %v2347, %v2703
        %v2705 = vand.u32 %v2704, 4294901760
        %2706 = vmatpush1.msra.mxu0 %v2705
        %2707 = vmatprep.subr.mxu0 0.0
        %v2708 = vand.u32 %v2346, 4294901760
        %v2709 = vsub.f32 %v2346, %v2708
        %v2710 = vand.u32 %v2709, 4294901760
        %2711 = vmatpush1.msra.mxu0 %v2710
        %2712 = vmatprep.subr.mxu0 0.0
        %v2713 = vand.u32 %v2345, 4294901760
        %v2714 = vsub.f32 %v2345, %v2713
        %v2715 = vand.u32 %v2714, 4294901760
        %2716 = vmatpush1.msra.mxu0 %v2715
        %2717 = vmatprep.subr.mxu0 0.0
        %v2718 = vand.u32 %v2344, 4294901760
        %v2719 = vsub.f32 %v2344, %v2718
        %v2720 = vand.u32 %v2719, 4294901760
        %2721 = vmatpush1.msra.mxu0 %v2720
        %2722 = vmatprep.subr.mxu0 0.0
        %2723 = vmatpush2.msra.mxu0 0.0
        %2724 = vmatprep.subr.mxu0 0.0
        %2725 = vmatpush2.msra.mxu0 0.0
        %2726 = vmatprep.subr.mxu0 0.0
        %2727 = vmatpush2.msra.mxu0 0.0
        %2728 = vmatprep.subr.mxu0 0.0
        %2729 = vmatpush2.msra.mxu0 0.0
        %2730 = vmatprep.subr.mxu0 0.0
        %2731 = vmatpush2.msra.mxu0 0.0
        %2732 = vmatprep.subr.mxu0 0.0
        %2733 = vmatpush2.msra.mxu0 0.0
        %2734 = vmatprep.subr.mxu0 0.0
        %2735 = vmatpush2.msra.mxu0 0.0
        %2736 = vmatprep.subr.mxu0 0.0
        %2737 = vmatpush2.msra.mxu0 0.0
        %2738 = vmatprep.subr.mxu0 0.0
        %2739 = vmatpush2.msra.mxu0 0.0
        %2740 = vmatprep.subr.mxu0 0.0
        %2741 = vmatpush2.msra.mxu0 0.0
        %2742 = vmatprep.subr.mxu0 0.0
        %2743 = vmatpush2.msra.mxu0 0.0
        %2744 = vmatprep.subr.mxu0 0.0
        %2745 = vmatpush2.msra.mxu0 0.0
        %2746 = vmatprep.subr.mxu0 0.0
        %2747 = vmatpush2.msra.mxu0 0.0
        %2748 = vmatprep.subr.mxu0 0.0
        %2749 = vmatpush2.msra.mxu0 0.0
        %2750 = vmatprep.subr.mxu0 0.0
        %2751 = vmatpush2.msra.mxu0 0.0
        %2752 = vmatprep.subr.mxu0 0.0
        %2753 = vmatpush2.msra.mxu0 0.0
        %2754 = vmatprep.mubr.f32.mxu0 0.0
        %v2755 = vand.u32 %v2349, 4294901760
        %2756 = vmatmul.mubr.f32.gmra.mxu0 %v2755
        %v2757 = vpop.f32.mrf.mxu0
        %v2758 = vadd.f32 %v2675, %v2757
        %v2759 = vpop.f32.mrf.mxu0
        %2760 = vdwg.mxu0
        %2761 = vmatprep.subr.mxu0 0.0
        %2762 = vmatpush1.msra.mxu0 0.0
        %2763 = vmatprep.subr.mxu0 0.0
        %2764 = vmatpush1.msra.mxu0 0.0
        %2765 = vmatprep.subr.mxu0 0.0
        %2766 = vmatpush1.msra.mxu0 0.0
        %2767 = vmatprep.subr.mxu0 0.0
        %2768 = vmatpush1.msra.mxu0 0.0
        %2769 = vmatprep.subr.mxu0 0.0
        %2770 = vmatpush1.msra.mxu0 0.0
        %2771 = vmatprep.subr.mxu0 0.0
        %2772 = vmatpush1.msra.mxu0 0.0
        %2773 = vmatprep.subr.mxu0 0.0
        %2774 = vmatpush1.msra.mxu0 0.0
        %2775 = vmatprep.subr.mxu0 0.0
        %2776 = vmatpush1.msra.mxu0 0.0
        %2777 = vmatprep.subr.mxu0 0.0
        %2778 = vmatpush1.msra.mxu0 0.0
        %2779 = vmatprep.subr.mxu0 0.0
        %2780 = vmatpush1.msra.mxu0 0.0
        %2781 = vmatprep.subr.mxu0 0.0
        %2782 = vmatpush1.msra.mxu0 0.0
        %2783 = vmatprep.subr.mxu0 0.0
        %2784 = vmatpush1.msra.mxu0 0.0
        %2785 = vmatprep.subr.mxu0 0.0
        %v2786 = vand.u32 %v2347, 4294901760
        %2787 = vmatpush1.msra.mxu0 %v2786
        %2788 = vmatprep.subr.mxu0 0.0
        %v2789 = vand.u32 %v2346, 4294901760
        %2790 = vmatpush1.msra.mxu0 %v2789
        %2791 = vmatprep.subr.mxu0 0.0
        %v2792 = vand.u32 %v2345, 4294901760
        %2793 = vmatpush1.msra.mxu0 %v2792
        %2794 = vmatprep.subr.mxu0 0.0
        %v2795 = vand.u32 %v2344, 4294901760
        %2796 = vmatpush1.msra.mxu0 %v2795
        %2797 = vmatprep.subr.mxu0 0.0
        %2798 = vmatpush2.msra.mxu0 0.0
        %2799 = vmatprep.subr.mxu0 0.0
        %2800 = vmatpush2.msra.mxu0 0.0
        %2801 = vmatprep.subr.mxu0 0.0
        %2802 = vmatpush2.msra.mxu0 0.0
        %2803 = vmatprep.subr.mxu0 0.0
        %2804 = vmatpush2.msra.mxu0 0.0
        %2805 = vmatprep.subr.mxu0 0.0
        %2806 = vmatpush2.msra.mxu0 0.0
        %2807 = vmatprep.subr.mxu0 0.0
        %2808 = vmatpush2.msra.mxu0 0.0
        %2809 = vmatprep.subr.mxu0 0.0
        %2810 = vmatpush2.msra.mxu0 0.0
        %2811 = vmatprep.subr.mxu0 0.0
        %2812 = vmatpush2.msra.mxu0 0.0
        %2813 = vmatprep.subr.mxu0 0.0
        %2814 = vmatpush2.msra.mxu0 0.0
        %2815 = vmatprep.subr.mxu0 0.0
        %2816 = vmatpush2.msra.mxu0 0.0
        %2817 = vmatprep.subr.mxu0 0.0
        %2818 = vmatpush2.msra.mxu0 0.0
        %2819 = vmatprep.subr.mxu0 0.0
        %2820 = vmatpush2.msra.mxu0 0.0
        %2821 = vmatprep.subr.mxu0 0.0
        %2822 = vmatpush2.msra.mxu0 0.0
        %2823 = vmatprep.subr.mxu0 0.0
        %2824 = vmatpush2.msra.mxu0 0.0
        %2825 = vmatprep.subr.mxu0 0.0
        %2826 = vmatpush2.msra.mxu0 0.0
        %2827 = vmatprep.subr.mxu0 0.0
        %2828 = vmatpush2.msra.mxu0 0.0
        %2829 = vmatprep.mubr.f32.mxu0 0.0
        %v2830 = vand.u32 %v2349, 4294901760
        %2831 = vmatmul.mubr.f32.gmra.mxu0 %v2830
        %v2832 = vpop.f32.mrf.mxu0
        %v2833 = vadd.f32 %v2758, %v2832
        %v2834 = vpop.f32.mrf.mxu0
        %2835 = vdwg.mxu0
        %v2836 = vtanh.pop %v2833
        %s2837 = scalar_lea.vmem %s5, 64
        %v2838 = vld [vmem:[%s2837] sm:$0xff]
        %v2839 = vld [vmem:[%s2837 + $0x8] sm:$0xff]
        %v2840 = vld [vmem:[%s2837 + $0x10] sm:$0xff]
        %v2841 = vld [vmem:[%s2837 + $0x18] sm:$0xff]
        %v2842 = vld [vmem:[%s2837 + $0x20] sm:$0xff]
        %v2843 = vld [vmem:[%s2837 + $0x28] sm:$0xff]
        %v2844 = vld [vmem:[%s2837 + $0x30] sm:$0xff]
        %v2845 = vld [vmem:[%s2837 + $0x38] sm:$0xff]
        %v2847 = vsel %vm1296, %v2836, 0
        %2849 = vmatprep.subr.mxu0 0.0
        %2850 = vmatpush1.msra.mxu0 0.0
        %2851 = vmatprep.subr.mxu0 0.0
        %2852 = vmatpush1.msra.mxu0 0.0
        %2853 = vmatprep.subr.mxu0 0.0
        %2854 = vmatpush1.msra.mxu0 0.0
        %2855 = vmatprep.subr.mxu0 0.0
        %2856 = vmatpush1.msra.mxu0 0.0
        %2857 = vmatprep.subr.mxu0 0.0
        %2858 = vmatpush1.msra.mxu0 0.0
        %2859 = vmatprep.subr.mxu0 0.0
        %2860 = vmatpush1.msra.mxu0 0.0
        %2861 = vmatprep.subr.mxu0 0.0
        %2862 = vmatpush1.msra.mxu0 0.0
        %2863 = vmatprep.subr.mxu0 0.0
        %2864 = vmatpush1.msra.mxu0 0.0
        %2865 = vmatprep.subr.mxu0 0.0
        %v2866 = vand.u32 %v2845, 4294901760
        %2867 = vmatpush1.msra.mxu0 %v2866
        %2868 = vmatprep.subr.mxu0 0.0
        %v2869 = vand.u32 %v2844, 4294901760
        %2870 = vmatpush1.msra.mxu0 %v2869
        %2871 = vmatprep.subr.mxu0 0.0
        %v2872 = vand.u32 %v2843, 4294901760
        %2873 = vmatpush1.msra.mxu0 %v2872
        %2874 = vmatprep.subr.mxu0 0.0
        %v2875 = vand.u32 %v2842, 4294901760
        %2876 = vmatpush1.msra.mxu0 %v2875
        %2877 = vmatprep.subr.mxu0 0.0
        %v2878 = vand.u32 %v2841, 4294901760
        %2879 = vmatpush1.msra.mxu0 %v2878
        %2880 = vmatprep.subr.mxu0 0.0
        %v2881 = vand.u32 %v2840, 4294901760
        %2882 = vmatpush1.msra.mxu0 %v2881
        %2883 = vmatprep.subr.mxu0 0.0
        %v2884 = vand.u32 %v2839, 4294901760
        %2885 = vmatpush1.msra.mxu0 %v2884
        %2886 = vmatprep.subr.mxu0 0.0
        %v2887 = vand.u32 %v2838, 4294901760
        %2888 = vmatpush1.msra.mxu0 %v2887
        %2889 = vmatprep.subr.mxu0 0.0
        %2890 = vmatpush2.msra.mxu0 0.0
        %2891 = vmatprep.subr.mxu0 0.0
        %2892 = vmatpush2.msra.mxu0 0.0
        %2893 = vmatprep.subr.mxu0 0.0
        %2894 = vmatpush2.msra.mxu0 0.0
        %2895 = vmatprep.subr.mxu0 0.0
        %2896 = vmatpush2.msra.mxu0 0.0
        %2897 = vmatprep.subr.mxu0 0.0
        %2898 = vmatpush2.msra.mxu0 0.0
        %2899 = vmatprep.subr.mxu0 0.0
        %2900 = vmatpush2.msra.mxu0 0.0
        %2901 = vmatprep.subr.mxu0 0.0
        %2902 = vmatpush2.msra.mxu0 0.0
        %2903 = vmatprep.subr.mxu0 0.0
        %2904 = vmatpush2.msra.mxu0 0.0
        %2905 = vmatprep.subr.mxu0 0.0
        %2906 = vmatpush2.msra.mxu0 0.0
        %2907 = vmatprep.subr.mxu0 0.0
        %2908 = vmatpush2.msra.mxu0 0.0
        %2909 = vmatprep.subr.mxu0 0.0
        %2910 = vmatpush2.msra.mxu0 0.0
        %2911 = vmatprep.subr.mxu0 0.0
        %2912 = vmatpush2.msra.mxu0 0.0
        %2913 = vmatprep.subr.mxu0 0.0
        %2914 = vmatpush2.msra.mxu0 0.0
        %2915 = vmatprep.subr.mxu0 0.0
        %2916 = vmatpush2.msra.mxu0 0.0
        %2917 = vmatprep.subr.mxu0 0.0
        %2918 = vmatpush2.msra.mxu0 0.0
        %2919 = vmatprep.subr.mxu0 0.0
        %2920 = vmatpush2.msra.mxu0 0.0
        %2921 = vmatprep.mubr.f32.mxu0 0.0
        %v2922 = vand.u32 %v2847, 4294901760
        %v2923 = vsub.f32 %v2847, %v2922
        %v2924 = vand.u32 %v2923, 4294901760
        %v2925 = vsub.f32 %v2923, %v2924
        %v2926 = vand.u32 %v2925, 4294901760
        %2927 = vmatmul.mubr.f32.gmra.mxu0 %v2926
        %v2928 = vpop.f32.mrf.mxu0
        %v2929 = vadd.f32 0.0, %v2928
        %v2930 = vpop.f32.mrf.mxu0
        %2931 = vdwg.mxu0
        %2932 = vmatprep.subr.mxu0 0.0
        %2933 = vmatpush1.msra.mxu0 0.0
        %2934 = vmatprep.subr.mxu0 0.0
        %2935 = vmatpush1.msra.mxu0 0.0
        %2936 = vmatprep.subr.mxu0 0.0
        %2937 = vmatpush1.msra.mxu0 0.0
        %2938 = vmatprep.subr.mxu0 0.0
        %2939 = vmatpush1.msra.mxu0 0.0
        %2940 = vmatprep.subr.mxu0 0.0
        %2941 = vmatpush1.msra.mxu0 0.0
        %2942 = vmatprep.subr.mxu0 0.0
        %2943 = vmatpush1.msra.mxu0 0.0
        %2944 = vmatprep.subr.mxu0 0.0
        %2945 = vmatpush1.msra.mxu0 0.0
        %2946 = vmatprep.subr.mxu0 0.0
        %2947 = vmatpush1.msra.mxu0 0.0
        %2948 = vmatprep.subr.mxu0 0.0
        %v2949 = vand.u32 %v2845, 4294901760
        %v2950 = vsub.f32 %v2845, %v2949
        %v2951 = vand.u32 %v2950, 4294901760
        %v2952 = vsub.f32 %v2950, %v2951
        %v2953 = vand.u32 %v2952, 4294901760
        %2954 = vmatpush1.msra.mxu0 %v2953
        %2955 = vmatprep.subr.mxu0 0.0
        %v2956 = vand.u32 %v2844, 4294901760
        %v2957 = vsub.f32 %v2844, %v2956
        %v2958 = vand.u32 %v2957, 4294901760
        %v2959 = vsub.f32 %v2957, %v2958
        %v2960 = vand.u32 %v2959, 4294901760
        %2961 = vmatpush1.msra.mxu0 %v2960
        %2962 = vmatprep.subr.mxu0 0.0
        %v2963 = vand.u32 %v2843, 4294901760
        %v2964 = vsub.f32 %v2843, %v2963
        %v2965 = vand.u32 %v2964, 4294901760
        %v2966 = vsub.f32 %v2964, %v2965
        %v2967 = vand.u32 %v2966, 4294901760
        %2968 = vmatpush1.msra.mxu0 %v2967
        %2969 = vmatprep.subr.mxu0 0.0
        %v2970 = vand.u32 %v2842, 4294901760
        %v2971 = vsub.f32 %v2842, %v2970
        %v2972 = vand.u32 %v2971, 4294901760
        %v2973 = vsub.f32 %v2971, %v2972
        %v2974 = vand.u32 %v2973, 4294901760
        %2975 = vmatpush1.msra.mxu0 %v2974
        %2976 = vmatprep.subr.mxu0 0.0
        %v2977 = vand.u32 %v2841, 4294901760
        %v2978 = vsub.f32 %v2841, %v2977
        %v2979 = vand.u32 %v2978, 4294901760
        %v2980 = vsub.f32 %v2978, %v2979
        %v2981 = vand.u32 %v2980, 4294901760
        %2982 = vmatpush1.msra.mxu0 %v2981
        %2983 = vmatprep.subr.mxu0 0.0
        %v2984 = vand.u32 %v2840, 4294901760
        %v2985 = vsub.f32 %v2840, %v2984
        %v2986 = vand.u32 %v2985, 4294901760
        %v2987 = vsub.f32 %v2985, %v2986
        %v2988 = vand.u32 %v2987, 4294901760
        %2989 = vmatpush1.msra.mxu0 %v2988
        %2990 = vmatprep.subr.mxu0 0.0
        %v2991 = vand.u32 %v2839, 4294901760
        %v2992 = vsub.f32 %v2839, %v2991
        %v2993 = vand.u32 %v2992, 4294901760
        %v2994 = vsub.f32 %v2992, %v2993
        %v2995 = vand.u32 %v2994, 4294901760
        %2996 = vmatpush1.msra.mxu0 %v2995
        %2997 = vmatprep.subr.mxu0 0.0
        %v2998 = vand.u32 %v2838, 4294901760
        %v2999 = vsub.f32 %v2838, %v2998
        %v3000 = vand.u32 %v2999, 4294901760
        %v3001 = vsub.f32 %v2999, %v3000
        %v3002 = vand.u32 %v3001, 4294901760
        %3003 = vmatpush1.msra.mxu0 %v3002
        %3004 = vmatprep.subr.mxu0 0.0
        %3005 = vmatpush2.msra.mxu0 0.0
        %3006 = vmatprep.subr.mxu0 0.0
        %3007 = vmatpush2.msra.mxu0 0.0
        %3008 = vmatprep.subr.mxu0 0.0
        %3009 = vmatpush2.msra.mxu0 0.0
        %3010 = vmatprep.subr.mxu0 0.0
        %3011 = vmatpush2.msra.mxu0 0.0
        %3012 = vmatprep.subr.mxu0 0.0
        %3013 = vmatpush2.msra.mxu0 0.0
        %3014 = vmatprep.subr.mxu0 0.0
        %3015 = vmatpush2.msra.mxu0 0.0
        %3016 = vmatprep.subr.mxu0 0.0
        %3017 = vmatpush2.msra.mxu0 0.0
        %3018 = vmatprep.subr.mxu0 0.0
        %3019 = vmatpush2.msra.mxu0 0.0
        %3020 = vmatprep.subr.mxu0 0.0
        %3021 = vmatpush2.msra.mxu0 0.0
        %3022 = vmatprep.subr.mxu0 0.0
        %3023 = vmatpush2.msra.mxu0 0.0
        %3024 = vmatprep.subr.mxu0 0.0
        %3025 = vmatpush2.msra.mxu0 0.0
        %3026 = vmatprep.subr.mxu0 0.0
        %3027 = vmatpush2.msra.mxu0 0.0
        %3028 = vmatprep.subr.mxu0 0.0
        %3029 = vmatpush2.msra.mxu0 0.0
        %3030 = vmatprep.subr.mxu0 0.0
        %3031 = vmatpush2.msra.mxu0 0.0
        %3032 = vmatprep.subr.mxu0 0.0
        %3033 = vmatpush2.msra.mxu0 0.0
        %3034 = vmatprep.subr.mxu0 0.0
        %3035 = vmatpush2.msra.mxu0 0.0
        %3036 = vmatprep.mubr.f32.mxu0 0.0
        %v3037 = vand.u32 %v2847, 4294901760
        %3038 = vmatmul.mubr.f32.gmra.mxu0 %v3037
        %v3039 = vpop.f32.mrf.mxu0
        %v3040 = vadd.f32 %v2929, %v3039
        %v3041 = vpop.f32.mrf.mxu0
        %3042 = vdwg.mxu0
        %3043 = vmatprep.subr.mxu0 0.0
        %3044 = vmatpush1.msra.mxu0 0.0
        %3045 = vmatprep.subr.mxu0 0.0
        %3046 = vmatpush1.msra.mxu0 0.0
        %3047 = vmatprep.subr.mxu0 0.0
        %3048 = vmatpush1.msra.mxu0 0.0
        %3049 = vmatprep.subr.mxu0 0.0
        %3050 = vmatpush1.msra.mxu0 0.0
        %3051 = vmatprep.subr.mxu0 0.0
        %3052 = vmatpush1.msra.mxu0 0.0
        %3053 = vmatprep.subr.mxu0 0.0
        %3054 = vmatpush1.msra.mxu0 0.0
        %3055 = vmatprep.subr.mxu0 0.0
        %3056 = vmatpush1.msra.mxu0 0.0
        %3057 = vmatprep.subr.mxu0 0.0
        %3058 = vmatpush1.msra.mxu0 0.0
        %3059 = vmatprep.subr.mxu0 0.0
        %v3060 = vand.u32 %v2845, 4294901760
        %v3061 = vsub.f32 %v2845, %v3060
        %3062 = vmatpush1.msra.mxu0 %v3061
        %3063 = vmatprep.subr.mxu0 0.0
        %v3064 = vand.u32 %v2844, 4294901760
        %v3065 = vsub.f32 %v2844, %v3064
        %3066 = vmatpush1.msra.mxu0 %v3065
        %3067 = vmatprep.subr.mxu0 0.0
        %v3068 = vand.u32 %v2843, 4294901760
        %v3069 = vsub.f32 %v2843, %v3068
        %3070 = vmatpush1.msra.mxu0 %v3069
        %3071 = vmatprep.subr.mxu0 0.0
        %v3072 = vand.u32 %v2842, 4294901760
        %v3073 = vsub.f32 %v2842, %v3072
        %3074 = vmatpush1.msra.mxu0 %v3073
        %3075 = vmatprep.subr.mxu0 0.0
        %v3076 = vand.u32 %v2841, 4294901760
        %v3077 = vsub.f32 %v2841, %v3076
        %3078 = vmatpush1.msra.mxu0 %v3077
        %3079 = vmatprep.subr.mxu0 0.0
        %v3080 = vand.u32 %v2840, 4294901760
        %v3081 = vsub.f32 %v2840, %v3080
        %3082 = vmatpush1.msra.mxu0 %v3081
        %3083 = vmatprep.subr.mxu0 0.0
        %v3084 = vand.u32 %v2839, 4294901760
        %v3085 = vsub.f32 %v2839, %v3084
        %3086 = vmatpush1.msra.mxu0 %v3085
        %3087 = vmatprep.subr.mxu0 0.0
        %v3088 = vand.u32 %v2838, 4294901760
        %v3089 = vsub.f32 %v2838, %v3088
        %3090 = vmatpush1.msra.mxu0 %v3089
        %3091 = vmatprep.subr.mxu0 0.0
        %3092 = vmatpush2.msra.mxu0 0.0
        %3093 = vmatprep.subr.mxu0 0.0
        %3094 = vmatpush2.msra.mxu0 0.0
        %3095 = vmatprep.subr.mxu0 0.0
        %3096 = vmatpush2.msra.mxu0 0.0
        %3097 = vmatprep.subr.mxu0 0.0
        %3098 = vmatpush2.msra.mxu0 0.0
        %3099 = vmatprep.subr.mxu0 0.0
        %3100 = vmatpush2.msra.mxu0 0.0
        %3101 = vmatprep.subr.mxu0 0.0
        %3102 = vmatpush2.msra.mxu0 0.0
        %3103 = vmatprep.subr.mxu0 0.0
        %3104 = vmatpush2.msra.mxu0 0.0
        %3105 = vmatprep.subr.mxu0 0.0
        %3106 = vmatpush2.msra.mxu0 0.0
        %3107 = vmatprep.subr.mxu0 0.0
        %3108 = vmatpush2.msra.mxu0 0.0
        %3109 = vmatprep.subr.mxu0 0.0
        %3110 = vmatpush2.msra.mxu0 0.0
        %3111 = vmatprep.subr.mxu0 0.0
        %3112 = vmatpush2.msra.mxu0 0.0
        %3113 = vmatprep.subr.mxu0 0.0
        %3114 = vmatpush2.msra.mxu0 0.0
        %3115 = vmatprep.subr.mxu0 0.0
        %3116 = vmatpush2.msra.mxu0 0.0
        %3117 = vmatprep.subr.mxu0 0.0
        %3118 = vmatpush2.msra.mxu0 0.0
        %3119 = vmatprep.subr.mxu0 0.0
        %3120 = vmatpush2.msra.mxu0 0.0
        %3121 = vmatprep.subr.mxu0 0.0
        %3122 = vmatpush2.msra.mxu0 0.0
        %3123 = vmatprep.mubr.f32.mxu0 0.0
        %v3124 = vand.u32 %v2847, 4294901760
        %v3125 = vsub.f32 %v2847, %v3124
        %3126 = vmatmul.mubr.f32.gmra.mxu0 %v3125
        %v3127 = vpop.f32.mrf.mxu0
        %v3128 = vadd.f32 %v3040, %v3127
        %v3129 = vpop.f32.mrf.mxu0
        %3130 = vdwg.mxu0
        %3131 = vmatprep.subr.mxu0 0.0
        %3132 = vmatpush1.msra.mxu0 0.0
        %3133 = vmatprep.subr.mxu0 0.0
        %3134 = vmatpush1.msra.mxu0 0.0
        %3135 = vmatprep.subr.mxu0 0.0
        %3136 = vmatpush1.msra.mxu0 0.0
        %3137 = vmatprep.subr.mxu0 0.0
        %3138 = vmatpush1.msra.mxu0 0.0
        %3139 = vmatprep.subr.mxu0 0.0
        %3140 = vmatpush1.msra.mxu0 0.0
        %3141 = vmatprep.subr.mxu0 0.0
        %3142 = vmatpush1.msra.mxu0 0.0
        %3143 = vmatprep.subr.mxu0 0.0
        %3144 = vmatpush1.msra.mxu0 0.0
        %3145 = vmatprep.subr.mxu0 0.0
        %3146 = vmatpush1.msra.mxu0 0.0
        %3147 = vmatprep.subr.mxu0 0.0
        %v3148 = vand.u32 %v2845, 4294901760
        %3149 = vmatpush1.msra.mxu0 %v3148
        %3150 = vmatprep.subr.mxu0 0.0
        %v3151 = vand.u32 %v2844, 4294901760
        %3152 = vmatpush1.msra.mxu0 %v3151
        %3153 = vmatprep.subr.mxu0 0.0
        %v3154 = vand.u32 %v2843, 4294901760
        %3155 = vmatpush1.msra.mxu0 %v3154
        %3156 = vmatprep.subr.mxu0 0.0
        %v3157 = vand.u32 %v2842, 4294901760
        %3158 = vmatpush1.msra.mxu0 %v3157
        %3159 = vmatprep.subr.mxu0 0.0
        %v3160 = vand.u32 %v2841, 4294901760
        %3161 = vmatpush1.msra.mxu0 %v3160
        %3162 = vmatprep.subr.mxu0 0.0
        %v3163 = vand.u32 %v2840, 4294901760
        %3164 = vmatpush1.msra.mxu0 %v3163
        %3165 = vmatprep.subr.mxu0 0.0
        %v3166 = vand.u32 %v2839, 4294901760
        %3167 = vmatpush1.msra.mxu0 %v3166
        %3168 = vmatprep.subr.mxu0 0.0
        %v3169 = vand.u32 %v2838, 4294901760
        %3170 = vmatpush1.msra.mxu0 %v3169
        %3171 = vmatprep.subr.mxu0 0.0
        %3172 = vmatpush2.msra.mxu0 0.0
        %3173 = vmatprep.subr.mxu0 0.0
        %3174 = vmatpush2.msra.mxu0 0.0
        %3175 = vmatprep.subr.mxu0 0.0
        %3176 = vmatpush2.msra.mxu0 0.0
        %3177 = vmatprep.subr.mxu0 0.0
        %3178 = vmatpush2.msra.mxu0 0.0
        %3179 = vmatprep.subr.mxu0 0.0
        %3180 = vmatpush2.msra.mxu0 0.0
        %3181 = vmatprep.subr.mxu0 0.0
        %3182 = vmatpush2.msra.mxu0 0.0
        %3183 = vmatprep.subr.mxu0 0.0
        %3184 = vmatpush2.msra.mxu0 0.0
        %3185 = vmatprep.subr.mxu0 0.0
        %3186 = vmatpush2.msra.mxu0 0.0
        %3187 = vmatprep.subr.mxu0 0.0
        %3188 = vmatpush2.msra.mxu0 0.0
        %3189 = vmatprep.subr.mxu0 0.0
        %3190 = vmatpush2.msra.mxu0 0.0
        %3191 = vmatprep.subr.mxu0 0.0
        %3192 = vmatpush2.msra.mxu0 0.0
        %3193 = vmatprep.subr.mxu0 0.0
        %3194 = vmatpush2.msra.mxu0 0.0
        %3195 = vmatprep.subr.mxu0 0.0
        %3196 = vmatpush2.msra.mxu0 0.0
        %3197 = vmatprep.subr.mxu0 0.0
        %3198 = vmatpush2.msra.mxu0 0.0
        %3199 = vmatprep.subr.mxu0 0.0
        %3200 = vmatpush2.msra.mxu0 0.0
        %3201 = vmatprep.subr.mxu0 0.0
        %3202 = vmatpush2.msra.mxu0 0.0
        %3203 = vmatprep.mubr.f32.mxu0 0.0
        %v3204 = vand.u32 %v2847, 4294901760
        %v3205 = vsub.f32 %v2847, %v3204
        %v3206 = vand.u32 %v3205, 4294901760
        %3207 = vmatmul.mubr.f32.gmra.mxu0 %v3206
        %v3208 = vpop.f32.mrf.mxu0
        %v3209 = vadd.f32 %v3128, %v3208
        %v3210 = vpop.f32.mrf.mxu0
        %3211 = vdwg.mxu0
        %3212 = vmatprep.subr.mxu0 0.0
        %3213 = vmatpush1.msra.mxu0 0.0
        %3214 = vmatprep.subr.mxu0 0.0
        %3215 = vmatpush1.msra.mxu0 0.0
        %3216 = vmatprep.subr.mxu0 0.0
        %3217 = vmatpush1.msra.mxu0 0.0
        %3218 = vmatprep.subr.mxu0 0.0
        %3219 = vmatpush1.msra.mxu0 0.0
        %3220 = vmatprep.subr.mxu0 0.0
        %3221 = vmatpush1.msra.mxu0 0.0
        %3222 = vmatprep.subr.mxu0 0.0
        %3223 = vmatpush1.msra.mxu0 0.0
        %3224 = vmatprep.subr.mxu0 0.0
        %3225 = vmatpush1.msra.mxu0 0.0
        %3226 = vmatprep.subr.mxu0 0.0
        %3227 = vmatpush1.msra.mxu0 0.0
        %3228 = vmatprep.subr.mxu0 0.0
        %v3229 = vand.u32 %v2845, 4294901760
        %v3230 = vsub.f32 %v2845, %v3229
        %v3231 = vand.u32 %v3230, 4294901760
        %3232 = vmatpush1.msra.mxu0 %v3231
        %3233 = vmatprep.subr.mxu0 0.0
        %v3234 = vand.u32 %v2844, 4294901760
        %v3235 = vsub.f32 %v2844, %v3234
        %v3236 = vand.u32 %v3235, 4294901760
        %3237 = vmatpush1.msra.mxu0 %v3236
        %3238 = vmatprep.subr.mxu0 0.0
        %v3239 = vand.u32 %v2843, 4294901760
        %v3240 = vsub.f32 %v2843, %v3239
        %v3241 = vand.u32 %v3240, 4294901760
        %3242 = vmatpush1.msra.mxu0 %v3241
        %3243 = vmatprep.subr.mxu0 0.0
        %v3244 = vand.u32 %v2842, 4294901760
        %v3245 = vsub.f32 %v2842, %v3244
        %v3246 = vand.u32 %v3245, 4294901760
        %3247 = vmatpush1.msra.mxu0 %v3246
        %3248 = vmatprep.subr.mxu0 0.0
        %v3249 = vand.u32 %v2841, 4294901760
        %v3250 = vsub.f32 %v2841, %v3249
        %v3251 = vand.u32 %v3250, 4294901760
        %3252 = vmatpush1.msra.mxu0 %v3251
        %3253 = vmatprep.subr.mxu0 0.0
        %v3254 = vand.u32 %v2840, 4294901760
        %v3255 = vsub.f32 %v2840, %v3254
        %v3256 = vand.u32 %v3255, 4294901760
        %3257 = vmatpush1.msra.mxu0 %v3256
        %3258 = vmatprep.subr.mxu0 0.0
        %v3259 = vand.u32 %v2839, 4294901760
        %v3260 = vsub.f32 %v2839, %v3259
        %v3261 = vand.u32 %v3260, 4294901760
        %3262 = vmatpush1.msra.mxu0 %v3261
        %3263 = vmatprep.subr.mxu0 0.0
        %v3264 = vand.u32 %v2838, 4294901760
        %v3265 = vsub.f32 %v2838, %v3264
        %v3266 = vand.u32 %v3265, 4294901760
        %3267 = vmatpush1.msra.mxu0 %v3266
        %3268 = vmatprep.subr.mxu0 0.0
        %3269 = vmatpush2.msra.mxu0 0.0
        %3270 = vmatprep.subr.mxu0 0.0
        %3271 = vmatpush2.msra.mxu0 0.0
        %3272 = vmatprep.subr.mxu0 0.0
        %3273 = vmatpush2.msra.mxu0 0.0
        %3274 = vmatprep.subr.mxu0 0.0
        %3275 = vmatpush2.msra.mxu0 0.0
        %3276 = vmatprep.subr.mxu0 0.0
        %3277 = vmatpush2.msra.mxu0 0.0
        %3278 = vmatprep.subr.mxu0 0.0
        %3279 = vmatpush2.msra.mxu0 0.0
        %3280 = vmatprep.subr.mxu0 0.0
        %3281 = vmatpush2.msra.mxu0 0.0
        %3282 = vmatprep.subr.mxu0 0.0
        %3283 = vmatpush2.msra.mxu0 0.0
        %3284 = vmatprep.subr.mxu0 0.0
        %3285 = vmatpush2.msra.mxu0 0.0
        %3286 = vmatprep.subr.mxu0 0.0
        %3287 = vmatpush2.msra.mxu0 0.0
        %3288 = vmatprep.subr.mxu0 0.0
        %3289 = vmatpush2.msra.mxu0 0.0
        %3290 = vmatprep.subr.mxu0 0.0
        %3291 = vmatpush2.msra.mxu0 0.0
        %3292 = vmatprep.subr.mxu0 0.0
        %3293 = vmatpush2.msra.mxu0 0.0
        %3294 = vmatprep.subr.mxu0 0.0
        %3295 = vmatpush2.msra.mxu0 0.0
        %3296 = vmatprep.subr.mxu0 0.0
        %3297 = vmatpush2.msra.mxu0 0.0
        %3298 = vmatprep.subr.mxu0 0.0
        %3299 = vmatpush2.msra.mxu0 0.0
        %3300 = vmatprep.mubr.f32.mxu0 0.0
        %v3301 = vand.u32 %v2847, 4294901760
        %3302 = vmatmul.mubr.f32.gmra.mxu0 %v3301
        %v3303 = vpop.f32.mrf.mxu0
        %v3304 = vadd.f32 %v3209, %v3303
        %v3305 = vpop.f32.mrf.mxu0
        %3306 = vdwg.mxu0
        %3307 = vmatprep.subr.mxu0 0.0
        %3308 = vmatpush1.msra.mxu0 0.0
        %3309 = vmatprep.subr.mxu0 0.0
        %3310 = vmatpush1.msra.mxu0 0.0
        %3311 = vmatprep.subr.mxu0 0.0
        %3312 = vmatpush1.msra.mxu0 0.0
        %3313 = vmatprep.subr.mxu0 0.0
        %3314 = vmatpush1.msra.mxu0 0.0
        %3315 = vmatprep.subr.mxu0 0.0
        %3316 = vmatpush1.msra.mxu0 0.0
        %3317 = vmatprep.subr.mxu0 0.0
        %3318 = vmatpush1.msra.mxu0 0.0
        %3319 = vmatprep.subr.mxu0 0.0
        %3320 = vmatpush1.msra.mxu0 0.0
        %3321 = vmatprep.subr.mxu0 0.0
        %3322 = vmatpush1.msra.mxu0 0.0
        %3323 = vmatprep.subr.mxu0 0.0
        %v3324 = vand.u32 %v2845, 4294901760
        %3325 = vmatpush1.msra.mxu0 %v3324
        %3326 = vmatprep.subr.mxu0 0.0
        %v3327 = vand.u32 %v2844, 4294901760
        %3328 = vmatpush1.msra.mxu0 %v3327
        %3329 = vmatprep.subr.mxu0 0.0
        %v3330 = vand.u32 %v2843, 4294901760
        %3331 = vmatpush1.msra.mxu0 %v3330
        %3332 = vmatprep.subr.mxu0 0.0
        %v3333 = vand.u32 %v2842, 4294901760
        %3334 = vmatpush1.msra.mxu0 %v3333
        %3335 = vmatprep.subr.mxu0 0.0
        %v3336 = vand.u32 %v2841, 4294901760
        %3337 = vmatpush1.msra.mxu0 %v3336
        %3338 = vmatprep.subr.mxu0 0.0
        %v3339 = vand.u32 %v2840, 4294901760
        %3340 = vmatpush1.msra.mxu0 %v3339
        %3341 = vmatprep.subr.mxu0 0.0
        %v3342 = vand.u32 %v2839, 4294901760
        %3343 = vmatpush1.msra.mxu0 %v3342
        %3344 = vmatprep.subr.mxu0 0.0
        %v3345 = vand.u32 %v2838, 4294901760
        %3346 = vmatpush1.msra.mxu0 %v3345
        %3347 = vmatprep.subr.mxu0 0.0
        %3348 = vmatpush2.msra.mxu0 0.0
        %3349 = vmatprep.subr.mxu0 0.0
        %3350 = vmatpush2.msra.mxu0 0.0
        %3351 = vmatprep.subr.mxu0 0.0
        %3352 = vmatpush2.msra.mxu0 0.0
        %3353 = vmatprep.subr.mxu0 0.0
        %3354 = vmatpush2.msra.mxu0 0.0
        %3355 = vmatprep.subr.mxu0 0.0
        %3356 = vmatpush2.msra.mxu0 0.0
        %3357 = vmatprep.subr.mxu0 0.0
        %3358 = vmatpush2.msra.mxu0 0.0
        %3359 = vmatprep.subr.mxu0 0.0
        %3360 = vmatpush2.msra.mxu0 0.0
        %3361 = vmatprep.subr.mxu0 0.0
        %3362 = vmatpush2.msra.mxu0 0.0
        %3363 = vmatprep.subr.mxu0 0.0
        %3364 = vmatpush2.msra.mxu0 0.0
        %3365 = vmatprep.subr.mxu0 0.0
        %3366 = vmatpush2.msra.mxu0 0.0
        %3367 = vmatprep.subr.mxu0 0.0
        %3368 = vmatpush2.msra.mxu0 0.0
        %3369 = vmatprep.subr.mxu0 0.0
        %3370 = vmatpush2.msra.mxu0 0.0
        %3371 = vmatprep.subr.mxu0 0.0
        %3372 = vmatpush2.msra.mxu0 0.0
        %3373 = vmatprep.subr.mxu0 0.0
        %3374 = vmatpush2.msra.mxu0 0.0
        %3375 = vmatprep.subr.mxu0 0.0
        %3376 = vmatpush2.msra.mxu0 0.0
        %3377 = vmatprep.subr.mxu0 0.0
        %3378 = vmatpush2.msra.mxu0 0.0
        %3379 = vmatprep.mubr.f32.mxu0 0.0
        %v3380 = vand.u32 %v2847, 4294901760
        %3381 = vmatmul.mubr.f32.gmra.mxu0 %v3380
        %v3382 = vpop.f32.mrf.mxu0
        %v3383 = vadd.f32 %v3304, %v3382
        %v3384 = vpop.f32.mrf.mxu0
        %3385 = vdwg.mxu0
        %vm3386 = vcmask 27648
        %v3387 = vsel %vm3386, %v3383, -inf
        %v3388 = vrot.slane %v3387, 4
        %v3389 = vmax.f32 %v3387, %v3388
        %v3390 = vrot.slane %v3389, 2
        %v3391 = vmax.f32 %v3389, %v3390
        %v3392 = vrot.slane %v3391, 1
        %v3393 = vmax.f32 %v3391, %v3392
        %v3394 = vsub.f32 %v3383, %v3393
        %v3395 = vmul.f32 %v3394, 1.442695
        %v3396 = vpow.pop %v3395
        %v3397 = vsel %vm3386, %v3396, 0.0
        %v3398 = vrot.slane %v3397, 4
        %v3399 = vadd.f32 %v3397, %v3398
        %v3400 = vrot.slane %v3399, 2
        %v3401 = vadd.f32 %v3399, %v3400
        %v3402 = vrot.slane %v3401, 1
        %v3403 = vadd.f32 %v3401, %v3402
        %v3404 = vrcp.pop %v3403
        %v3405 = vmul.f32 %v3396, %v3404
        %3406 = vxpose.xlu0.b32.start [1/16] %v3405, 128
        %3407 = vxpose.xlu0.b32.cont [2/16] 0.0, 128
        %3408 = vxpose.xlu0.b32.cont [3/16] 0.0, 128
        %3409 = vxpose.xlu0.b32.cont [4/16] 0.0, 128
        %3410 = vxpose.xlu0.b32.cont [5/16] 0.0, 128
        %3411 = vxpose.xlu0.b32.cont [6/16] 0.0, 128
        %3412 = vxpose.xlu0.b32.cont [7/16] 0.0, 128
        %3413 = vxpose.xlu0.b32.cont [8/16] 0.0, 128
        %3414 = vxpose.xlu0.b32.cont [9/16] 0.0, 128
        %3415 = vxpose.xlu0.b32.cont [10/16] 0.0, 128
        %3416 = vxpose.xlu0.b32.cont [11/16] 0.0, 128
        %3417 = vxpose.xlu0.b32.cont [12/16] 0.0, 128
        %3418 = vxpose.xlu0.b32.cont [13/16] 0.0, 128
        %3419 = vxpose.xlu0.b32.cont [14/16] 0.0, 128
        %3420 = vxpose.xlu0.b32.cont [15/16] 0.0, 128
        %3421 = vxpose.xlu0.b32.end [16/16] 0.0, 128
        %v3422 = vpop.trf.xlu0
        %v3423 = vpop.trf.xlu0
        %v3424 = vpop.trf.xlu0
        %v3425 = vpop.trf.xlu0
        %v3426 = vpop.trf.xlu0
        %v3427 = vpop.trf.xlu0
        %v3428 = vpop.trf.xlu0
        %v3429 = vpop.trf.xlu0
        %v3430 = vpop.trf.xlu0
        %v3431 = vpop.trf.xlu0
        %v3432 = vpop.trf.xlu0
        %v3433 = vpop.trf.xlu0
        %v3434 = vpop.trf.xlu0
        %v3435 = vpop.trf.xlu0
        %v3436 = vpop.trf.xlu0
        %v3437 = vpop.trf.xlu0
        %v3439 = vsel %vm1840, %v3422, 0
        %v3441 = vsel %vm331, %v2342, 0
        %3443 = vmatprep.subr.mxu0 0.0
        %3444 = vmatpush1.msra.mxu0 0.0
        %3445 = vmatprep.subr.mxu0 0.0
        %3446 = vmatpush1.msra.mxu0 0.0
        %3447 = vmatprep.subr.mxu0 0.0
        %3448 = vmatpush1.msra.mxu0 0.0
        %3449 = vmatprep.subr.mxu0 0.0
        %3450 = vmatpush1.msra.mxu0 0.0
        %3451 = vmatprep.subr.mxu0 0.0
        %3452 = vmatpush1.msra.mxu0 0.0
        %3453 = vmatprep.subr.mxu0 0.0
        %3454 = vmatpush1.msra.mxu0 0.0
        %3455 = vmatprep.subr.mxu0 0.0
        %3456 = vmatpush1.msra.mxu0 0.0
        %3457 = vmatprep.subr.mxu0 0.0
        %3458 = vmatpush1.msra.mxu0 0.0
        %3459 = vmatprep.subr.mxu0 0.0
        %3460 = vmatpush1.msra.mxu0 0.0
        %3461 = vmatprep.subr.mxu0 0.0
        %3462 = vmatpush1.msra.mxu0 0.0
        %3463 = vmatprep.subr.mxu0 0.0
        %3464 = vmatpush1.msra.mxu0 0.0
        %3465 = vmatprep.subr.mxu0 0.0
        %3466 = vmatpush1.msra.mxu0 0.0
        %3467 = vmatprep.subr.mxu0 0.0
        %3468 = vmatpush1.msra.mxu0 0.0
        %3469 = vmatprep.subr.mxu0 0.0
        %3470 = vmatpush1.msra.mxu0 0.0
        %3471 = vmatprep.subr.mxu0 0.0
        %3472 = vmatpush1.msra.mxu0 0.0
        %3473 = vmatprep.subr.mxu0 0.0
        %v3474 = vand.u32 %v3441, 4294901760
        %3475 = vmatpush1.msra.mxu0 %v3474
        %3476 = vmatprep.subr.mxu0 0.0
        %3477 = vmatpush2.msra.mxu0 0.0
        %3478 = vmatprep.subr.mxu0 0.0
        %3479 = vmatpush2.msra.mxu0 0.0
        %3480 = vmatprep.subr.mxu0 0.0
        %3481 = vmatpush2.msra.mxu0 0.0
        %3482 = vmatprep.subr.mxu0 0.0
        %3483 = vmatpush2.msra.mxu0 0.0
        %3484 = vmatprep.subr.mxu0 0.0
        %3485 = vmatpush2.msra.mxu0 0.0
        %3486 = vmatprep.subr.mxu0 0.0
        %3487 = vmatpush2.msra.mxu0 0.0
        %3488 = vmatprep.subr.mxu0 0.0
        %3489 = vmatpush2.msra.mxu0 0.0
        %3490 = vmatprep.subr.mxu0 0.0
        %3491 = vmatpush2.msra.mxu0 0.0
        %3492 = vmatprep.subr.mxu0 0.0
        %3493 = vmatpush2.msra.mxu0 0.0
        %3494 = vmatprep.subr.mxu0 0.0
        %3495 = vmatpush2.msra.mxu0 0.0
        %3496 = vmatprep.subr.mxu0 0.0
        %3497 = vmatpush2.msra.mxu0 0.0
        %3498 = vmatprep.subr.mxu0 0.0
        %3499 = vmatpush2.msra.mxu0 0.0
        %3500 = vmatprep.subr.mxu0 0.0
        %3501 = vmatpush2.msra.mxu0 0.0
        %3502 = vmatprep.subr.mxu0 0.0
        %3503 = vmatpush2.msra.mxu0 0.0
        %3504 = vmatprep.subr.mxu0 0.0
        %3505 = vmatpush2.msra.mxu0 0.0
        %3506 = vmatprep.subr.mxu0 0.0
        %3507 = vmatpush2.msra.mxu0 0.0
        %3508 = vmatprep.mubr.f32.mxu0 0.0
        %v3509 = vand.u32 %v3439, 4294901760
        %v3510 = vsub.f32 %v3439, %v3509
        %v3511 = vand.u32 %v3510, 4294901760
        %v3512 = vsub.f32 %v3510, %v3511
        %v3513 = vand.u32 %v3512, 4294901760
        %3514 = vmatmul.mubr.f32.gmra.mxu0 %v3513
        %v3515 = vpop.f32.mrf.mxu0
        %v3516 = vadd.f32 0.0, %v3515
        %v3517 = vpop.f32.mrf.mxu0
        %3518 = vdwg.mxu0
        %3519 = vmatprep.subr.mxu0 0.0
        %3520 = vmatpush1.msra.mxu0 0.0
        %3521 = vmatprep.subr.mxu0 0.0
        %3522 = vmatpush1.msra.mxu0 0.0
        %3523 = vmatprep.subr.mxu0 0.0
        %3524 = vmatpush1.msra.mxu0 0.0
        %3525 = vmatprep.subr.mxu0 0.0
        %3526 = vmatpush1.msra.mxu0 0.0
        %3527 = vmatprep.subr.mxu0 0.0
        %3528 = vmatpush1.msra.mxu0 0.0
        %3529 = vmatprep.subr.mxu0 0.0
        %3530 = vmatpush1.msra.mxu0 0.0
        %3531 = vmatprep.subr.mxu0 0.0
        %3532 = vmatpush1.msra.mxu0 0.0
        %3533 = vmatprep.subr.mxu0 0.0
        %3534 = vmatpush1.msra.mxu0 0.0
        %3535 = vmatprep.subr.mxu0 0.0
        %3536 = vmatpush1.msra.mxu0 0.0
        %3537 = vmatprep.subr.mxu0 0.0
        %3538 = vmatpush1.msra.mxu0 0.0
        %3539 = vmatprep.subr.mxu0 0.0
        %3540 = vmatpush1.msra.mxu0 0.0
        %3541 = vmatprep.subr.mxu0 0.0
        %3542 = vmatpush1.msra.mxu0 0.0
        %3543 = vmatprep.subr.mxu0 0.0
        %3544 = vmatpush1.msra.mxu0 0.0
        %3545 = vmatprep.subr.mxu0 0.0
        %3546 = vmatpush1.msra.mxu0 0.0
        %3547 = vmatprep.subr.mxu0 0.0
        %3548 = vmatpush1.msra.mxu0 0.0
        %3549 = vmatprep.subr.mxu0 0.0
        %v3550 = vand.u32 %v3441, 4294901760
        %v3551 = vsub.f32 %v3441, %v3550
        %v3552 = vand.u32 %v3551, 4294901760
        %v3553 = vsub.f32 %v3551, %v3552
        %v3554 = vand.u32 %v3553, 4294901760
        %3555 = vmatpush1.msra.mxu0 %v3554
        %3556 = vmatprep.subr.mxu0 0.0
        %3557 = vmatpush2.msra.mxu0 0.0
        %3558 = vmatprep.subr.mxu0 0.0
        %3559 = vmatpush2.msra.mxu0 0.0
        %3560 = vmatprep.subr.mxu0 0.0
        %3561 = vmatpush2.msra.mxu0 0.0
        %3562 = vmatprep.subr.mxu0 0.0
        %3563 = vmatpush2.msra.mxu0 0.0
        %3564 = vmatprep.subr.mxu0 0.0
        %3565 = vmatpush2.msra.mxu0 0.0
        %3566 = vmatprep.subr.mxu0 0.0
        %3567 = vmatpush2.msra.mxu0 0.0
        %3568 = vmatprep.subr.mxu0 0.0
        %3569 = vmatpush2.msra.mxu0 0.0
        %3570 = vmatprep.subr.mxu0 0.0
        %3571 = vmatpush2.msra.mxu0 0.0
        %3572 = vmatprep.subr.mxu0 0.0
        %3573 = vmatpush2.msra.mxu0 0.0
        %3574 = vmatprep.subr.mxu0 0.0
        %3575 = vmatpush2.msra.mxu0 0.0
        %3576 = vmatprep.subr.mxu0 0.0
        %3577 = vmatpush2.msra.mxu0 0.0
        %3578 = vmatprep.subr.mxu0 0.0
        %3579 = vmatpush2.msra.mxu0 0.0
        %3580 = vmatprep.subr.mxu0 0.0
        %3581 = vmatpush2.msra.mxu0 0.0
        %3582 = vmatprep.subr.mxu0 0.0
        %3583 = vmatpush2.msra.mxu0 0.0
        %3584 = vmatprep.subr.mxu0 0.0
        %3585 = vmatpush2.msra.mxu0 0.0
        %3586 = vmatprep.subr.mxu0 0.0
        %3587 = vmatpush2.msra.mxu0 0.0
        %3588 = vmatprep.mubr.f32.mxu0 0.0
        %v3589 = vand.u32 %v3439, 4294901760
        %3590 = vmatmul.mubr.f32.gmra.mxu0 %v3589
        %v3591 = vpop.f32.mrf.mxu0
        %v3592 = vadd.f32 %v3516, %v3591
        %v3593 = vpop.f32.mrf.mxu0
        %3594 = vdwg.mxu0
        %3595 = vmatprep.subr.mxu0 0.0
        %3596 = vmatpush1.msra.mxu0 0.0
        %3597 = vmatprep.subr.mxu0 0.0
        %3598 = vmatpush1.msra.mxu0 0.0
        %3599 = vmatprep.subr.mxu0 0.0
        %3600 = vmatpush1.msra.mxu0 0.0
        %3601 = vmatprep.subr.mxu0 0.0
        %3602 = vmatpush1.msra.mxu0 0.0
        %3603 = vmatprep.subr.mxu0 0.0
        %3604 = vmatpush1.msra.mxu0 0.0
        %3605 = vmatprep.subr.mxu0 0.0
        %3606 = vmatpush1.msra.mxu0 0.0
        %3607 = vmatprep.subr.mxu0 0.0
        %3608 = vmatpush1.msra.mxu0 0.0
        %3609 = vmatprep.subr.mxu0 0.0
        %3610 = vmatpush1.msra.mxu0 0.0
        %3611 = vmatprep.subr.mxu0 0.0
        %3612 = vmatpush1.msra.mxu0 0.0
        %3613 = vmatprep.subr.mxu0 0.0
        %3614 = vmatpush1.msra.mxu0 0.0
        %3615 = vmatprep.subr.mxu0 0.0
        %3616 = vmatpush1.msra.mxu0 0.0
        %3617 = vmatprep.subr.mxu0 0.0
        %3618 = vmatpush1.msra.mxu0 0.0
        %3619 = vmatprep.subr.mxu0 0.0
        %3620 = vmatpush1.msra.mxu0 0.0
        %3621 = vmatprep.subr.mxu0 0.0
        %3622 = vmatpush1.msra.mxu0 0.0
        %3623 = vmatprep.subr.mxu0 0.0
        %3624 = vmatpush1.msra.mxu0 0.0
        %3625 = vmatprep.subr.mxu0 0.0
        %v3626 = vand.u32 %v3441, 4294901760
        %v3627 = vsub.f32 %v3441, %v3626
        %3628 = vmatpush1.msra.mxu0 %v3627
        %3629 = vmatprep.subr.mxu0 0.0
        %3630 = vmatpush2.msra.mxu0 0.0
        %3631 = vmatprep.subr.mxu0 0.0
        %3632 = vmatpush2.msra.mxu0 0.0
        %3633 = vmatprep.subr.mxu0 0.0
        %3634 = vmatpush2.msra.mxu0 0.0
        %3635 = vmatprep.subr.mxu0 0.0
        %3636 = vmatpush2.msra.mxu0 0.0
        %3637 = vmatprep.subr.mxu0 0.0
        %3638 = vmatpush2.msra.mxu0 0.0
        %3639 = vmatprep.subr.mxu0 0.0
        %3640 = vmatpush2.msra.mxu0 0.0
        %3641 = vmatprep.subr.mxu0 0.0
        %3642 = vmatpush2.msra.mxu0 0.0
        %3643 = vmatprep.subr.mxu0 0.0
        %3644 = vmatpush2.msra.mxu0 0.0
        %3645 = vmatprep.subr.mxu0 0.0
        %3646 = vmatpush2.msra.mxu0 0.0
        %3647 = vmatprep.subr.mxu0 0.0
        %3648 = vmatpush2.msra.mxu0 0.0
        %3649 = vmatprep.subr.mxu0 0.0
        %3650 = vmatpush2.msra.mxu0 0.0
        %3651 = vmatprep.subr.mxu0 0.0
        %3652 = vmatpush2.msra.mxu0 0.0
        %3653 = vmatprep.subr.mxu0 0.0
        %3654 = vmatpush2.msra.mxu0 0.0
        %3655 = vmatprep.subr.mxu0 0.0
        %3656 = vmatpush2.msra.mxu0 0.0
        %3657 = vmatprep.subr.mxu0 0.0
        %3658 = vmatpush2.msra.mxu0 0.0
        %3659 = vmatprep.subr.mxu0 0.0
        %3660 = vmatpush2.msra.mxu0 0.0
        %3661 = vmatprep.mubr.f32.mxu0 0.0
        %v3662 = vand.u32 %v3439, 4294901760
        %v3663 = vsub.f32 %v3439, %v3662
        %3664 = vmatmul.mubr.f32.gmra.mxu0 %v3663
        %v3665 = vpop.f32.mrf.mxu0
        %v3666 = vadd.f32 %v3592, %v3665
        %v3667 = vpop.f32.mrf.mxu0
        %3668 = vdwg.mxu0
        %3669 = vmatprep.subr.mxu0 0.0
        %3670 = vmatpush1.msra.mxu0 0.0
        %3671 = vmatprep.subr.mxu0 0.0
        %3672 = vmatpush1.msra.mxu0 0.0
        %3673 = vmatprep.subr.mxu0 0.0
        %3674 = vmatpush1.msra.mxu0 0.0
        %3675 = vmatprep.subr.mxu0 0.0
        %3676 = vmatpush1.msra.mxu0 0.0
        %3677 = vmatprep.subr.mxu0 0.0
        %3678 = vmatpush1.msra.mxu0 0.0
        %3679 = vmatprep.subr.mxu0 0.0
        %3680 = vmatpush1.msra.mxu0 0.0
        %3681 = vmatprep.subr.mxu0 0.0
        %3682 = vmatpush1.msra.mxu0 0.0
        %3683 = vmatprep.subr.mxu0 0.0
        %3684 = vmatpush1.msra.mxu0 0.0
        %3685 = vmatprep.subr.mxu0 0.0
        %3686 = vmatpush1.msra.mxu0 0.0
        %3687 = vmatprep.subr.mxu0 0.0
        %3688 = vmatpush1.msra.mxu0 0.0
        %3689 = vmatprep.subr.mxu0 0.0
        %3690 = vmatpush1.msra.mxu0 0.0
        %3691 = vmatprep.subr.mxu0 0.0
        %3692 = vmatpush1.msra.mxu0 0.0
        %3693 = vmatprep.subr.mxu0 0.0
        %3694 = vmatpush1.msra.mxu0 0.0
        %3695 = vmatprep.subr.mxu0 0.0
        %3696 = vmatpush1.msra.mxu0 0.0
        %3697 = vmatprep.subr.mxu0 0.0
        %3698 = vmatpush1.msra.mxu0 0.0
        %3699 = vmatprep.subr.mxu0 0.0
        %v3700 = vand.u32 %v3441, 4294901760
        %3701 = vmatpush1.msra.mxu0 %v3700
        %3702 = vmatprep.subr.mxu0 0.0
        %3703 = vmatpush2.msra.mxu0 0.0
        %3704 = vmatprep.subr.mxu0 0.0
        %3705 = vmatpush2.msra.mxu0 0.0
        %3706 = vmatprep.subr.mxu0 0.0
        %3707 = vmatpush2.msra.mxu0 0.0
        %3708 = vmatprep.subr.mxu0 0.0
        %3709 = vmatpush2.msra.mxu0 0.0
        %3710 = vmatprep.subr.mxu0 0.0
        %3711 = vmatpush2.msra.mxu0 0.0
        %3712 = vmatprep.subr.mxu0 0.0
        %3713 = vmatpush2.msra.mxu0 0.0
        %3714 = vmatprep.subr.mxu0 0.0
        %3715 = vmatpush2.msra.mxu0 0.0
        %3716 = vmatprep.subr.mxu0 0.0
        %3717 = vmatpush2.msra.mxu0 0.0
        %3718 = vmatprep.subr.mxu0 0.0
        %3719 = vmatpush2.msra.mxu0 0.0
        %3720 = vmatprep.subr.mxu0 0.0
        %3721 = vmatpush2.msra.mxu0 0.0
        %3722 = vmatprep.subr.mxu0 0.0
        %3723 = vmatpush2.msra.mxu0 0.0
        %3724 = vmatprep.subr.mxu0 0.0
        %3725 = vmatpush2.msra.mxu0 0.0
        %3726 = vmatprep.subr.mxu0 0.0
        %3727 = vmatpush2.msra.mxu0 0.0
        %3728 = vmatprep.subr.mxu0 0.0
        %3729 = vmatpush2.msra.mxu0 0.0
        %3730 = vmatprep.subr.mxu0 0.0
        %3731 = vmatpush2.msra.mxu0 0.0
        %3732 = vmatprep.subr.mxu0 0.0
        %3733 = vmatpush2.msra.mxu0 0.0
        %3734 = vmatprep.mubr.f32.mxu0 0.0
        %v3735 = vand.u32 %v3439, 4294901760
        %v3736 = vsub.f32 %v3439, %v3735
        %v3737 = vand.u32 %v3736, 4294901760
        %3738 = vmatmul.mubr.f32.gmra.mxu0 %v3737
        %v3739 = vpop.f32.mrf.mxu0
        %v3740 = vadd.f32 %v3666, %v3739
        %v3741 = vpop.f32.mrf.mxu0
        %3742 = vdwg.mxu0
        %3743 = vmatprep.subr.mxu0 0.0
        %3744 = vmatpush1.msra.mxu0 0.0
        %3745 = vmatprep.subr.mxu0 0.0
        %3746 = vmatpush1.msra.mxu0 0.0
        %3747 = vmatprep.subr.mxu0 0.0
        %3748 = vmatpush1.msra.mxu0 0.0
        %3749 = vmatprep.subr.mxu0 0.0
        %3750 = vmatpush1.msra.mxu0 0.0
        %3751 = vmatprep.subr.mxu0 0.0
        %3752 = vmatpush1.msra.mxu0 0.0
        %3753 = vmatprep.subr.mxu0 0.0
        %3754 = vmatpush1.msra.mxu0 0.0
        %3755 = vmatprep.subr.mxu0 0.0
        %3756 = vmatpush1.msra.mxu0 0.0
        %3757 = vmatprep.subr.mxu0 0.0
        %3758 = vmatpush1.msra.mxu0 0.0
        %3759 = vmatprep.subr.mxu0 0.0
        %3760 = vmatpush1.msra.mxu0 0.0
        %3761 = vmatprep.subr.mxu0 0.0
        %3762 = vmatpush1.msra.mxu0 0.0
        %3763 = vmatprep.subr.mxu0 0.0
        %3764 = vmatpush1.msra.mxu0 0.0
        %3765 = vmatprep.subr.mxu0 0.0
        %3766 = vmatpush1.msra.mxu0 0.0
        %3767 = vmatprep.subr.mxu0 0.0
        %3768 = vmatpush1.msra.mxu0 0.0
        %3769 = vmatprep.subr.mxu0 0.0
        %3770 = vmatpush1.msra.mxu0 0.0
        %3771 = vmatprep.subr.mxu0 0.0
        %3772 = vmatpush1.msra.mxu0 0.0
        %3773 = vmatprep.subr.mxu0 0.0
        %v3774 = vand.u32 %v3441, 4294901760
        %v3775 = vsub.f32 %v3441, %v3774
        %v3776 = vand.u32 %v3775, 4294901760
        %3777 = vmatpush1.msra.mxu0 %v3776
        %3778 = vmatprep.subr.mxu0 0.0
        %3779 = vmatpush2.msra.mxu0 0.0
        %3780 = vmatprep.subr.mxu0 0.0
        %3781 = vmatpush2.msra.mxu0 0.0
        %3782 = vmatprep.subr.mxu0 0.0
        %3783 = vmatpush2.msra.mxu0 0.0
        %3784 = vmatprep.subr.mxu0 0.0
        %3785 = vmatpush2.msra.mxu0 0.0
        %3786 = vmatprep.subr.mxu0 0.0
        %3787 = vmatpush2.msra.mxu0 0.0
        %3788 = vmatprep.subr.mxu0 0.0
        %3789 = vmatpush2.msra.mxu0 0.0
        %3790 = vmatprep.subr.mxu0 0.0
        %3791 = vmatpush2.msra.mxu0 0.0
        %3792 = vmatprep.subr.mxu0 0.0
        %3793 = vmatpush2.msra.mxu0 0.0
        %3794 = vmatprep.subr.mxu0 0.0
        %3795 = vmatpush2.msra.mxu0 0.0
        %3796 = vmatprep.subr.mxu0 0.0
        %3797 = vmatpush2.msra.mxu0 0.0
        %3798 = vmatprep.subr.mxu0 0.0
        %3799 = vmatpush2.msra.mxu0 0.0
        %3800 = vmatprep.subr.mxu0 0.0
        %3801 = vmatpush2.msra.mxu0 0.0
        %3802 = vmatprep.subr.mxu0 0.0
        %3803 = vmatpush2.msra.mxu0 0.0
        %3804 = vmatprep.subr.mxu0 0.0
        %3805 = vmatpush2.msra.mxu0 0.0
        %3806 = vmatprep.subr.mxu0 0.0
        %3807 = vmatpush2.msra.mxu0 0.0
        %3808 = vmatprep.subr.mxu0 0.0
        %3809 = vmatpush2.msra.mxu0 0.0
        %3810 = vmatprep.mubr.f32.mxu0 0.0
        %v3811 = vand.u32 %v3439, 4294901760
        %3812 = vmatmul.mubr.f32.gmra.mxu0 %v3811
        %v3813 = vpop.f32.mrf.mxu0
        %v3814 = vadd.f32 %v3740, %v3813
        %v3815 = vpop.f32.mrf.mxu0
        %3816 = vdwg.mxu0
        %3817 = vmatprep.subr.mxu0 0.0
        %3818 = vmatpush1.msra.mxu0 0.0
        %3819 = vmatprep.subr.mxu0 0.0
        %3820 = vmatpush1.msra.mxu0 0.0
        %3821 = vmatprep.subr.mxu0 0.0
        %3822 = vmatpush1.msra.mxu0 0.0
        %3823 = vmatprep.subr.mxu0 0.0
        %3824 = vmatpush1.msra.mxu0 0.0
        %3825 = vmatprep.subr.mxu0 0.0
        %3826 = vmatpush1.msra.mxu0 0.0
        %3827 = vmatprep.subr.mxu0 0.0
        %3828 = vmatpush1.msra.mxu0 0.0
        %3829 = vmatprep.subr.mxu0 0.0
        %3830 = vmatpush1.msra.mxu0 0.0
        %3831 = vmatprep.subr.mxu0 0.0
        %3832 = vmatpush1.msra.mxu0 0.0
        %3833 = vmatprep.subr.mxu0 0.0
        %3834 = vmatpush1.msra.mxu0 0.0
        %3835 = vmatprep.subr.mxu0 0.0
        %3836 = vmatpush1.msra.mxu0 0.0
        %3837 = vmatprep.subr.mxu0 0.0
        %3838 = vmatpush1.msra.mxu0 0.0
        %3839 = vmatprep.subr.mxu0 0.0
        %3840 = vmatpush1.msra.mxu0 0.0
        %3841 = vmatprep.subr.mxu0 0.0
        %3842 = vmatpush1.msra.mxu0 0.0
        %3843 = vmatprep.subr.mxu0 0.0
        %3844 = vmatpush1.msra.mxu0 0.0
        %3845 = vmatprep.subr.mxu0 0.0
        %3846 = vmatpush1.msra.mxu0 0.0
        %3847 = vmatprep.subr.mxu0 0.0
        %v3848 = vand.u32 %v3441, 4294901760
        %3849 = vmatpush1.msra.mxu0 %v3848
        %3850 = vmatprep.subr.mxu0 0.0
        %3851 = vmatpush2.msra.mxu0 0.0
        %3852 = vmatprep.subr.mxu0 0.0
        %3853 = vmatpush2.msra.mxu0 0.0
        %3854 = vmatprep.subr.mxu0 0.0
        %3855 = vmatpush2.msra.mxu0 0.0
        %3856 = vmatprep.subr.mxu0 0.0
        %3857 = vmatpush2.msra.mxu0 0.0
        %3858 = vmatprep.subr.mxu0 0.0
        %3859 = vmatpush2.msra.mxu0 0.0
        %3860 = vmatprep.subr.mxu0 0.0
        %3861 = vmatpush2.msra.mxu0 0.0
        %3862 = vmatprep.subr.mxu0 0.0
        %3863 = vmatpush2.msra.mxu0 0.0
        %3864 = vmatprep.subr.mxu0 0.0
        %3865 = vmatpush2.msra.mxu0 0.0
        %3866 = vmatprep.subr.mxu0 0.0
        %3867 = vmatpush2.msra.mxu0 0.0
        %3868 = vmatprep.subr.mxu0 0.0
        %3869 = vmatpush2.msra.mxu0 0.0
        %3870 = vmatprep.subr.mxu0 0.0
        %3871 = vmatpush2.msra.mxu0 0.0
        %3872 = vmatprep.subr.mxu0 0.0
        %3873 = vmatpush2.msra.mxu0 0.0
        %3874 = vmatprep.subr.mxu0 0.0
        %3875 = vmatpush2.msra.mxu0 0.0
        %3876 = vmatprep.subr.mxu0 0.0
        %3877 = vmatpush2.msra.mxu0 0.0
        %3878 = vmatprep.subr.mxu0 0.0
        %3879 = vmatpush2.msra.mxu0 0.0
        %3880 = vmatprep.subr.mxu0 0.0
        %3881 = vmatpush2.msra.mxu0 0.0
        %3882 = vmatprep.mubr.f32.mxu0 0.0
        %v3883 = vand.u32 %v3439, 4294901760
        %3884 = vmatmul.mubr.f32.gmra.mxu0 %v3883
        %v3885 = vpop.f32.mrf.mxu0
        %v3886 = vadd.f32 %v3814, %v3885
        %v3887 = vpop.f32.mrf.mxu0
        %3888 = vdwg.mxu0
        %v3889 = vmax.f32 %v3886, 0.0
        %v3890 = vld [vmem:[%s6] sm:$0xff]
        %v3891 = vld [vmem:[%s6 + $0x8] sm:$0xff]
        %v3892 = vld [vmem:[%s6 + $0x10] sm:$0xff]
        %v3893 = vld [vmem:[%s6 + $0x18] sm:$0xff]
        %s3894 = scalar_lea.vmem %s6, 32
        %v3895 = vld [vmem:[%s3894] sm:$0xff]
        %v3896 = vld [vmem:[%s3894 + $0x8] sm:$0xff]
        %v3897 = vld [vmem:[%s3894 + $0x10] sm:$0xff]
        %v3898 = vld [vmem:[%s3894 + $0x18] sm:$0xff]
        %v3900 = vrot.slane %v3889, 1
        %v3901 = vsel %vm798, %v3900, 0
        %3903 = vmatprep.subr.mxu0 0.0
        %3904 = vmatpush1.msra.mxu0 0.0
        %3905 = vmatprep.subr.mxu0 0.0
        %3906 = vmatpush1.msra.mxu0 0.0
        %3907 = vmatprep.subr.mxu0 0.0
        %3908 = vmatpush1.msra.mxu0 0.0
        %3909 = vmatprep.subr.mxu0 0.0
        %3910 = vmatpush1.msra.mxu0 0.0
        %3911 = vmatprep.subr.mxu0 0.0
        %3912 = vmatpush1.msra.mxu0 0.0
        %3913 = vmatprep.subr.mxu0 0.0
        %3914 = vmatpush1.msra.mxu0 0.0
        %3915 = vmatprep.subr.mxu0 0.0
        %3916 = vmatpush1.msra.mxu0 0.0
        %3917 = vmatprep.subr.mxu0 0.0
        %3918 = vmatpush1.msra.mxu0 0.0
        %3919 = vmatprep.subr.mxu0 0.0
        %3920 = vmatpush1.msra.mxu0 0.0
        %3921 = vmatprep.subr.mxu0 0.0
        %3922 = vmatpush1.msra.mxu0 0.0
        %3923 = vmatprep.subr.mxu0 0.0
        %3924 = vmatpush1.msra.mxu0 0.0
        %3925 = vmatprep.subr.mxu0 0.0
        %3926 = vmatpush1.msra.mxu0 0.0
        %3927 = vmatprep.subr.mxu0 0.0
        %v3928 = vand.u32 %v3898, 4294901760
        %3929 = vmatpush1.msra.mxu0 %v3928
        %3930 = vmatprep.subr.mxu0 0.0
        %v3931 = vand.u32 %v3897, 4294901760
        %3932 = vmatpush1.msra.mxu0 %v3931
        %3933 = vmatprep.subr.mxu0 0.0
        %v3934 = vand.u32 %v3896, 4294901760
        %3935 = vmatpush1.msra.mxu0 %v3934
        %3936 = vmatprep.subr.mxu0 0.0
        %v3937 = vand.u32 %v3895, 4294901760
        %3938 = vmatpush1.msra.mxu0 %v3937
        %3939 = vmatprep.subr.mxu0 0.0
        %3940 = vmatpush2.msra.mxu0 0.0
        %3941 = vmatprep.subr.mxu0 0.0
        %3942 = vmatpush2.msra.mxu0 0.0
        %3943 = vmatprep.subr.mxu0 0.0
        %3944 = vmatpush2.msra.mxu0 0.0
        %3945 = vmatprep.subr.mxu0 0.0
        %3946 = vmatpush2.msra.mxu0 0.0
        %3947 = vmatprep.subr.mxu0 0.0
        %3948 = vmatpush2.msra.mxu0 0.0
        %3949 = vmatprep.subr.mxu0 0.0
        %3950 = vmatpush2.msra.mxu0 0.0
        %3951 = vmatprep.subr.mxu0 0.0
        %3952 = vmatpush2.msra.mxu0 0.0
        %3953 = vmatprep.subr.mxu0 0.0
        %3954 = vmatpush2.msra.mxu0 0.0
        %3955 = vmatprep.subr.mxu0 0.0
        %3956 = vmatpush2.msra.mxu0 0.0
        %3957 = vmatprep.subr.mxu0 0.0
        %3958 = vmatpush2.msra.mxu0 0.0
        %3959 = vmatprep.subr.mxu0 0.0
        %3960 = vmatpush2.msra.mxu0 0.0
        %3961 = vmatprep.subr.mxu0 0.0
        %3962 = vmatpush2.msra.mxu0 0.0
        %3963 = vmatprep.subr.mxu0 0.0
        %3964 = vmatpush2.msra.mxu0 0.0
        %3965 = vmatprep.subr.mxu0 0.0
        %3966 = vmatpush2.msra.mxu0 0.0
        %3967 = vmatprep.subr.mxu0 0.0
        %3968 = vmatpush2.msra.mxu0 0.0
        %3969 = vmatprep.subr.mxu0 0.0
        %3970 = vmatpush2.msra.mxu0 0.0
        %3971 = vmatprep.mubr.f32.mxu0 0.0
        %v3972 = vand.u32 %v3901, 4294901760
        %v3973 = vsub.f32 %v3901, %v3972
        %v3974 = vand.u32 %v3973, 4294901760
        %v3975 = vsub.f32 %v3973, %v3974
        %v3976 = vand.u32 %v3975, 4294901760
        %3977 = vmatmul.mubr.f32.gmra.mxu0 %v3976
        %v3978 = vpop.f32.mrf.mxu0
        %v3979 = vadd.f32 0.0, %v3978
        %v3980 = vpop.f32.mrf.mxu0
        %3981 = vdwg.mxu0
        %3982 = vmatprep.subr.mxu0 0.0
        %3983 = vmatpush1.msra.mxu0 0.0
        %3984 = vmatprep.subr.mxu0 0.0
        %3985 = vmatpush1.msra.mxu0 0.0
        %3986 = vmatprep.subr.mxu0 0.0
        %3987 = vmatpush1.msra.mxu0 0.0
        %3988 = vmatprep.subr.mxu0 0.0
        %3989 = vmatpush1.msra.mxu0 0.0
        %3990 = vmatprep.subr.mxu0 0.0
        %3991 = vmatpush1.msra.mxu0 0.0
        %3992 = vmatprep.subr.mxu0 0.0
        %3993 = vmatpush1.msra.mxu0 0.0
        %3994 = vmatprep.subr.mxu0 0.0
        %3995 = vmatpush1.msra.mxu0 0.0
        %3996 = vmatprep.subr.mxu0 0.0
        %3997 = vmatpush1.msra.mxu0 0.0
        %3998 = vmatprep.subr.mxu0 0.0
        %3999 = vmatpush1.msra.mxu0 0.0
        %4000 = vmatprep.subr.mxu0 0.0
        %4001 = vmatpush1.msra.mxu0 0.0
        %4002 = vmatprep.subr.mxu0 0.0
        %4003 = vmatpush1.msra.mxu0 0.0
        %4004 = vmatprep.subr.mxu0 0.0
        %4005 = vmatpush1.msra.mxu0 0.0
        %4006 = vmatprep.subr.mxu0 0.0
        %v4007 = vand.u32 %v3898, 4294901760
        %v4008 = vsub.f32 %v3898, %v4007
        %v4009 = vand.u32 %v4008, 4294901760
        %v4010 = vsub.f32 %v4008, %v4009
        %v4011 = vand.u32 %v4010, 4294901760
        %4012 = vmatpush1.msra.mxu0 %v4011
        %4013 = vmatprep.subr.mxu0 0.0
        %v4014 = vand.u32 %v3897, 4294901760
        %v4015 = vsub.f32 %v3897, %v4014
        %v4016 = vand.u32 %v4015, 4294901760
        %v4017 = vsub.f32 %v4015, %v4016
        %v4018 = vand.u32 %v4017, 4294901760
        %4019 = vmatpush1.msra.mxu0 %v4018
        %4020 = vmatprep.subr.mxu0 0.0
        %v4021 = vand.u32 %v3896, 4294901760
        %v4022 = vsub.f32 %v3896, %v4021
        %v4023 = vand.u32 %v4022, 4294901760
        %v4024 = vsub.f32 %v4022, %v4023
        %v4025 = vand.u32 %v4024, 4294901760
        %4026 = vmatpush1.msra.mxu0 %v4025
        %4027 = vmatprep.subr.mxu0 0.0
        %v4028 = vand.u32 %v3895, 4294901760
        %v4029 = vsub.f32 %v3895, %v4028
        %v4030 = vand.u32 %v4029, 4294901760
        %v4031 = vsub.f32 %v4029, %v4030
        %v4032 = vand.u32 %v4031, 4294901760
        %4033 = vmatpush1.msra.mxu0 %v4032
        %4034 = vmatprep.subr.mxu0 0.0
        %4035 = vmatpush2.msra.mxu0 0.0
        %4036 = vmatprep.subr.mxu0 0.0
        %4037 = vmatpush2.msra.mxu0 0.0
        %4038 = vmatprep.subr.mxu0 0.0
        %4039 = vmatpush2.msra.mxu0 0.0
        %4040 = vmatprep.subr.mxu0 0.0
        %4041 = vmatpush2.msra.mxu0 0.0
        %4042 = vmatprep.subr.mxu0 0.0
        %4043 = vmatpush2.msra.mxu0 0.0
        %4044 = vmatprep.subr.mxu0 0.0
        %4045 = vmatpush2.msra.mxu0 0.0
        %4046 = vmatprep.subr.mxu0 0.0
        %4047 = vmatpush2.msra.mxu0 0.0
        %4048 = vmatprep.subr.mxu0 0.0
        %4049 = vmatpush2.msra.mxu0 0.0
        %4050 = vmatprep.subr.mxu0 0.0
        %4051 = vmatpush2.msra.mxu0 0.0
        %4052 = vmatprep.subr.mxu0 0.0
        %4053 = vmatpush2.msra.mxu0 0.0
        %4054 = vmatprep.subr.mxu0 0.0
        %4055 = vmatpush2.msra.mxu0 0.0
        %4056 = vmatprep.subr.mxu0 0.0
        %4057 = vmatpush2.msra.mxu0 0.0
        %4058 = vmatprep.subr.mxu0 0.0
        %4059 = vmatpush2.msra.mxu0 0.0
        %4060 = vmatprep.subr.mxu0 0.0
        %4061 = vmatpush2.msra.mxu0 0.0
        %4062 = vmatprep.subr.mxu0 0.0
        %4063 = vmatpush2.msra.mxu0 0.0
        %4064 = vmatprep.subr.mxu0 0.0
        %4065 = vmatpush2.msra.mxu0 0.0
        %4066 = vmatprep.mubr.f32.mxu0 0.0
        %v4067 = vand.u32 %v3901, 4294901760
        %4068 = vmatmul.mubr.f32.gmra.mxu0 %v4067
        %v4069 = vpop.f32.mrf.mxu0
        %v4070 = vadd.f32 %v3979, %v4069
        %v4071 = vpop.f32.mrf.mxu0
        %4072 = vdwg.mxu0
        %4073 = vmatprep.subr.mxu0 0.0
        %4074 = vmatpush1.msra.mxu0 0.0
        %4075 = vmatprep.subr.mxu0 0.0
        %4076 = vmatpush1.msra.mxu0 0.0
        %4077 = vmatprep.subr.mxu0 0.0
        %4078 = vmatpush1.msra.mxu0 0.0
        %4079 = vmatprep.subr.mxu0 0.0
        %4080 = vmatpush1.msra.mxu0 0.0
        %4081 = vmatprep.subr.mxu0 0.0
        %4082 = vmatpush1.msra.mxu0 0.0
        %4083 = vmatprep.subr.mxu0 0.0
        %4084 = vmatpush1.msra.mxu0 0.0
        %4085 = vmatprep.subr.mxu0 0.0
        %4086 = vmatpush1.msra.mxu0 0.0
        %4087 = vmatprep.subr.mxu0 0.0
        %4088 = vmatpush1.msra.mxu0 0.0
        %4089 = vmatprep.subr.mxu0 0.0
        %4090 = vmatpush1.msra.mxu0 0.0
        %4091 = vmatprep.subr.mxu0 0.0
        %4092 = vmatpush1.msra.mxu0 0.0
        %4093 = vmatprep.subr.mxu0 0.0
        %4094 = vmatpush1.msra.mxu0 0.0
        %4095 = vmatprep.subr.mxu0 0.0
        %4096 = vmatpush1.msra.mxu0 0.0
        %4097 = vmatprep.subr.mxu0 0.0
        %v4098 = vand.u32 %v3898, 4294901760
        %v4099 = vsub.f32 %v3898, %v4098
        %4100 = vmatpush1.msra.mxu0 %v4099
        %4101 = vmatprep.subr.mxu0 0.0
        %v4102 = vand.u32 %v3897, 4294901760
        %v4103 = vsub.f32 %v3897, %v4102
        %4104 = vmatpush1.msra.mxu0 %v4103
        %4105 = vmatprep.subr.mxu0 0.0
        %v4106 = vand.u32 %v3896, 4294901760
        %v4107 = vsub.f32 %v3896, %v4106
        %4108 = vmatpush1.msra.mxu0 %v4107
        %4109 = vmatprep.subr.mxu0 0.0
        %v4110 = vand.u32 %v3895, 4294901760
        %v4111 = vsub.f32 %v3895, %v4110
        %4112 = vmatpush1.msra.mxu0 %v4111
        %4113 = vmatprep.subr.mxu0 0.0
        %4114 = vmatpush2.msra.mxu0 0.0
        %4115 = vmatprep.subr.mxu0 0.0
        %4116 = vmatpush2.msra.mxu0 0.0
        %4117 = vmatprep.subr.mxu0 0.0
        %4118 = vmatpush2.msra.mxu0 0.0
        %4119 = vmatprep.subr.mxu0 0.0
        %4120 = vmatpush2.msra.mxu0 0.0
        %4121 = vmatprep.subr.mxu0 0.0
        %4122 = vmatpush2.msra.mxu0 0.0
        %4123 = vmatprep.subr.mxu0 0.0
        %4124 = vmatpush2.msra.mxu0 0.0
        %4125 = vmatprep.subr.mxu0 0.0
        %4126 = vmatpush2.msra.mxu0 0.0
        %4127 = vmatprep.subr.mxu0 0.0
        %4128 = vmatpush2.msra.mxu0 0.0
        %4129 = vmatprep.subr.mxu0 0.0
        %4130 = vmatpush2.msra.mxu0 0.0
        %4131 = vmatprep.subr.mxu0 0.0
        %4132 = vmatpush2.msra.mxu0 0.0
        %4133 = vmatprep.subr.mxu0 0.0
        %4134 = vmatpush2.msra.mxu0 0.0
        %4135 = vmatprep.subr.mxu0 0.0
        %4136 = vmatpush2.msra.mxu0 0.0
        %4137 = vmatprep.subr.mxu0 0.0
        %4138 = vmatpush2.msra.mxu0 0.0
        %4139 = vmatprep.subr.mxu0 0.0
        %4140 = vmatpush2.msra.mxu0 0.0
        %4141 = vmatprep.subr.mxu0 0.0
        %4142 = vmatpush2.msra.mxu0 0.0
        %4143 = vmatprep.subr.mxu0 0.0
        %4144 = vmatpush2.msra.mxu0 0.0
        %4145 = vmatprep.mubr.f32.mxu0 0.0
        %v4146 = vand.u32 %v3901, 4294901760
        %v4147 = vsub.f32 %v3901, %v4146
        %4148 = vmatmul.mubr.f32.gmra.mxu0 %v4147
        %v4149 = vpop.f32.mrf.mxu0
        %v4150 = vadd.f32 %v4070, %v4149
        %v4151 = vpop.f32.mrf.mxu0
        %4152 = vdwg.mxu0
        %4153 = vmatprep.subr.mxu0 0.0
        %4154 = vmatpush1.msra.mxu0 0.0
        %4155 = vmatprep.subr.mxu0 0.0
        %4156 = vmatpush1.msra.mxu0 0.0
        %4157 = vmatprep.subr.mxu0 0.0
        %4158 = vmatpush1.msra.mxu0 0.0
        %4159 = vmatprep.subr.mxu0 0.0
        %4160 = vmatpush1.msra.mxu0 0.0
        %4161 = vmatprep.subr.mxu0 0.0
        %4162 = vmatpush1.msra.mxu0 0.0
        %4163 = vmatprep.subr.mxu0 0.0
        %4164 = vmatpush1.msra.mxu0 0.0
        %4165 = vmatprep.subr.mxu0 0.0
        %4166 = vmatpush1.msra.mxu0 0.0
        %4167 = vmatprep.subr.mxu0 0.0
        %4168 = vmatpush1.msra.mxu0 0.0
        %4169 = vmatprep.subr.mxu0 0.0
        %4170 = vmatpush1.msra.mxu0 0.0
        %4171 = vmatprep.subr.mxu0 0.0
        %4172 = vmatpush1.msra.mxu0 0.0
        %4173 = vmatprep.subr.mxu0 0.0
        %4174 = vmatpush1.msra.mxu0 0.0
        %4175 = vmatprep.subr.mxu0 0.0
        %4176 = vmatpush1.msra.mxu0 0.0
        %4177 = vmatprep.subr.mxu0 0.0
        %v4178 = vand.u32 %v3898, 4294901760
        %4179 = vmatpush1.msra.mxu0 %v4178
        %4180 = vmatprep.subr.mxu0 0.0
        %v4181 = vand.u32 %v3897, 4294901760
        %4182 = vmatpush1.msra.mxu0 %v4181
        %4183 = vmatprep.subr.mxu0 0.0
        %v4184 = vand.u32 %v3896, 4294901760
        %4185 = vmatpush1.msra.mxu0 %v4184
        %4186 = vmatprep.subr.mxu0 0.0
        %v4187 = vand.u32 %v3895, 4294901760
        %4188 = vmatpush1.msra.mxu0 %v4187
        %4189 = vmatprep.subr.mxu0 0.0
        %4190 = vmatpush2.msra.mxu0 0.0
        %4191 = vmatprep.subr.mxu0 0.0
        %4192 = vmatpush2.msra.mxu0 0.0
        %4193 = vmatprep.subr.mxu0 0.0
        %4194 = vmatpush2.msra.mxu0 0.0
        %4195 = vmatprep.subr.mxu0 0.0
        %4196 = vmatpush2.msra.mxu0 0.0
        %4197 = vmatprep.subr.mxu0 0.0
        %4198 = vmatpush2.msra.mxu0 0.0
        %4199 = vmatprep.subr.mxu0 0.0
        %4200 = vmatpush2.msra.mxu0 0.0
        %4201 = vmatprep.subr.mxu0 0.0
        %4202 = vmatpush2.msra.mxu0 0.0
        %4203 = vmatprep.subr.mxu0 0.0
        %4204 = vmatpush2.msra.mxu0 0.0
        %4205 = vmatprep.subr.mxu0 0.0
        %4206 = vmatpush2.msra.mxu0 0.0
        %4207 = vmatprep.subr.mxu0 0.0
        %4208 = vmatpush2.msra.mxu0 0.0
        %4209 = vmatprep.subr.mxu0 0.0
        %4210 = vmatpush2.msra.mxu0 0.0
        %4211 = vmatprep.subr.mxu0 0.0
        %4212 = vmatpush2.msra.mxu0 0.0
        %4213 = vmatprep.subr.mxu0 0.0
        %4214 = vmatpush2.msra.mxu0 0.0
        %4215 = vmatprep.subr.mxu0 0.0
        %4216 = vmatpush2.msra.mxu0 0.0
        %4217 = vmatprep.subr.mxu0 0.0
        %4218 = vmatpush2.msra.mxu0 0.0
        %4219 = vmatprep.subr.mxu0 0.0
        %4220 = vmatpush2.msra.mxu0 0.0
        %4221 = vmatprep.mubr.f32.mxu0 0.0
        %v4222 = vand.u32 %v3901, 4294901760
        %v4223 = vsub.f32 %v3901, %v4222
        %v4224 = vand.u32 %v4223, 4294901760
        %4225 = vmatmul.mubr.f32.gmra.mxu0 %v4224
        %v4226 = vpop.f32.mrf.mxu0
        %v4227 = vadd.f32 %v4150, %v4226
        %v4228 = vpop.f32.mrf.mxu0
        %4229 = vdwg.mxu0
        %4230 = vmatprep.subr.mxu0 0.0
        %4231 = vmatpush1.msra.mxu0 0.0
        %4232 = vmatprep.subr.mxu0 0.0
        %4233 = vmatpush1.msra.mxu0 0.0
        %4234 = vmatprep.subr.mxu0 0.0
        %4235 = vmatpush1.msra.mxu0 0.0
        %4236 = vmatprep.subr.mxu0 0.0
        %4237 = vmatpush1.msra.mxu0 0.0
        %4238 = vmatprep.subr.mxu0 0.0
        %4239 = vmatpush1.msra.mxu0 0.0
        %4240 = vmatprep.subr.mxu0 0.0
        %4241 = vmatpush1.msra.mxu0 0.0
        %4242 = vmatprep.subr.mxu0 0.0
        %4243 = vmatpush1.msra.mxu0 0.0
        %4244 = vmatprep.subr.mxu0 0.0
        %4245 = vmatpush1.msra.mxu0 0.0
        %4246 = vmatprep.subr.mxu0 0.0
        %4247 = vmatpush1.msra.mxu0 0.0
        %4248 = vmatprep.subr.mxu0 0.0
        %4249 = vmatpush1.msra.mxu0 0.0
        %4250 = vmatprep.subr.mxu0 0.0
        %4251 = vmatpush1.msra.mxu0 0.0
        %4252 = vmatprep.subr.mxu0 0.0
        %4253 = vmatpush1.msra.mxu0 0.0
        %4254 = vmatprep.subr.mxu0 0.0
        %v4255 = vand.u32 %v3898, 4294901760
        %v4256 = vsub.f32 %v3898, %v4255
        %v4257 = vand.u32 %v4256, 4294901760
        %4258 = vmatpush1.msra.mxu0 %v4257
        %4259 = vmatprep.subr.mxu0 0.0
        %v4260 = vand.u32 %v3897, 4294901760
        %v4261 = vsub.f32 %v3897, %v4260
        %v4262 = vand.u32 %v4261, 4294901760
        %4263 = vmatpush1.msra.mxu0 %v4262
        %4264 = vmatprep.subr.mxu0 0.0
        %v4265 = vand.u32 %v3896, 4294901760
        %v4266 = vsub.f32 %v3896, %v4265
        %v4267 = vand.u32 %v4266, 4294901760
        %4268 = vmatpush1.msra.mxu0 %v4267
        %4269 = vmatprep.subr.mxu0 0.0
        %v4270 = vand.u32 %v3895, 4294901760
        %v4271 = vsub.f32 %v3895, %v4270
        %v4272 = vand.u32 %v4271, 4294901760
        %4273 = vmatpush1.msra.mxu0 %v4272
        %4274 = vmatprep.subr.mxu0 0.0
        %4275 = vmatpush2.msra.mxu0 0.0
        %4276 = vmatprep.subr.mxu0 0.0
        %4277 = vmatpush2.msra.mxu0 0.0
        %4278 = vmatprep.subr.mxu0 0.0
        %4279 = vmatpush2.msra.mxu0 0.0
        %4280 = vmatprep.subr.mxu0 0.0
        %4281 = vmatpush2.msra.mxu0 0.0
        %4282 = vmatprep.subr.mxu0 0.0
        %4283 = vmatpush2.msra.mxu0 0.0
        %4284 = vmatprep.subr.mxu0 0.0
        %4285 = vmatpush2.msra.mxu0 0.0
        %4286 = vmatprep.subr.mxu0 0.0
        %4287 = vmatpush2.msra.mxu0 0.0
        %4288 = vmatprep.subr.mxu0 0.0
        %4289 = vmatpush2.msra.mxu0 0.0
        %4290 = vmatprep.subr.mxu0 0.0
        %4291 = vmatpush2.msra.mxu0 0.0
        %4292 = vmatprep.subr.mxu0 0.0
        %4293 = vmatpush2.msra.mxu0 0.0
        %4294 = vmatprep.subr.mxu0 0.0
        %4295 = vmatpush2.msra.mxu0 0.0
        %4296 = vmatprep.subr.mxu0 0.0
        %4297 = vmatpush2.msra.mxu0 0.0
        %4298 = vmatprep.subr.mxu0 0.0
        %4299 = vmatpush2.msra.mxu0 0.0
        %4300 = vmatprep.subr.mxu0 0.0
        %4301 = vmatpush2.msra.mxu0 0.0
        %4302 = vmatprep.subr.mxu0 0.0
        %4303 = vmatpush2.msra.mxu0 0.0
        %4304 = vmatprep.subr.mxu0 0.0
        %4305 = vmatpush2.msra.mxu0 0.0
        %4306 = vmatprep.mubr.f32.mxu0 0.0
        %v4307 = vand.u32 %v3901, 4294901760
        %4308 = vmatmul.mubr.f32.gmra.mxu0 %v4307
        %v4309 = vpop.f32.mrf.mxu0
        %v4310 = vadd.f32 %v4227, %v4309
        %v4311 = vpop.f32.mrf.mxu0
        %4312 = vdwg.mxu0
        %4313 = vmatprep.subr.mxu0 0.0
        %4314 = vmatpush1.msra.mxu0 0.0
        %4315 = vmatprep.subr.mxu0 0.0
        %4316 = vmatpush1.msra.mxu0 0.0
        %4317 = vmatprep.subr.mxu0 0.0
        %4318 = vmatpush1.msra.mxu0 0.0
        %4319 = vmatprep.subr.mxu0 0.0
        %4320 = vmatpush1.msra.mxu0 0.0
        %4321 = vmatprep.subr.mxu0 0.0
        %4322 = vmatpush1.msra.mxu0 0.0
        %4323 = vmatprep.subr.mxu0 0.0
        %4324 = vmatpush1.msra.mxu0 0.0
        %4325 = vmatprep.subr.mxu0 0.0
        %4326 = vmatpush1.msra.mxu0 0.0
        %4327 = vmatprep.subr.mxu0 0.0
        %4328 = vmatpush1.msra.mxu0 0.0
        %4329 = vmatprep.subr.mxu0 0.0
        %4330 = vmatpush1.msra.mxu0 0.0
        %4331 = vmatprep.subr.mxu0 0.0
        %4332 = vmatpush1.msra.mxu0 0.0
        %4333 = vmatprep.subr.mxu0 0.0
        %4334 = vmatpush1.msra.mxu0 0.0
        %4335 = vmatprep.subr.mxu0 0.0
        %4336 = vmatpush1.msra.mxu0 0.0
        %4337 = vmatprep.subr.mxu0 0.0
        %v4338 = vand.u32 %v3898, 4294901760
        %4339 = vmatpush1.msra.mxu0 %v4338
        %4340 = vmatprep.subr.mxu0 0.0
        %v4341 = vand.u32 %v3897, 4294901760
        %4342 = vmatpush1.msra.mxu0 %v4341
        %4343 = vmatprep.subr.mxu0 0.0
        %v4344 = vand.u32 %v3896, 4294901760
        %4345 = vmatpush1.msra.mxu0 %v4344
        %4346 = vmatprep.subr.mxu0 0.0
        %v4347 = vand.u32 %v3895, 4294901760
        %4348 = vmatpush1.msra.mxu0 %v4347
        %4349 = vmatprep.subr.mxu0 0.0
        %4350 = vmatpush2.msra.mxu0 0.0
        %4351 = vmatprep.subr.mxu0 0.0
        %4352 = vmatpush2.msra.mxu0 0.0
        %4353 = vmatprep.subr.mxu0 0.0
        %4354 = vmatpush2.msra.mxu0 0.0
        %4355 = vmatprep.subr.mxu0 0.0
        %4356 = vmatpush2.msra.mxu0 0.0
        %4357 = vmatprep.subr.mxu0 0.0
        %4358 = vmatpush2.msra.mxu0 0.0
        %4359 = vmatprep.subr.mxu0 0.0
        %4360 = vmatpush2.msra.mxu0 0.0
        %4361 = vmatprep.subr.mxu0 0.0
        %4362 = vmatpush2.msra.mxu0 0.0
        %4363 = vmatprep.subr.mxu0 0.0
        %4364 = vmatpush2.msra.mxu0 0.0
        %4365 = vmatprep.subr.mxu0 0.0
        %4366 = vmatpush2.msra.mxu0 0.0
        %4367 = vmatprep.subr.mxu0 0.0
        %4368 = vmatpush2.msra.mxu0 0.0
        %4369 = vmatprep.subr.mxu0 0.0
        %4370 = vmatpush2.msra.mxu0 0.0
        %4371 = vmatprep.subr.mxu0 0.0
        %4372 = vmatpush2.msra.mxu0 0.0
        %4373 = vmatprep.subr.mxu0 0.0
        %4374 = vmatpush2.msra.mxu0 0.0
        %4375 = vmatprep.subr.mxu0 0.0
        %4376 = vmatpush2.msra.mxu0 0.0
        %4377 = vmatprep.subr.mxu0 0.0
        %4378 = vmatpush2.msra.mxu0 0.0
        %4379 = vmatprep.subr.mxu0 0.0
        %4380 = vmatpush2.msra.mxu0 0.0
        %4381 = vmatprep.mubr.f32.mxu0 0.0
        %v4382 = vand.u32 %v3901, 4294901760
        %4383 = vmatmul.mubr.f32.gmra.mxu0 %v4382
        %v4384 = vpop.f32.mrf.mxu0
        %v4385 = vadd.f32 %v4310, %v4384
        %v4386 = vpop.f32.mrf.mxu0
        %4387 = vdwg.mxu0
        %v4388 = vsel %vm798, %v3889, 0
        %4390 = vmatprep.subr.mxu0 0.0
        %4391 = vmatpush1.msra.mxu0 0.0
        %4392 = vmatprep.subr.mxu0 0.0
        %4393 = vmatpush1.msra.mxu0 0.0
        %4394 = vmatprep.subr.mxu0 0.0
        %4395 = vmatpush1.msra.mxu0 0.0
        %4396 = vmatprep.subr.mxu0 0.0
        %4397 = vmatpush1.msra.mxu0 0.0
        %4398 = vmatprep.subr.mxu0 0.0
        %4399 = vmatpush1.msra.mxu0 0.0
        %4400 = vmatprep.subr.mxu0 0.0
        %4401 = vmatpush1.msra.mxu0 0.0
        %4402 = vmatprep.subr.mxu0 0.0
        %4403 = vmatpush1.msra.mxu0 0.0
        %4404 = vmatprep.subr.mxu0 0.0
        %4405 = vmatpush1.msra.mxu0 0.0
        %4406 = vmatprep.subr.mxu0 0.0
        %4407 = vmatpush1.msra.mxu0 0.0
        %4408 = vmatprep.subr.mxu0 0.0
        %4409 = vmatpush1.msra.mxu0 0.0
        %4410 = vmatprep.subr.mxu0 0.0
        %4411 = vmatpush1.msra.mxu0 0.0
        %4412 = vmatprep.subr.mxu0 0.0
        %4413 = vmatpush1.msra.mxu0 0.0
        %4414 = vmatprep.subr.mxu0 0.0
        %v4415 = vand.u32 %v3893, 4294901760
        %4416 = vmatpush1.msra.mxu0 %v4415
        %4417 = vmatprep.subr.mxu0 0.0
        %v4418 = vand.u32 %v3892, 4294901760
        %4419 = vmatpush1.msra.mxu0 %v4418
        %4420 = vmatprep.subr.mxu0 0.0
        %v4421 = vand.u32 %v3891, 4294901760
        %4422 = vmatpush1.msra.mxu0 %v4421
        %4423 = vmatprep.subr.mxu0 0.0
        %v4424 = vand.u32 %v3890, 4294901760
        %4425 = vmatpush1.msra.mxu0 %v4424
        %4426 = vmatprep.subr.mxu0 0.0
        %4427 = vmatpush2.msra.mxu0 0.0
        %4428 = vmatprep.subr.mxu0 0.0
        %4429 = vmatpush2.msra.mxu0 0.0
        %4430 = vmatprep.subr.mxu0 0.0
        %4431 = vmatpush2.msra.mxu0 0.0
        %4432 = vmatprep.subr.mxu0 0.0
        %4433 = vmatpush2.msra.mxu0 0.0
        %4434 = vmatprep.subr.mxu0 0.0
        %4435 = vmatpush2.msra.mxu0 0.0
        %4436 = vmatprep.subr.mxu0 0.0
        %4437 = vmatpush2.msra.mxu0 0.0
        %4438 = vmatprep.subr.mxu0 0.0
        %4439 = vmatpush2.msra.mxu0 0.0
        %4440 = vmatprep.subr.mxu0 0.0
        %4441 = vmatpush2.msra.mxu0 0.0
        %4442 = vmatprep.subr.mxu0 0.0
        %4443 = vmatpush2.msra.mxu0 0.0
        %4444 = vmatprep.subr.mxu0 0.0
        %4445 = vmatpush2.msra.mxu0 0.0
        %4446 = vmatprep.subr.mxu0 0.0
        %4447 = vmatpush2.msra.mxu0 0.0
        %4448 = vmatprep.subr.mxu0 0.0
        %4449 = vmatpush2.msra.mxu0 0.0
        %4450 = vmatprep.subr.mxu0 0.0
        %4451 = vmatpush2.msra.mxu0 0.0
        %4452 = vmatprep.subr.mxu0 0.0
        %4453 = vmatpush2.msra.mxu0 0.0
        %4454 = vmatprep.subr.mxu0 0.0
        %4455 = vmatpush2.msra.mxu0 0.0
        %4456 = vmatprep.subr.mxu0 0.0
        %4457 = vmatpush2.msra.mxu0 0.0
        %4458 = vmatprep.mubr.f32.mxu0 0.0
        %v4459 = vand.u32 %v4388, 4294901760
        %v4460 = vsub.f32 %v4388, %v4459
        %v4461 = vand.u32 %v4460, 4294901760
        %v4462 = vsub.f32 %v4460, %v4461
        %v4463 = vand.u32 %v4462, 4294901760
        %4464 = vmatmul.mubr.f32.gmra.mxu0 %v4463
        %v4465 = vpop.f32.mrf.mxu0
        %v4466 = vadd.f32 %v4385, %v4465
        %v4467 = vpop.f32.mrf.mxu0
        %4468 = vdwg.mxu0
        %4469 = vmatprep.subr.mxu0 0.0
        %4470 = vmatpush1.msra.mxu0 0.0
        %4471 = vmatprep.subr.mxu0 0.0
        %4472 = vmatpush1.msra.mxu0 0.0
        %4473 = vmatprep.subr.mxu0 0.0
        %4474 = vmatpush1.msra.mxu0 0.0
        %4475 = vmatprep.subr.mxu0 0.0
        %4476 = vmatpush1.msra.mxu0 0.0
        %4477 = vmatprep.subr.mxu0 0.0
        %4478 = vmatpush1.msra.mxu0 0.0
        %4479 = vmatprep.subr.mxu0 0.0
        %4480 = vmatpush1.msra.mxu0 0.0
        %4481 = vmatprep.subr.mxu0 0.0
        %4482 = vmatpush1.msra.mxu0 0.0
        %4483 = vmatprep.subr.mxu0 0.0
        %4484 = vmatpush1.msra.mxu0 0.0
        %4485 = vmatprep.subr.mxu0 0.0
        %4486 = vmatpush1.msra.mxu0 0.0
        %4487 = vmatprep.subr.mxu0 0.0
        %4488 = vmatpush1.msra.mxu0 0.0
        %4489 = vmatprep.subr.mxu0 0.0
        %4490 = vmatpush1.msra.mxu0 0.0
        %4491 = vmatprep.subr.mxu0 0.0
        %4492 = vmatpush1.msra.mxu0 0.0
        %4493 = vmatprep.subr.mxu0 0.0
        %v4494 = vand.u32 %v3893, 4294901760
        %v4495 = vsub.f32 %v3893, %v4494
        %v4496 = vand.u32 %v4495, 4294901760
        %v4497 = vsub.f32 %v4495, %v4496
        %v4498 = vand.u32 %v4497, 4294901760
        %4499 = vmatpush1.msra.mxu0 %v4498
        %4500 = vmatprep.subr.mxu0 0.0
        %v4501 = vand.u32 %v3892, 4294901760
        %v4502 = vsub.f32 %v3892, %v4501
        %v4503 = vand.u32 %v4502, 4294901760
        %v4504 = vsub.f32 %v4502, %v4503
        %v4505 = vand.u32 %v4504, 4294901760
        %4506 = vmatpush1.msra.mxu0 %v4505
        %4507 = vmatprep.subr.mxu0 0.0
        %v4508 = vand.u32 %v3891, 4294901760
        %v4509 = vsub.f32 %v3891, %v4508
        %v4510 = vand.u32 %v4509, 4294901760
        %v4511 = vsub.f32 %v4509, %v4510
        %v4512 = vand.u32 %v4511, 4294901760
        %4513 = vmatpush1.msra.mxu0 %v4512
        %4514 = vmatprep.subr.mxu0 0.0
        %v4515 = vand.u32 %v3890, 4294901760
        %v4516 = vsub.f32 %v3890, %v4515
        %v4517 = vand.u32 %v4516, 4294901760
        %v4518 = vsub.f32 %v4516, %v4517
        %v4519 = vand.u32 %v4518, 4294901760
        %4520 = vmatpush1.msra.mxu0 %v4519
        %4521 = vmatprep.subr.mxu0 0.0
        %4522 = vmatpush2.msra.mxu0 0.0
        %4523 = vmatprep.subr.mxu0 0.0
        %4524 = vmatpush2.msra.mxu0 0.0
        %4525 = vmatprep.subr.mxu0 0.0
        %4526 = vmatpush2.msra.mxu0 0.0
        %4527 = vmatprep.subr.mxu0 0.0
        %4528 = vmatpush2.msra.mxu0 0.0
        %4529 = vmatprep.subr.mxu0 0.0
        %4530 = vmatpush2.msra.mxu0 0.0
        %4531 = vmatprep.subr.mxu0 0.0
        %4532 = vmatpush2.msra.mxu0 0.0
        %4533 = vmatprep.subr.mxu0 0.0
        %4534 = vmatpush2.msra.mxu0 0.0
        %4535 = vmatprep.subr.mxu0 0.0
        %4536 = vmatpush2.msra.mxu0 0.0
        %4537 = vmatprep.subr.mxu0 0.0
        %4538 = vmatpush2.msra.mxu0 0.0
        %4539 = vmatprep.subr.mxu0 0.0
        %4540 = vmatpush2.msra.mxu0 0.0
        %4541 = vmatprep.subr.mxu0 0.0
        %4542 = vmatpush2.msra.mxu0 0.0
        %4543 = vmatprep.subr.mxu0 0.0
        %4544 = vmatpush2.msra.mxu0 0.0
        %4545 = vmatprep.subr.mxu0 0.0
        %4546 = vmatpush2.msra.mxu0 0.0
        %4547 = vmatprep.subr.mxu0 0.0
        %4548 = vmatpush2.msra.mxu0 0.0
        %4549 = vmatprep.subr.mxu0 0.0
        %4550 = vmatpush2.msra.mxu0 0.0
        %4551 = vmatprep.subr.mxu0 0.0
        %4552 = vmatpush2.msra.mxu0 0.0
        %4553 = vmatprep.mubr.f32.mxu0 0.0
        %v4554 = vand.u32 %v4388, 4294901760
        %4555 = vmatmul.mubr.f32.gmra.mxu0 %v4554
        %v4556 = vpop.f32.mrf.mxu0
        %v4557 = vadd.f32 %v4466, %v4556
        %v4558 = vpop.f32.mrf.mxu0
        %4559 = vdwg.mxu0
        %4560 = vmatprep.subr.mxu0 0.0
        %4561 = vmatpush1.msra.mxu0 0.0
        %4562 = vmatprep.subr.mxu0 0.0
        %4563 = vmatpush1.msra.mxu0 0.0
        %4564 = vmatprep.subr.mxu0 0.0
        %4565 = vmatpush1.msra.mxu0 0.0
        %4566 = vmatprep.subr.mxu0 0.0
        %4567 = vmatpush1.msra.mxu0 0.0
        %4568 = vmatprep.subr.mxu0 0.0
        %4569 = vmatpush1.msra.mxu0 0.0
        %4570 = vmatprep.subr.mxu0 0.0
        %4571 = vmatpush1.msra.mxu0 0.0
        %4572 = vmatprep.subr.mxu0 0.0
        %4573 = vmatpush1.msra.mxu0 0.0
        %4574 = vmatprep.subr.mxu0 0.0
        %4575 = vmatpush1.msra.mxu0 0.0
        %4576 = vmatprep.subr.mxu0 0.0
        %4577 = vmatpush1.msra.mxu0 0.0
        %4578 = vmatprep.subr.mxu0 0.0
        %4579 = vmatpush1.msra.mxu0 0.0
        %4580 = vmatprep.subr.mxu0 0.0
        %4581 = vmatpush1.msra.mxu0 0.0
        %4582 = vmatprep.subr.mxu0 0.0
        %4583 = vmatpush1.msra.mxu0 0.0
        %4584 = vmatprep.subr.mxu0 0.0
        %v4585 = vand.u32 %v3893, 4294901760
        %v4586 = vsub.f32 %v3893, %v4585
        %4587 = vmatpush1.msra.mxu0 %v4586
        %4588 = vmatprep.subr.mxu0 0.0
        %v4589 = vand.u32 %v3892, 4294901760
        %v4590 = vsub.f32 %v3892, %v4589
        %4591 = vmatpush1.msra.mxu0 %v4590
        %4592 = vmatprep.subr.mxu0 0.0
        %v4593 = vand.u32 %v3891, 4294901760
        %v4594 = vsub.f32 %v3891, %v4593
        %4595 = vmatpush1.msra.mxu0 %v4594
        %4596 = vmatprep.subr.mxu0 0.0
        %v4597 = vand.u32 %v3890, 4294901760
        %v4598 = vsub.f32 %v3890, %v4597
        %4599 = vmatpush1.msra.mxu0 %v4598
        %4600 = vmatprep.subr.mxu0 0.0
        %4601 = vmatpush2.msra.mxu0 0.0
        %4602 = vmatprep.subr.mxu0 0.0
        %4603 = vmatpush2.msra.mxu0 0.0
        %4604 = vmatprep.subr.mxu0 0.0
        %4605 = vmatpush2.msra.mxu0 0.0
        %4606 = vmatprep.subr.mxu0 0.0
        %4607 = vmatpush2.msra.mxu0 0.0
        %4608 = vmatprep.subr.mxu0 0.0
        %4609 = vmatpush2.msra.mxu0 0.0
        %4610 = vmatprep.subr.mxu0 0.0
        %4611 = vmatpush2.msra.mxu0 0.0
        %4612 = vmatprep.subr.mxu0 0.0
        %4613 = vmatpush2.msra.mxu0 0.0
        %4614 = vmatprep.subr.mxu0 0.0
        %4615 = vmatpush2.msra.mxu0 0.0
        %4616 = vmatprep.subr.mxu0 0.0
        %4617 = vmatpush2.msra.mxu0 0.0
        %4618 = vmatprep.subr.mxu0 0.0
        %4619 = vmatpush2.msra.mxu0 0.0
        %4620 = vmatprep.subr.mxu0 0.0
        %4621 = vmatpush2.msra.mxu0 0.0
        %4622 = vmatprep.subr.mxu0 0.0
        %4623 = vmatpush2.msra.mxu0 0.0
        %4624 = vmatprep.subr.mxu0 0.0
        %4625 = vmatpush2.msra.mxu0 0.0
        %4626 = vmatprep.subr.mxu0 0.0
        %4627 = vmatpush2.msra.mxu0 0.0
        %4628 = vmatprep.subr.mxu0 0.0
        %4629 = vmatpush2.msra.mxu0 0.0
        %4630 = vmatprep.subr.mxu0 0.0
        %4631 = vmatpush2.msra.mxu0 0.0
        %4632 = vmatprep.mubr.f32.mxu0 0.0
        %v4633 = vand.u32 %v4388, 4294901760
        %v4634 = vsub.f32 %v4388, %v4633
        %4635 = vmatmul.mubr.f32.gmra.mxu0 %v4634
        %v4636 = vpop.f32.mrf.mxu0
        %v4637 = vadd.f32 %v4557, %v4636
        %v4638 = vpop.f32.mrf.mxu0
        %4639 = vdwg.mxu0
        %4640 = vmatprep.subr.mxu0 0.0
        %4641 = vmatpush1.msra.mxu0 0.0
        %4642 = vmatprep.subr.mxu0 0.0
        %4643 = vmatpush1.msra.mxu0 0.0
        %4644 = vmatprep.subr.mxu0 0.0
        %4645 = vmatpush1.msra.mxu0 0.0
        %4646 = vmatprep.subr.mxu0 0.0
        %4647 = vmatpush1.msra.mxu0 0.0
        %4648 = vmatprep.subr.mxu0 0.0
        %4649 = vmatpush1.msra.mxu0 0.0
        %4650 = vmatprep.subr.mxu0 0.0
        %4651 = vmatpush1.msra.mxu0 0.0
        %4652 = vmatprep.subr.mxu0 0.0
        %4653 = vmatpush1.msra.mxu0 0.0
        %4654 = vmatprep.subr.mxu0 0.0
        %4655 = vmatpush1.msra.mxu0 0.0
        %4656 = vmatprep.subr.mxu0 0.0
        %4657 = vmatpush1.msra.mxu0 0.0
        %4658 = vmatprep.subr.mxu0 0.0
        %4659 = vmatpush1.msra.mxu0 0.0
        %4660 = vmatprep.subr.mxu0 0.0
        %4661 = vmatpush1.msra.mxu0 0.0
        %4662 = vmatprep.subr.mxu0 0.0
        %4663 = vmatpush1.msra.mxu0 0.0
        %4664 = vmatprep.subr.mxu0 0.0
        %v4665 = vand.u32 %v3893, 4294901760
        %4666 = vmatpush1.msra.mxu0 %v4665
        %4667 = vmatprep.subr.mxu0 0.0
        %v4668 = vand.u32 %v3892, 4294901760
        %4669 = vmatpush1.msra.mxu0 %v4668
        %4670 = vmatprep.subr.mxu0 0.0
        %v4671 = vand.u32 %v3891, 4294901760
        %4672 = vmatpush1.msra.mxu0 %v4671
        %4673 = vmatprep.subr.mxu0 0.0
        %v4674 = vand.u32 %v3890, 4294901760
        %4675 = vmatpush1.msra.mxu0 %v4674
        %4676 = vmatprep.subr.mxu0 0.0
        %4677 = vmatpush2.msra.mxu0 0.0
        %4678 = vmatprep.subr.mxu0 0.0
        %4679 = vmatpush2.msra.mxu0 0.0
        %4680 = vmatprep.subr.mxu0 0.0
        %4681 = vmatpush2.msra.mxu0 0.0
        %4682 = vmatprep.subr.mxu0 0.0
        %4683 = vmatpush2.msra.mxu0 0.0
        %4684 = vmatprep.subr.mxu0 0.0
        %4685 = vmatpush2.msra.mxu0 0.0
        %4686 = vmatprep.subr.mxu0 0.0
        %4687 = vmatpush2.msra.mxu0 0.0
        %4688 = vmatprep.subr.mxu0 0.0
        %4689 = vmatpush2.msra.mxu0 0.0
        %4690 = vmatprep.subr.mxu0 0.0
        %4691 = vmatpush2.msra.mxu0 0.0
        %4692 = vmatprep.subr.mxu0 0.0
        %4693 = vmatpush2.msra.mxu0 0.0
        %4694 = vmatprep.subr.mxu0 0.0
        %4695 = vmatpush2.msra.mxu0 0.0
        %4696 = vmatprep.subr.mxu0 0.0
        %4697 = vmatpush2.msra.mxu0 0.0
        %4698 = vmatprep.subr.mxu0 0.0
        %4699 = vmatpush2.msra.mxu0 0.0
        %4700 = vmatprep.subr.mxu0 0.0
        %4701 = vmatpush2.msra.mxu0 0.0
        %4702 = vmatprep.subr.mxu0 0.0
        %4703 = vmatpush2.msra.mxu0 0.0
        %4704 = vmatprep.subr.mxu0 0.0
        %4705 = vmatpush2.msra.mxu0 0.0
        %4706 = vmatprep.subr.mxu0 0.0
        %4707 = vmatpush2.msra.mxu0 0.0
        %4708 = vmatprep.mubr.f32.mxu0 0.0
        %v4709 = vand.u32 %v4388, 4294901760
        %v4710 = vsub.f32 %v4388, %v4709
        %v4711 = vand.u32 %v4710, 4294901760
        %4712 = vmatmul.mubr.f32.gmra.mxu0 %v4711
        %v4713 = vpop.f32.mrf.mxu0
        %v4714 = vadd.f32 %v4637, %v4713
        %v4715 = vpop.f32.mrf.mxu0
        %4716 = vdwg.mxu0
        %4717 = vmatprep.subr.mxu0 0.0
        %4718 = vmatpush1.msra.mxu0 0.0
        %4719 = vmatprep.subr.mxu0 0.0
        %4720 = vmatpush1.msra.mxu0 0.0
        %4721 = vmatprep.subr.mxu0 0.0
        %4722 = vmatpush1.msra.mxu0 0.0
        %4723 = vmatprep.subr.mxu0 0.0
        %4724 = vmatpush1.msra.mxu0 0.0
        %4725 = vmatprep.subr.mxu0 0.0
        %4726 = vmatpush1.msra.mxu0 0.0
        %4727 = vmatprep.subr.mxu0 0.0
        %4728 = vmatpush1.msra.mxu0 0.0
        %4729 = vmatprep.subr.mxu0 0.0
        %4730 = vmatpush1.msra.mxu0 0.0
        %4731 = vmatprep.subr.mxu0 0.0
        %4732 = vmatpush1.msra.mxu0 0.0
        %4733 = vmatprep.subr.mxu0 0.0
        %4734 = vmatpush1.msra.mxu0 0.0
        %4735 = vmatprep.subr.mxu0 0.0
        %4736 = vmatpush1.msra.mxu0 0.0
        %4737 = vmatprep.subr.mxu0 0.0
        %4738 = vmatpush1.msra.mxu0 0.0
        %4739 = vmatprep.subr.mxu0 0.0
        %4740 = vmatpush1.msra.mxu0 0.0
        %4741 = vmatprep.subr.mxu0 0.0
        %v4742 = vand.u32 %v3893, 4294901760
        %v4743 = vsub.f32 %v3893, %v4742
        %v4744 = vand.u32 %v4743, 4294901760
        %4745 = vmatpush1.msra.mxu0 %v4744
        %4746 = vmatprep.subr.mxu0 0.0
        %v4747 = vand.u32 %v3892, 4294901760
        %v4748 = vsub.f32 %v3892, %v4747
        %v4749 = vand.u32 %v4748, 4294901760
        %4750 = vmatpush1.msra.mxu0 %v4749
        %4751 = vmatprep.subr.mxu0 0.0
        %v4752 = vand.u32 %v3891, 4294901760
        %v4753 = vsub.f32 %v3891, %v4752
        %v4754 = vand.u32 %v4753, 4294901760
        %4755 = vmatpush1.msra.mxu0 %v4754
        %4756 = vmatprep.subr.mxu0 0.0
        %v4757 = vand.u32 %v3890, 4294901760
        %v4758 = vsub.f32 %v3890, %v4757
        %v4759 = vand.u32 %v4758, 4294901760
        %4760 = vmatpush1.msra.mxu0 %v4759
        %4761 = vmatprep.subr.mxu0 0.0
        %4762 = vmatpush2.msra.mxu0 0.0
        %4763 = vmatprep.subr.mxu0 0.0
        %4764 = vmatpush2.msra.mxu0 0.0
        %4765 = vmatprep.subr.mxu0 0.0
        %4766 = vmatpush2.msra.mxu0 0.0
        %4767 = vmatprep.subr.mxu0 0.0
        %4768 = vmatpush2.msra.mxu0 0.0
        %4769 = vmatprep.subr.mxu0 0.0
        %4770 = vmatpush2.msra.mxu0 0.0
        %4771 = vmatprep.subr.mxu0 0.0
        %4772 = vmatpush2.msra.mxu0 0.0
        %4773 = vmatprep.subr.mxu0 0.0
        %4774 = vmatpush2.msra.mxu0 0.0
        %4775 = vmatprep.subr.mxu0 0.0
        %4776 = vmatpush2.msra.mxu0 0.0
        %4777 = vmatprep.subr.mxu0 0.0
        %4778 = vmatpush2.msra.mxu0 0.0
        %4779 = vmatprep.subr.mxu0 0.0
        %4780 = vmatpush2.msra.mxu0 0.0
        %4781 = vmatprep.subr.mxu0 0.0
        %4782 = vmatpush2.msra.mxu0 0.0
        %4783 = vmatprep.subr.mxu0 0.0
        %4784 = vmatpush2.msra.mxu0 0.0
        %4785 = vmatprep.subr.mxu0 0.0
        %4786 = vmatpush2.msra.mxu0 0.0
        %4787 = vmatprep.subr.mxu0 0.0
        %4788 = vmatpush2.msra.mxu0 0.0
        %4789 = vmatprep.subr.mxu0 0.0
        %4790 = vmatpush2.msra.mxu0 0.0
        %4791 = vmatprep.subr.mxu0 0.0
        %4792 = vmatpush2.msra.mxu0 0.0
        %4793 = vmatprep.mubr.f32.mxu0 0.0
        %v4794 = vand.u32 %v4388, 4294901760
        %4795 = vmatmul.mubr.f32.gmra.mxu0 %v4794
        %v4796 = vpop.f32.mrf.mxu0
        %v4797 = vadd.f32 %v4714, %v4796
        %v4798 = vpop.f32.mrf.mxu0
        %4799 = vdwg.mxu0
        %4800 = vmatprep.subr.mxu0 0.0
        %4801 = vmatpush1.msra.mxu0 0.0
        %4802 = vmatprep.subr.mxu0 0.0
        %4803 = vmatpush1.msra.mxu0 0.0
        %4804 = vmatprep.subr.mxu0 0.0
        %4805 = vmatpush1.msra.mxu0 0.0
        %4806 = vmatprep.subr.mxu0 0.0
        %4807 = vmatpush1.msra.mxu0 0.0
        %4808 = vmatprep.subr.mxu0 0.0
        %4809 = vmatpush1.msra.mxu0 0.0
        %4810 = vmatprep.subr.mxu0 0.0
        %4811 = vmatpush1.msra.mxu0 0.0
        %4812 = vmatprep.subr.mxu0 0.0
        %4813 = vmatpush1.msra.mxu0 0.0
        %4814 = vmatprep.subr.mxu0 0.0
        %4815 = vmatpush1.msra.mxu0 0.0
        %4816 = vmatprep.subr.mxu0 0.0
        %4817 = vmatpush1.msra.mxu0 0.0
        %4818 = vmatprep.subr.mxu0 0.0
        %4819 = vmatpush1.msra.mxu0 0.0
        %4820 = vmatprep.subr.mxu0 0.0
        %4821 = vmatpush1.msra.mxu0 0.0
        %4822 = vmatprep.subr.mxu0 0.0
        %4823 = vmatpush1.msra.mxu0 0.0
        %4824 = vmatprep.subr.mxu0 0.0
        %v4825 = vand.u32 %v3893, 4294901760
        %4826 = vmatpush1.msra.mxu0 %v4825
        %4827 = vmatprep.subr.mxu0 0.0
        %v4828 = vand.u32 %v3892, 4294901760
        %4829 = vmatpush1.msra.mxu0 %v4828
        %4830 = vmatprep.subr.mxu0 0.0
        %v4831 = vand.u32 %v3891, 4294901760
        %4832 = vmatpush1.msra.mxu0 %v4831
        %4833 = vmatprep.subr.mxu0 0.0
        %v4834 = vand.u32 %v3890, 4294901760
        %4835 = vmatpush1.msra.mxu0 %v4834
        %4836 = vmatprep.subr.mxu0 0.0
        %4837 = vmatpush2.msra.mxu0 0.0
        %4838 = vmatprep.subr.mxu0 0.0
        %4839 = vmatpush2.msra.mxu0 0.0
        %4840 = vmatprep.subr.mxu0 0.0
        %4841 = vmatpush2.msra.mxu0 0.0
        %4842 = vmatprep.subr.mxu0 0.0
        %4843 = vmatpush2.msra.mxu0 0.0
        %4844 = vmatprep.subr.mxu0 0.0
        %4845 = vmatpush2.msra.mxu0 0.0
        %4846 = vmatprep.subr.mxu0 0.0
        %4847 = vmatpush2.msra.mxu0 0.0
        %4848 = vmatprep.subr.mxu0 0.0
        %4849 = vmatpush2.msra.mxu0 0.0
        %4850 = vmatprep.subr.mxu0 0.0
        %4851 = vmatpush2.msra.mxu0 0.0
        %4852 = vmatprep.subr.mxu0 0.0
        %4853 = vmatpush2.msra.mxu0 0.0
        %4854 = vmatprep.subr.mxu0 0.0
        %4855 = vmatpush2.msra.mxu0 0.0
        %4856 = vmatprep.subr.mxu0 0.0
        %4857 = vmatpush2.msra.mxu0 0.0
        %4858 = vmatprep.subr.mxu0 0.0
        %4859 = vmatpush2.msra.mxu0 0.0
        %4860 = vmatprep.subr.mxu0 0.0
        %4861 = vmatpush2.msra.mxu0 0.0
        %4862 = vmatprep.subr.mxu0 0.0
        %4863 = vmatpush2.msra.mxu0 0.0
        %4864 = vmatprep.subr.mxu0 0.0
        %4865 = vmatpush2.msra.mxu0 0.0
        %4866 = vmatprep.subr.mxu0 0.0
        %4867 = vmatpush2.msra.mxu0 0.0
        %4868 = vmatprep.mubr.f32.mxu0 0.0
        %v4869 = vand.u32 %v4388, 4294901760
        %4870 = vmatmul.mubr.f32.gmra.mxu0 %v4869
        %v4871 = vpop.f32.mrf.mxu0
        %v4872 = vadd.f32 %v4797, %v4871
        %v4873 = vpop.f32.mrf.mxu0
        %4874 = vdwg.mxu0
        %s4875 = scalar_lea.vmem %s6, 64
        %v4876 = vld [vmem:[%s4875] sm:$0xff]
        %v4877 = vld [vmem:[%s4875 + $0x8] sm:$0xff]
        %v4878 = vld [vmem:[%s4875 + $0x10] sm:$0xff]
        %v4879 = vld [vmem:[%s4875 + $0x18] sm:$0xff]
        %v4880 = vrot.slane %v3889, 2
        %v4881 = vsel %vm798, %v4880, 0
        %4883 = vmatprep.subr.mxu0 0.0
        %4884 = vmatpush1.msra.mxu0 0.0
        %4885 = vmatprep.subr.mxu0 0.0
        %4886 = vmatpush1.msra.mxu0 0.0
        %4887 = vmatprep.subr.mxu0 0.0
        %4888 = vmatpush1.msra.mxu0 0.0
        %4889 = vmatprep.subr.mxu0 0.0
        %4890 = vmatpush1.msra.mxu0 0.0
        %4891 = vmatprep.subr.mxu0 0.0
        %4892 = vmatpush1.msra.mxu0 0.0
        %4893 = vmatprep.subr.mxu0 0.0
        %4894 = vmatpush1.msra.mxu0 0.0
        %4895 = vmatprep.subr.mxu0 0.0
        %4896 = vmatpush1.msra.mxu0 0.0
        %4897 = vmatprep.subr.mxu0 0.0
        %4898 = vmatpush1.msra.mxu0 0.0
        %4899 = vmatprep.subr.mxu0 0.0
        %4900 = vmatpush1.msra.mxu0 0.0
        %4901 = vmatprep.subr.mxu0 0.0
        %4902 = vmatpush1.msra.mxu0 0.0
        %4903 = vmatprep.subr.mxu0 0.0
        %4904 = vmatpush1.msra.mxu0 0.0
        %4905 = vmatprep.subr.mxu0 0.0
        %4906 = vmatpush1.msra.mxu0 0.0
        %4907 = vmatprep.subr.mxu0 0.0
        %v4908 = vand.u32 %v4879, 4294901760
        %4909 = vmatpush1.msra.mxu0 %v4908
        %4910 = vmatprep.subr.mxu0 0.0
        %v4911 = vand.u32 %v4878, 4294901760
        %4912 = vmatpush1.msra.mxu0 %v4911
        %4913 = vmatprep.subr.mxu0 0.0
        %v4914 = vand.u32 %v4877, 4294901760
        %4915 = vmatpush1.msra.mxu0 %v4914
        %4916 = vmatprep.subr.mxu0 0.0
        %v4917 = vand.u32 %v4876, 4294901760
        %4918 = vmatpush1.msra.mxu0 %v4917
        %4919 = vmatprep.subr.mxu0 0.0
        %4920 = vmatpush2.msra.mxu0 0.0
        %4921 = vmatprep.subr.mxu0 0.0
        %4922 = vmatpush2.msra.mxu0 0.0
        %4923 = vmatprep.subr.mxu0 0.0
        %4924 = vmatpush2.msra.mxu0 0.0
        %4925 = vmatprep.subr.mxu0 0.0
        %4926 = vmatpush2.msra.mxu0 0.0
        %4927 = vmatprep.subr.mxu0 0.0
        %4928 = vmatpush2.msra.mxu0 0.0
        %4929 = vmatprep.subr.mxu0 0.0
        %4930 = vmatpush2.msra.mxu0 0.0
        %4931 = vmatprep.subr.mxu0 0.0
        %4932 = vmatpush2.msra.mxu0 0.0
        %4933 = vmatprep.subr.mxu0 0.0
        %4934 = vmatpush2.msra.mxu0 0.0
        %4935 = vmatprep.subr.mxu0 0.0
        %4936 = vmatpush2.msra.mxu0 0.0
        %4937 = vmatprep.subr.mxu0 0.0
        %4938 = vmatpush2.msra.mxu0 0.0
        %4939 = vmatprep.subr.mxu0 0.0
        %4940 = vmatpush2.msra.mxu0 0.0
        %4941 = vmatprep.subr.mxu0 0.0
        %4942 = vmatpush2.msra.mxu0 0.0
        %4943 = vmatprep.subr.mxu0 0.0
        %4944 = vmatpush2.msra.mxu0 0.0
        %4945 = vmatprep.subr.mxu0 0.0
        %4946 = vmatpush2.msra.mxu0 0.0
        %4947 = vmatprep.subr.mxu0 0.0
        %4948 = vmatpush2.msra.mxu0 0.0
        %4949 = vmatprep.subr.mxu0 0.0
        %4950 = vmatpush2.msra.mxu0 0.0
        %4951 = vmatprep.mubr.f32.mxu0 0.0
        %v4952 = vand.u32 %v4881, 4294901760
        %v4953 = vsub.f32 %v4881, %v4952
        %v4954 = vand.u32 %v4953, 4294901760
        %v4955 = vsub.f32 %v4953, %v4954
        %v4956 = vand.u32 %v4955, 4294901760
        %4957 = vmatmul.mubr.f32.gmra.mxu0 %v4956
        %v4958 = vpop.f32.mrf.mxu0
        %v4959 = vadd.f32 0.0, %v4958
        %v4960 = vpop.f32.mrf.mxu0
        %4961 = vdwg.mxu0
        %4962 = vmatprep.subr.mxu0 0.0
        %4963 = vmatpush1.msra.mxu0 0.0
        %4964 = vmatprep.subr.mxu0 0.0
        %4965 = vmatpush1.msra.mxu0 0.0
        %4966 = vmatprep.subr.mxu0 0.0
        %4967 = vmatpush1.msra.mxu0 0.0
        %4968 = vmatprep.subr.mxu0 0.0
        %4969 = vmatpush1.msra.mxu0 0.0
        %4970 = vmatprep.subr.mxu0 0.0
        %4971 = vmatpush1.msra.mxu0 0.0
        %4972 = vmatprep.subr.mxu0 0.0
        %4973 = vmatpush1.msra.mxu0 0.0
        %4974 = vmatprep.subr.mxu0 0.0
        %4975 = vmatpush1.msra.mxu0 0.0
        %4976 = vmatprep.subr.mxu0 0.0
        %4977 = vmatpush1.msra.mxu0 0.0
        %4978 = vmatprep.subr.mxu0 0.0
        %4979 = vmatpush1.msra.mxu0 0.0
        %4980 = vmatprep.subr.mxu0 0.0
        %4981 = vmatpush1.msra.mxu0 0.0
        %4982 = vmatprep.subr.mxu0 0.0
        %4983 = vmatpush1.msra.mxu0 0.0
        %4984 = vmatprep.subr.mxu0 0.0
        %4985 = vmatpush1.msra.mxu0 0.0
        %4986 = vmatprep.subr.mxu0 0.0
        %v4987 = vand.u32 %v4879, 4294901760
        %v4988 = vsub.f32 %v4879, %v4987
        %v4989 = vand.u32 %v4988, 4294901760
        %v4990 = vsub.f32 %v4988, %v4989
        %v4991 = vand.u32 %v4990, 4294901760
        %4992 = vmatpush1.msra.mxu0 %v4991
        %4993 = vmatprep.subr.mxu0 0.0
        %v4994 = vand.u32 %v4878, 4294901760
        %v4995 = vsub.f32 %v4878, %v4994
        %v4996 = vand.u32 %v4995, 4294901760
        %v4997 = vsub.f32 %v4995, %v4996
        %v4998 = vand.u32 %v4997, 4294901760
        %4999 = vmatpush1.msra.mxu0 %v4998
        %5000 = vmatprep.subr.mxu0 0.0
        %v5001 = vand.u32 %v4877, 4294901760
        %v5002 = vsub.f32 %v4877, %v5001
        %v5003 = vand.u32 %v5002, 4294901760
        %v5004 = vsub.f32 %v5002, %v5003
        %v5005 = vand.u32 %v5004, 4294901760
        %5006 = vmatpush1.msra.mxu0 %v5005
        %5007 = vmatprep.subr.mxu0 0.0
        %v5008 = vand.u32 %v4876, 4294901760
        %v5009 = vsub.f32 %v4876, %v5008
        %v5010 = vand.u32 %v5009, 4294901760
        %v5011 = vsub.f32 %v5009, %v5010
        %v5012 = vand.u32 %v5011, 4294901760
        %5013 = vmatpush1.msra.mxu0 %v5012
        %5014 = vmatprep.subr.mxu0 0.0
        %5015 = vmatpush2.msra.mxu0 0.0
        %5016 = vmatprep.subr.mxu0 0.0
        %5017 = vmatpush2.msra.mxu0 0.0
        %5018 = vmatprep.subr.mxu0 0.0
        %5019 = vmatpush2.msra.mxu0 0.0
        %5020 = vmatprep.subr.mxu0 0.0
        %5021 = vmatpush2.msra.mxu0 0.0
        %5022 = vmatprep.subr.mxu0 0.0
        %5023 = vmatpush2.msra.mxu0 0.0
        %5024 = vmatprep.subr.mxu0 0.0
        %5025 = vmatpush2.msra.mxu0 0.0
        %5026 = vmatprep.subr.mxu0 0.0
        %5027 = vmatpush2.msra.mxu0 0.0
        %5028 = vmatprep.subr.mxu0 0.0
        %5029 = vmatpush2.msra.mxu0 0.0
        %5030 = vmatprep.subr.mxu0 0.0
        %5031 = vmatpush2.msra.mxu0 0.0
        %5032 = vmatprep.subr.mxu0 0.0
        %5033 = vmatpush2.msra.mxu0 0.0
        %5034 = vmatprep.subr.mxu0 0.0
        %5035 = vmatpush2.msra.mxu0 0.0
        %5036 = vmatprep.subr.mxu0 0.0
        %5037 = vmatpush2.msra.mxu0 0.0
        %5038 = vmatprep.subr.mxu0 0.0
        %5039 = vmatpush2.msra.mxu0 0.0
        %5040 = vmatprep.subr.mxu0 0.0
        %5041 = vmatpush2.msra.mxu0 0.0
        %5042 = vmatprep.subr.mxu0 0.0
        %5043 = vmatpush2.msra.mxu0 0.0
        %5044 = vmatprep.subr.mxu0 0.0
        %5045 = vmatpush2.msra.mxu0 0.0
        %5046 = vmatprep.mubr.f32.mxu0 0.0
        %v5047 = vand.u32 %v4881, 4294901760
        %5048 = vmatmul.mubr.f32.gmra.mxu0 %v5047
        %v5049 = vpop.f32.mrf.mxu0
        %v5050 = vadd.f32 %v4959, %v5049
        %v5051 = vpop.f32.mrf.mxu0
        %5052 = vdwg.mxu0
        %5053 = vmatprep.subr.mxu0 0.0
        %5054 = vmatpush1.msra.mxu0 0.0
        %5055 = vmatprep.subr.mxu0 0.0
        %5056 = vmatpush1.msra.mxu0 0.0
        %5057 = vmatprep.subr.mxu0 0.0
        %5058 = vmatpush1.msra.mxu0 0.0
        %5059 = vmatprep.subr.mxu0 0.0
        %5060 = vmatpush1.msra.mxu0 0.0
        %5061 = vmatprep.subr.mxu0 0.0
        %5062 = vmatpush1.msra.mxu0 0.0
        %5063 = vmatprep.subr.mxu0 0.0
        %5064 = vmatpush1.msra.mxu0 0.0
        %5065 = vmatprep.subr.mxu0 0.0
        %5066 = vmatpush1.msra.mxu0 0.0
        %5067 = vmatprep.subr.mxu0 0.0
        %5068 = vmatpush1.msra.mxu0 0.0
        %5069 = vmatprep.subr.mxu0 0.0
        %5070 = vmatpush1.msra.mxu0 0.0
        %5071 = vmatprep.subr.mxu0 0.0
        %5072 = vmatpush1.msra.mxu0 0.0
        %5073 = vmatprep.subr.mxu0 0.0
        %5074 = vmatpush1.msra.mxu0 0.0
        %5075 = vmatprep.subr.mxu0 0.0
        %5076 = vmatpush1.msra.mxu0 0.0
        %5077 = vmatprep.subr.mxu0 0.0
        %v5078 = vand.u32 %v4879, 4294901760
        %v5079 = vsub.f32 %v4879, %v5078
        %5080 = vmatpush1.msra.mxu0 %v5079
        %5081 = vmatprep.subr.mxu0 0.0
        %v5082 = vand.u32 %v4878, 4294901760
        %v5083 = vsub.f32 %v4878, %v5082
        %5084 = vmatpush1.msra.mxu0 %v5083
        %5085 = vmatprep.subr.mxu0 0.0
        %v5086 = vand.u32 %v4877, 4294901760
        %v5087 = vsub.f32 %v4877, %v5086
        %5088 = vmatpush1.msra.mxu0 %v5087
        %5089 = vmatprep.subr.mxu0 0.0
        %v5090 = vand.u32 %v4876, 4294901760
        %v5091 = vsub.f32 %v4876, %v5090
        %5092 = vmatpush1.msra.mxu0 %v5091
        %5093 = vmatprep.subr.mxu0 0.0
        %5094 = vmatpush2.msra.mxu0 0.0
        %5095 = vmatprep.subr.mxu0 0.0
        %5096 = vmatpush2.msra.mxu0 0.0
        %5097 = vmatprep.subr.mxu0 0.0
        %5098 = vmatpush2.msra.mxu0 0.0
        %5099 = vmatprep.subr.mxu0 0.0
        %5100 = vmatpush2.msra.mxu0 0.0
        %5101 = vmatprep.subr.mxu0 0.0
        %5102 = vmatpush2.msra.mxu0 0.0
        %5103 = vmatprep.subr.mxu0 0.0
        %5104 = vmatpush2.msra.mxu0 0.0
        %5105 = vmatprep.subr.mxu0 0.0
        %5106 = vmatpush2.msra.mxu0 0.0
        %5107 = vmatprep.subr.mxu0 0.0
        %5108 = vmatpush2.msra.mxu0 0.0
        %5109 = vmatprep.subr.mxu0 0.0
        %5110 = vmatpush2.msra.mxu0 0.0
        %5111 = vmatprep.subr.mxu0 0.0
        %5112 = vmatpush2.msra.mxu0 0.0
        %5113 = vmatprep.subr.mxu0 0.0
        %5114 = vmatpush2.msra.mxu0 0.0
        %5115 = vmatprep.subr.mxu0 0.0
        %5116 = vmatpush2.msra.mxu0 0.0
        %5117 = vmatprep.subr.mxu0 0.0
        %5118 = vmatpush2.msra.mxu0 0.0
        %5119 = vmatprep.subr.mxu0 0.0
        %5120 = vmatpush2.msra.mxu0 0.0
        %5121 = vmatprep.subr.mxu0 0.0
        %5122 = vmatpush2.msra.mxu0 0.0
        %5123 = vmatprep.subr.mxu0 0.0
        %5124 = vmatpush2.msra.mxu0 0.0
        %5125 = vmatprep.mubr.f32.mxu0 0.0
        %v5126 = vand.u32 %v4881, 4294901760
        %v5127 = vsub.f32 %v4881, %v5126
        %5128 = vmatmul.mubr.f32.gmra.mxu0 %v5127
        %v5129 = vpop.f32.mrf.mxu0
        %v5130 = vadd.f32 %v5050, %v5129
        %v5131 = vpop.f32.mrf.mxu0
        %5132 = vdwg.mxu0
        %5133 = vmatprep.subr.mxu0 0.0
        %5134 = vmatpush1.msra.mxu0 0.0
        %5135 = vmatprep.subr.mxu0 0.0
        %5136 = vmatpush1.msra.mxu0 0.0
        %5137 = vmatprep.subr.mxu0 0.0
        %5138 = vmatpush1.msra.mxu0 0.0
        %5139 = vmatprep.subr.mxu0 0.0
        %5140 = vmatpush1.msra.mxu0 0.0
        %5141 = vmatprep.subr.mxu0 0.0
        %5142 = vmatpush1.msra.mxu0 0.0
        %5143 = vmatprep.subr.mxu0 0.0
        %5144 = vmatpush1.msra.mxu0 0.0
        %5145 = vmatprep.subr.mxu0 0.0
        %5146 = vmatpush1.msra.mxu0 0.0
        %5147 = vmatprep.subr.mxu0 0.0
        %5148 = vmatpush1.msra.mxu0 0.0
        %5149 = vmatprep.subr.mxu0 0.0
        %5150 = vmatpush1.msra.mxu0 0.0
        %5151 = vmatprep.subr.mxu0 0.0
        %5152 = vmatpush1.msra.mxu0 0.0
        %5153 = vmatprep.subr.mxu0 0.0
        %5154 = vmatpush1.msra.mxu0 0.0
        %5155 = vmatprep.subr.mxu0 0.0
        %5156 = vmatpush1.msra.mxu0 0.0
        %5157 = vmatprep.subr.mxu0 0.0
        %v5158 = vand.u32 %v4879, 4294901760
        %5159 = vmatpush1.msra.mxu0 %v5158
        %5160 = vmatprep.subr.mxu0 0.0
        %v5161 = vand.u32 %v4878, 4294901760
        %5162 = vmatpush1.msra.mxu0 %v5161
        %5163 = vmatprep.subr.mxu0 0.0
        %v5164 = vand.u32 %v4877, 4294901760
        %5165 = vmatpush1.msra.mxu0 %v5164
        %5166 = vmatprep.subr.mxu0 0.0
        %v5167 = vand.u32 %v4876, 4294901760
        %5168 = vmatpush1.msra.mxu0 %v5167
        %5169 = vmatprep.subr.mxu0 0.0
        %5170 = vmatpush2.msra.mxu0 0.0
        %5171 = vmatprep.subr.mxu0 0.0
        %5172 = vmatpush2.msra.mxu0 0.0
        %5173 = vmatprep.subr.mxu0 0.0
        %5174 = vmatpush2.msra.mxu0 0.0
        %5175 = vmatprep.subr.mxu0 0.0
        %5176 = vmatpush2.msra.mxu0 0.0
        %5177 = vmatprep.subr.mxu0 0.0
        %5178 = vmatpush2.msra.mxu0 0.0
        %5179 = vmatprep.subr.mxu0 0.0
        %5180 = vmatpush2.msra.mxu0 0.0
        %5181 = vmatprep.subr.mxu0 0.0
        %5182 = vmatpush2.msra.mxu0 0.0
        %5183 = vmatprep.subr.mxu0 0.0
        %5184 = vmatpush2.msra.mxu0 0.0
        %5185 = vmatprep.subr.mxu0 0.0
        %5186 = vmatpush2.msra.mxu0 0.0
        %5187 = vmatprep.subr.mxu0 0.0
        %5188 = vmatpush2.msra.mxu0 0.0
        %5189 = vmatprep.subr.mxu0 0.0
        %5190 = vmatpush2.msra.mxu0 0.0
        %5191 = vmatprep.subr.mxu0 0.0
        %5192 = vmatpush2.msra.mxu0 0.0
        %5193 = vmatprep.subr.mxu0 0.0
        %5194 = vmatpush2.msra.mxu0 0.0
        %5195 = vmatprep.subr.mxu0 0.0
        %5196 = vmatpush2.msra.mxu0 0.0
        %5197 = vmatprep.subr.mxu0 0.0
        %5198 = vmatpush2.msra.mxu0 0.0
        %5199 = vmatprep.subr.mxu0 0.0
        %5200 = vmatpush2.msra.mxu0 0.0
        %5201 = vmatprep.mubr.f32.mxu0 0.0
        %v5202 = vand.u32 %v4881, 4294901760
        %v5203 = vsub.f32 %v4881, %v5202
        %v5204 = vand.u32 %v5203, 4294901760
        %5205 = vmatmul.mubr.f32.gmra.mxu0 %v5204
        %v5206 = vpop.f32.mrf.mxu0
        %v5207 = vadd.f32 %v5130, %v5206
        %v5208 = vpop.f32.mrf.mxu0
        %5209 = vdwg.mxu0
        %5210 = vmatprep.subr.mxu0 0.0
        %5211 = vmatpush1.msra.mxu0 0.0
        %5212 = vmatprep.subr.mxu0 0.0
        %5213 = vmatpush1.msra.mxu0 0.0
        %5214 = vmatprep.subr.mxu0 0.0
        %5215 = vmatpush1.msra.mxu0 0.0
        %5216 = vmatprep.subr.mxu0 0.0
        %5217 = vmatpush1.msra.mxu0 0.0
        %5218 = vmatprep.subr.mxu0 0.0
        %5219 = vmatpush1.msra.mxu0 0.0
        %5220 = vmatprep.subr.mxu0 0.0
        %5221 = vmatpush1.msra.mxu0 0.0
        %5222 = vmatprep.subr.mxu0 0.0
        %5223 = vmatpush1.msra.mxu0 0.0
        %5224 = vmatprep.subr.mxu0 0.0
        %5225 = vmatpush1.msra.mxu0 0.0
        %5226 = vmatprep.subr.mxu0 0.0
        %5227 = vmatpush1.msra.mxu0 0.0
        %5228 = vmatprep.subr.mxu0 0.0
        %5229 = vmatpush1.msra.mxu0 0.0
        %5230 = vmatprep.subr.mxu0 0.0
        %5231 = vmatpush1.msra.mxu0 0.0
        %5232 = vmatprep.subr.mxu0 0.0
        %5233 = vmatpush1.msra.mxu0 0.0
        %5234 = vmatprep.subr.mxu0 0.0
        %v5235 = vand.u32 %v4879, 4294901760
        %v5236 = vsub.f32 %v4879, %v5235
        %v5237 = vand.u32 %v5236, 4294901760
        %5238 = vmatpush1.msra.mxu0 %v5237
        %5239 = vmatprep.subr.mxu0 0.0
        %v5240 = vand.u32 %v4878, 4294901760
        %v5241 = vsub.f32 %v4878, %v5240
        %v5242 = vand.u32 %v5241, 4294901760
        %5243 = vmatpush1.msra.mxu0 %v5242
        %5244 = vmatprep.subr.mxu0 0.0
        %v5245 = vand.u32 %v4877, 4294901760
        %v5246 = vsub.f32 %v4877, %v5245
        %v5247 = vand.u32 %v5246, 4294901760
        %5248 = vmatpush1.msra.mxu0 %v5247
        %5249 = vmatprep.subr.mxu0 0.0
        %v5250 = vand.u32 %v4876, 4294901760
        %v5251 = vsub.f32 %v4876, %v5250
        %v5252 = vand.u32 %v5251, 4294901760
        %5253 = vmatpush1.msra.mxu0 %v5252
        %5254 = vmatprep.subr.mxu0 0.0
        %5255 = vmatpush2.msra.mxu0 0.0
        %5256 = vmatprep.subr.mxu0 0.0
        %5257 = vmatpush2.msra.mxu0 0.0
        %5258 = vmatprep.subr.mxu0 0.0
        %5259 = vmatpush2.msra.mxu0 0.0
        %5260 = vmatprep.subr.mxu0 0.0
        %5261 = vmatpush2.msra.mxu0 0.0
        %5262 = vmatprep.subr.mxu0 0.0
        %5263 = vmatpush2.msra.mxu0 0.0
        %5264 = vmatprep.subr.mxu0 0.0
        %5265 = vmatpush2.msra.mxu0 0.0
        %5266 = vmatprep.subr.mxu0 0.0
        %5267 = vmatpush2.msra.mxu0 0.0
        %5268 = vmatprep.subr.mxu0 0.0
        %5269 = vmatpush2.msra.mxu0 0.0
        %5270 = vmatprep.subr.mxu0 0.0
        %5271 = vmatpush2.msra.mxu0 0.0
        %5272 = vmatprep.subr.mxu0 0.0
        %5273 = vmatpush2.msra.mxu0 0.0
        %5274 = vmatprep.subr.mxu0 0.0
        %5275 = vmatpush2.msra.mxu0 0.0
        %5276 = vmatprep.subr.mxu0 0.0
        %5277 = vmatpush2.msra.mxu0 0.0
        %5278 = vmatprep.subr.mxu0 0.0
        %5279 = vmatpush2.msra.mxu0 0.0
        %5280 = vmatprep.subr.mxu0 0.0
        %5281 = vmatpush2.msra.mxu0 0.0
        %5282 = vmatprep.subr.mxu0 0.0
        %5283 = vmatpush2.msra.mxu0 0.0
        %5284 = vmatprep.subr.mxu0 0.0
        %5285 = vmatpush2.msra.mxu0 0.0
        %5286 = vmatprep.mubr.f32.mxu0 0.0
        %v5287 = vand.u32 %v4881, 4294901760
        %5288 = vmatmul.mubr.f32.gmra.mxu0 %v5287
        %v5289 = vpop.f32.mrf.mxu0
        %v5290 = vadd.f32 %v5207, %v5289
        %v5291 = vpop.f32.mrf.mxu0
        %5292 = vdwg.mxu0
        %5293 = vmatprep.subr.mxu0 0.0
        %5294 = vmatpush1.msra.mxu0 0.0
        %5295 = vmatprep.subr.mxu0 0.0
        %5296 = vmatpush1.msra.mxu0 0.0
        %5297 = vmatprep.subr.mxu0 0.0
        %5298 = vmatpush1.msra.mxu0 0.0
        %5299 = vmatprep.subr.mxu0 0.0
        %5300 = vmatpush1.msra.mxu0 0.0
        %5301 = vmatprep.subr.mxu0 0.0
        %5302 = vmatpush1.msra.mxu0 0.0
        %5303 = vmatprep.subr.mxu0 0.0
        %5304 = vmatpush1.msra.mxu0 0.0
        %5305 = vmatprep.subr.mxu0 0.0
        %5306 = vmatpush1.msra.mxu0 0.0
        %5307 = vmatprep.subr.mxu0 0.0
        %5308 = vmatpush1.msra.mxu0 0.0
        %5309 = vmatprep.subr.mxu0 0.0
        %5310 = vmatpush1.msra.mxu0 0.0
        %5311 = vmatprep.subr.mxu0 0.0
        %5312 = vmatpush1.msra.mxu0 0.0
        %5313 = vmatprep.subr.mxu0 0.0
        %5314 = vmatpush1.msra.mxu0 0.0
        %5315 = vmatprep.subr.mxu0 0.0
        %5316 = vmatpush1.msra.mxu0 0.0
        %5317 = vmatprep.subr.mxu0 0.0
        %v5318 = vand.u32 %v4879, 4294901760
        %5319 = vmatpush1.msra.mxu0 %v5318
        %5320 = vmatprep.subr.mxu0 0.0
        %v5321 = vand.u32 %v4878, 4294901760
        %5322 = vmatpush1.msra.mxu0 %v5321
        %5323 = vmatprep.subr.mxu0 0.0
        %v5324 = vand.u32 %v4877, 4294901760
        %5325 = vmatpush1.msra.mxu0 %v5324
        %5326 = vmatprep.subr.mxu0 0.0
        %v5327 = vand.u32 %v4876, 4294901760
        %5328 = vmatpush1.msra.mxu0 %v5327
        %5329 = vmatprep.subr.mxu0 0.0
        %5330 = vmatpush2.msra.mxu0 0.0
        %5331 = vmatprep.subr.mxu0 0.0
        %5332 = vmatpush2.msra.mxu0 0.0
        %5333 = vmatprep.subr.mxu0 0.0
        %5334 = vmatpush2.msra.mxu0 0.0
        %5335 = vmatprep.subr.mxu0 0.0
        %5336 = vmatpush2.msra.mxu0 0.0
        %5337 = vmatprep.subr.mxu0 0.0
        %5338 = vmatpush2.msra.mxu0 0.0
        %5339 = vmatprep.subr.mxu0 0.0
        %5340 = vmatpush2.msra.mxu0 0.0
        %5341 = vmatprep.subr.mxu0 0.0
        %5342 = vmatpush2.msra.mxu0 0.0
        %5343 = vmatprep.subr.mxu0 0.0
        %5344 = vmatpush2.msra.mxu0 0.0
        %5345 = vmatprep.subr.mxu0 0.0
        %5346 = vmatpush2.msra.mxu0 0.0
        %5347 = vmatprep.subr.mxu0 0.0
        %5348 = vmatpush2.msra.mxu0 0.0
        %5349 = vmatprep.subr.mxu0 0.0
        %5350 = vmatpush2.msra.mxu0 0.0
        %5351 = vmatprep.subr.mxu0 0.0
        %5352 = vmatpush2.msra.mxu0 0.0
        %5353 = vmatprep.subr.mxu0 0.0
        %5354 = vmatpush2.msra.mxu0 0.0
        %5355 = vmatprep.subr.mxu0 0.0
        %5356 = vmatpush2.msra.mxu0 0.0
        %5357 = vmatprep.subr.mxu0 0.0
        %5358 = vmatpush2.msra.mxu0 0.0
        %5359 = vmatprep.subr.mxu0 0.0
        %5360 = vmatpush2.msra.mxu0 0.0
        %5361 = vmatprep.mubr.f32.mxu0 0.0
        %v5362 = vand.u32 %v4881, 4294901760
        %5363 = vmatmul.mubr.f32.gmra.mxu0 %v5362
        %v5364 = vpop.f32.mrf.mxu0
        %v5365 = vadd.f32 %v5290, %v5364
        %v5366 = vpop.f32.mrf.mxu0
        %5367 = vdwg.mxu0
        %v5368 = vadd.f32 %v4872, %v5365
        %s5369 = scalar_lea.vmem %s6, 96
        %v5370 = vld [vmem:[%s5369] sm:$0xff]
        %v5371 = vld [vmem:[%s5369 + $0x8] sm:$0xff]
        %v5372 = vld [vmem:[%s5369 + $0x10] sm:$0xff]
        %v5373 = vld [vmem:[%s5369 + $0x18] sm:$0xff]
        %v5374 = vrot.slane %v3889, 3
        %v5375 = vsel %vm798, %v5374, 0
        %5377 = vmatprep.subr.mxu0 0.0
        %5378 = vmatpush1.msra.mxu0 0.0
        %5379 = vmatprep.subr.mxu0 0.0
        %5380 = vmatpush1.msra.mxu0 0.0
        %5381 = vmatprep.subr.mxu0 0.0
        %5382 = vmatpush1.msra.mxu0 0.0
        %5383 = vmatprep.subr.mxu0 0.0
        %5384 = vmatpush1.msra.mxu0 0.0
        %5385 = vmatprep.subr.mxu0 0.0
        %5386 = vmatpush1.msra.mxu0 0.0
        %5387 = vmatprep.subr.mxu0 0.0
        %5388 = vmatpush1.msra.mxu0 0.0
        %5389 = vmatprep.subr.mxu0 0.0
        %5390 = vmatpush1.msra.mxu0 0.0
        %5391 = vmatprep.subr.mxu0 0.0
        %5392 = vmatpush1.msra.mxu0 0.0
        %5393 = vmatprep.subr.mxu0 0.0
        %5394 = vmatpush1.msra.mxu0 0.0
        %5395 = vmatprep.subr.mxu0 0.0
        %5396 = vmatpush1.msra.mxu0 0.0
        %5397 = vmatprep.subr.mxu0 0.0
        %5398 = vmatpush1.msra.mxu0 0.0
        %5399 = vmatprep.subr.mxu0 0.0
        %5400 = vmatpush1.msra.mxu0 0.0
        %5401 = vmatprep.subr.mxu0 0.0
        %v5402 = vand.u32 %v5373, 4294901760
        %5403 = vmatpush1.msra.mxu0 %v5402
        %5404 = vmatprep.subr.mxu0 0.0
        %v5405 = vand.u32 %v5372, 4294901760
        %5406 = vmatpush1.msra.mxu0 %v5405
        %5407 = vmatprep.subr.mxu0 0.0
        %v5408 = vand.u32 %v5371, 4294901760
        %5409 = vmatpush1.msra.mxu0 %v5408
        %5410 = vmatprep.subr.mxu0 0.0
        %v5411 = vand.u32 %v5370, 4294901760
        %5412 = vmatpush1.msra.mxu0 %v5411
        %5413 = vmatprep.subr.mxu0 0.0
        %5414 = vmatpush2.msra.mxu0 0.0
        %5415 = vmatprep.subr.mxu0 0.0
        %5416 = vmatpush2.msra.mxu0 0.0
        %5417 = vmatprep.subr.mxu0 0.0
        %5418 = vmatpush2.msra.mxu0 0.0
        %5419 = vmatprep.subr.mxu0 0.0
        %5420 = vmatpush2.msra.mxu0 0.0
        %5421 = vmatprep.subr.mxu0 0.0
        %5422 = vmatpush2.msra.mxu0 0.0
        %5423 = vmatprep.subr.mxu0 0.0
        %5424 = vmatpush2.msra.mxu0 0.0
        %5425 = vmatprep.subr.mxu0 0.0
        %5426 = vmatpush2.msra.mxu0 0.0
        %5427 = vmatprep.subr.mxu0 0.0
        %5428 = vmatpush2.msra.mxu0 0.0
        %5429 = vmatprep.subr.mxu0 0.0
        %5430 = vmatpush2.msra.mxu0 0.0
        %5431 = vmatprep.subr.mxu0 0.0
        %5432 = vmatpush2.msra.mxu0 0.0
        %5433 = vmatprep.subr.mxu0 0.0
        %5434 = vmatpush2.msra.mxu0 0.0
        %5435 = vmatprep.subr.mxu0 0.0
        %5436 = vmatpush2.msra.mxu0 0.0
        %5437 = vmatprep.subr.mxu0 0.0
        %5438 = vmatpush2.msra.mxu0 0.0
        %5439 = vmatprep.subr.mxu0 0.0
        %5440 = vmatpush2.msra.mxu0 0.0
        %5441 = vmatprep.subr.mxu0 0.0
        %5442 = vmatpush2.msra.mxu0 0.0
        %5443 = vmatprep.subr.mxu0 0.0
        %5444 = vmatpush2.msra.mxu0 0.0
        %5445 = vmatprep.mubr.f32.mxu0 0.0
        %v5446 = vand.u32 %v5375, 4294901760
        %v5447 = vsub.f32 %v5375, %v5446
        %v5448 = vand.u32 %v5447, 4294901760
        %v5449 = vsub.f32 %v5447, %v5448
        %v5450 = vand.u32 %v5449, 4294901760
        %5451 = vmatmul.mubr.f32.gmra.mxu0 %v5450
        %v5452 = vpop.f32.mrf.mxu0
        %v5453 = vadd.f32 0.0, %v5452
        %v5454 = vpop.f32.mrf.mxu0
        %5455 = vdwg.mxu0
        %5456 = vmatprep.subr.mxu0 0.0
        %5457 = vmatpush1.msra.mxu0 0.0
        %5458 = vmatprep.subr.mxu0 0.0
        %5459 = vmatpush1.msra.mxu0 0.0
        %5460 = vmatprep.subr.mxu0 0.0
        %5461 = vmatpush1.msra.mxu0 0.0
        %5462 = vmatprep.subr.mxu0 0.0
        %5463 = vmatpush1.msra.mxu0 0.0
        %5464 = vmatprep.subr.mxu0 0.0
        %5465 = vmatpush1.msra.mxu0 0.0
        %5466 = vmatprep.subr.mxu0 0.0
        %5467 = vmatpush1.msra.mxu0 0.0
        %5468 = vmatprep.subr.mxu0 0.0
        %5469 = vmatpush1.msra.mxu0 0.0
        %5470 = vmatprep.subr.mxu0 0.0
        %5471 = vmatpush1.msra.mxu0 0.0
        %5472 = vmatprep.subr.mxu0 0.0
        %5473 = vmatpush1.msra.mxu0 0.0
        %5474 = vmatprep.subr.mxu0 0.0
        %5475 = vmatpush1.msra.mxu0 0.0
        %5476 = vmatprep.subr.mxu0 0.0
        %5477 = vmatpush1.msra.mxu0 0.0
        %5478 = vmatprep.subr.mxu0 0.0
        %5479 = vmatpush1.msra.mxu0 0.0
        %5480 = vmatprep.subr.mxu0 0.0
        %v5481 = vand.u32 %v5373, 4294901760
        %v5482 = vsub.f32 %v5373, %v5481
        %v5483 = vand.u32 %v5482, 4294901760
        %v5484 = vsub.f32 %v5482, %v5483
        %v5485 = vand.u32 %v5484, 4294901760
        %5486 = vmatpush1.msra.mxu0 %v5485
        %5487 = vmatprep.subr.mxu0 0.0
        %v5488 = vand.u32 %v5372, 4294901760
        %v5489 = vsub.f32 %v5372, %v5488
        %v5490 = vand.u32 %v5489, 4294901760
        %v5491 = vsub.f32 %v5489, %v5490
        %v5492 = vand.u32 %v5491, 4294901760
        %5493 = vmatpush1.msra.mxu0 %v5492
        %5494 = vmatprep.subr.mxu0 0.0
        %v5495 = vand.u32 %v5371, 4294901760
        %v5496 = vsub.f32 %v5371, %v5495
        %v5497 = vand.u32 %v5496, 4294901760
        %v5498 = vsub.f32 %v5496, %v5497
        %v5499 = vand.u32 %v5498, 4294901760
        %5500 = vmatpush1.msra.mxu0 %v5499
        %5501 = vmatprep.subr.mxu0 0.0
        %v5502 = vand.u32 %v5370, 4294901760
        %v5503 = vsub.f32 %v5370, %v5502
        %v5504 = vand.u32 %v5503, 4294901760
        %v5505 = vsub.f32 %v5503, %v5504
        %v5506 = vand.u32 %v5505, 4294901760
        %5507 = vmatpush1.msra.mxu0 %v5506
        %5508 = vmatprep.subr.mxu0 0.0
        %5509 = vmatpush2.msra.mxu0 0.0
        %5510 = vmatprep.subr.mxu0 0.0
        %5511 = vmatpush2.msra.mxu0 0.0
        %5512 = vmatprep.subr.mxu0 0.0
        %5513 = vmatpush2.msra.mxu0 0.0
        %5514 = vmatprep.subr.mxu0 0.0
        %5515 = vmatpush2.msra.mxu0 0.0
        %5516 = vmatprep.subr.mxu0 0.0
        %5517 = vmatpush2.msra.mxu0 0.0
        %5518 = vmatprep.subr.mxu0 0.0
        %5519 = vmatpush2.msra.mxu0 0.0
        %5520 = vmatprep.subr.mxu0 0.0
        %5521 = vmatpush2.msra.mxu0 0.0
        %5522 = vmatprep.subr.mxu0 0.0
        %5523 = vmatpush2.msra.mxu0 0.0
        %5524 = vmatprep.subr.mxu0 0.0
        %5525 = vmatpush2.msra.mxu0 0.0
        %5526 = vmatprep.subr.mxu0 0.0
        %5527 = vmatpush2.msra.mxu0 0.0
        %5528 = vmatprep.subr.mxu0 0.0
        %5529 = vmatpush2.msra.mxu0 0.0
        %5530 = vmatprep.subr.mxu0 0.0
        %5531 = vmatpush2.msra.mxu0 0.0
        %5532 = vmatprep.subr.mxu0 0.0
        %5533 = vmatpush2.msra.mxu0 0.0
        %5534 = vmatprep.subr.mxu0 0.0
        %5535 = vmatpush2.msra.mxu0 0.0
        %5536 = vmatprep.subr.mxu0 0.0
        %5537 = vmatpush2.msra.mxu0 0.0
        %5538 = vmatprep.subr.mxu0 0.0
        %5539 = vmatpush2.msra.mxu0 0.0
        %5540 = vmatprep.mubr.f32.mxu0 0.0
        %v5541 = vand.u32 %v5375, 4294901760
        %5542 = vmatmul.mubr.f32.gmra.mxu0 %v5541
        %v5543 = vpop.f32.mrf.mxu0
        %v5544 = vadd.f32 %v5453, %v5543
        %v5545 = vpop.f32.mrf.mxu0
        %5546 = vdwg.mxu0
        %5547 = vmatprep.subr.mxu0 0.0
        %5548 = vmatpush1.msra.mxu0 0.0
        %5549 = vmatprep.subr.mxu0 0.0
        %5550 = vmatpush1.msra.mxu0 0.0
        %5551 = vmatprep.subr.mxu0 0.0
        %5552 = vmatpush1.msra.mxu0 0.0
        %5553 = vmatprep.subr.mxu0 0.0
        %5554 = vmatpush1.msra.mxu0 0.0
        %5555 = vmatprep.subr.mxu0 0.0
        %5556 = vmatpush1.msra.mxu0 0.0
        %5557 = vmatprep.subr.mxu0 0.0
        %5558 = vmatpush1.msra.mxu0 0.0
        %5559 = vmatprep.subr.mxu0 0.0
        %5560 = vmatpush1.msra.mxu0 0.0
        %5561 = vmatprep.subr.mxu0 0.0
        %5562 = vmatpush1.msra.mxu0 0.0
        %5563 = vmatprep.subr.mxu0 0.0
        %5564 = vmatpush1.msra.mxu0 0.0
        %5565 = vmatprep.subr.mxu0 0.0
        %5566 = vmatpush1.msra.mxu0 0.0
        %5567 = vmatprep.subr.mxu0 0.0
        %5568 = vmatpush1.msra.mxu0 0.0
        %5569 = vmatprep.subr.mxu0 0.0
        %5570 = vmatpush1.msra.mxu0 0.0
        %5571 = vmatprep.subr.mxu0 0.0
        %v5572 = vand.u32 %v5373, 4294901760
        %v5573 = vsub.f32 %v5373, %v5572
        %5574 = vmatpush1.msra.mxu0 %v5573
        %5575 = vmatprep.subr.mxu0 0.0
        %v5576 = vand.u32 %v5372, 4294901760
        %v5577 = vsub.f32 %v5372, %v5576
        %5578 = vmatpush1.msra.mxu0 %v5577
        %5579 = vmatprep.subr.mxu0 0.0
        %v5580 = vand.u32 %v5371, 4294901760
        %v5581 = vsub.f32 %v5371, %v5580
        %5582 = vmatpush1.msra.mxu0 %v5581
        %5583 = vmatprep.subr.mxu0 0.0
        %v5584 = vand.u32 %v5370, 4294901760
        %v5585 = vsub.f32 %v5370, %v5584
        %5586 = vmatpush1.msra.mxu0 %v5585
        %5587 = vmatprep.subr.mxu0 0.0
        %5588 = vmatpush2.msra.mxu0 0.0
        %5589 = vmatprep.subr.mxu0 0.0
        %5590 = vmatpush2.msra.mxu0 0.0
        %5591 = vmatprep.subr.mxu0 0.0
        %5592 = vmatpush2.msra.mxu0 0.0
        %5593 = vmatprep.subr.mxu0 0.0
        %5594 = vmatpush2.msra.mxu0 0.0
        %5595 = vmatprep.subr.mxu0 0.0
        %5596 = vmatpush2.msra.mxu0 0.0
        %5597 = vmatprep.subr.mxu0 0.0
        %5598 = vmatpush2.msra.mxu0 0.0
        %5599 = vmatprep.subr.mxu0 0.0
        %5600 = vmatpush2.msra.mxu0 0.0
        %5601 = vmatprep.subr.mxu0 0.0
        %5602 = vmatpush2.msra.mxu0 0.0
        %5603 = vmatprep.subr.mxu0 0.0
        %5604 = vmatpush2.msra.mxu0 0.0
        %5605 = vmatprep.subr.mxu0 0.0
        %5606 = vmatpush2.msra.mxu0 0.0
        %5607 = vmatprep.subr.mxu0 0.0
        %5608 = vmatpush2.msra.mxu0 0.0
        %5609 = vmatprep.subr.mxu0 0.0
        %5610 = vmatpush2.msra.mxu0 0.0
        %5611 = vmatprep.subr.mxu0 0.0
        %5612 = vmatpush2.msra.mxu0 0.0
        %5613 = vmatprep.subr.mxu0 0.0
        %5614 = vmatpush2.msra.mxu0 0.0
        %5615 = vmatprep.subr.mxu0 0.0
        %5616 = vmatpush2.msra.mxu0 0.0
        %5617 = vmatprep.subr.mxu0 0.0
        %5618 = vmatpush2.msra.mxu0 0.0
        %5619 = vmatprep.mubr.f32.mxu0 0.0
        %v5620 = vand.u32 %v5375, 4294901760
        %v5621 = vsub.f32 %v5375, %v5620
        %5622 = vmatmul.mubr.f32.gmra.mxu0 %v5621
        %v5623 = vpop.f32.mrf.mxu0
        %v5624 = vadd.f32 %v5544, %v5623
        %v5625 = vpop.f32.mrf.mxu0
        %5626 = vdwg.mxu0
        %5627 = vmatprep.subr.mxu0 0.0
        %5628 = vmatpush1.msra.mxu0 0.0
        %5629 = vmatprep.subr.mxu0 0.0
        %5630 = vmatpush1.msra.mxu0 0.0
        %5631 = vmatprep.subr.mxu0 0.0
        %5632 = vmatpush1.msra.mxu0 0.0
        %5633 = vmatprep.subr.mxu0 0.0
        %5634 = vmatpush1.msra.mxu0 0.0
        %5635 = vmatprep.subr.mxu0 0.0
        %5636 = vmatpush1.msra.mxu0 0.0
        %5637 = vmatprep.subr.mxu0 0.0
        %5638 = vmatpush1.msra.mxu0 0.0
        %5639 = vmatprep.subr.mxu0 0.0
        %5640 = vmatpush1.msra.mxu0 0.0
        %5641 = vmatprep.subr.mxu0 0.0
        %5642 = vmatpush1.msra.mxu0 0.0
        %5643 = vmatprep.subr.mxu0 0.0
        %5644 = vmatpush1.msra.mxu0 0.0
        %5645 = vmatprep.subr.mxu0 0.0
        %5646 = vmatpush1.msra.mxu0 0.0
        %5647 = vmatprep.subr.mxu0 0.0
        %5648 = vmatpush1.msra.mxu0 0.0
        %5649 = vmatprep.subr.mxu0 0.0
        %5650 = vmatpush1.msra.mxu0 0.0
        %5651 = vmatprep.subr.mxu0 0.0
        %v5652 = vand.u32 %v5373, 4294901760
        %5653 = vmatpush1.msra.mxu0 %v5652
        %5654 = vmatprep.subr.mxu0 0.0
        %v5655 = vand.u32 %v5372, 4294901760
        %5656 = vmatpush1.msra.mxu0 %v5655
        %5657 = vmatprep.subr.mxu0 0.0
        %v5658 = vand.u32 %v5371, 4294901760
        %5659 = vmatpush1.msra.mxu0 %v5658
        %5660 = vmatprep.subr.mxu0 0.0
        %v5661 = vand.u32 %v5370, 4294901760
        %5662 = vmatpush1.msra.mxu0 %v5661
        %5663 = vmatprep.subr.mxu0 0.0
        %5664 = vmatpush2.msra.mxu0 0.0
        %5665 = vmatprep.subr.mxu0 0.0
        %5666 = vmatpush2.msra.mxu0 0.0
        %5667 = vmatprep.subr.mxu0 0.0
        %5668 = vmatpush2.msra.mxu0 0.0
        %5669 = vmatprep.subr.mxu0 0.0
        %5670 = vmatpush2.msra.mxu0 0.0
        %5671 = vmatprep.subr.mxu0 0.0
        %5672 = vmatpush2.msra.mxu0 0.0
        %5673 = vmatprep.subr.mxu0 0.0
        %5674 = vmatpush2.msra.mxu0 0.0
        %5675 = vmatprep.subr.mxu0 0.0
        %5676 = vmatpush2.msra.mxu0 0.0
        %5677 = vmatprep.subr.mxu0 0.0
        %5678 = vmatpush2.msra.mxu0 0.0
        %5679 = vmatprep.subr.mxu0 0.0
        %5680 = vmatpush2.msra.mxu0 0.0
        %5681 = vmatprep.subr.mxu0 0.0
        %5682 = vmatpush2.msra.mxu0 0.0
        %5683 = vmatprep.subr.mxu0 0.0
        %5684 = vmatpush2.msra.mxu0 0.0
        %5685 = vmatprep.subr.mxu0 0.0
        %5686 = vmatpush2.msra.mxu0 0.0
        %5687 = vmatprep.subr.mxu0 0.0
        %5688 = vmatpush2.msra.mxu0 0.0
        %5689 = vmatprep.subr.mxu0 0.0
        %5690 = vmatpush2.msra.mxu0 0.0
        %5691 = vmatprep.subr.mxu0 0.0
        %5692 = vmatpush2.msra.mxu0 0.0
        %5693 = vmatprep.subr.mxu0 0.0
        %5694 = vmatpush2.msra.mxu0 0.0
        %5695 = vmatprep.mubr.f32.mxu0 0.0
        %v5696 = vand.u32 %v5375, 4294901760
        %v5697 = vsub.f32 %v5375, %v5696
        %v5698 = vand.u32 %v5697, 4294901760
        %5699 = vmatmul.mubr.f32.gmra.mxu0 %v5698
        %v5700 = vpop.f32.mrf.mxu0
        %v5701 = vadd.f32 %v5624, %v5700
        %v5702 = vpop.f32.mrf.mxu0
        %5703 = vdwg.mxu0
        %5704 = vmatprep.subr.mxu0 0.0
        %5705 = vmatpush1.msra.mxu0 0.0
        %5706 = vmatprep.subr.mxu0 0.0
        %5707 = vmatpush1.msra.mxu0 0.0
        %5708 = vmatprep.subr.mxu0 0.0
        %5709 = vmatpush1.msra.mxu0 0.0
        %5710 = vmatprep.subr.mxu0 0.0
        %5711 = vmatpush1.msra.mxu0 0.0
        %5712 = vmatprep.subr.mxu0 0.0
        %5713 = vmatpush1.msra.mxu0 0.0
        %5714 = vmatprep.subr.mxu0 0.0
        %5715 = vmatpush1.msra.mxu0 0.0
        %5716 = vmatprep.subr.mxu0 0.0
        %5717 = vmatpush1.msra.mxu0 0.0
        %5718 = vmatprep.subr.mxu0 0.0
        %5719 = vmatpush1.msra.mxu0 0.0
        %5720 = vmatprep.subr.mxu0 0.0
        %5721 = vmatpush1.msra.mxu0 0.0
        %5722 = vmatprep.subr.mxu0 0.0
        %5723 = vmatpush1.msra.mxu0 0.0
        %5724 = vmatprep.subr.mxu0 0.0
        %5725 = vmatpush1.msra.mxu0 0.0
        %5726 = vmatprep.subr.mxu0 0.0
        %5727 = vmatpush1.msra.mxu0 0.0
        %5728 = vmatprep.subr.mxu0 0.0
        %v5729 = vand.u32 %v5373, 4294901760
        %v5730 = vsub.f32 %v5373, %v5729
        %v5731 = vand.u32 %v5730, 4294901760
        %5732 = vmatpush1.msra.mxu0 %v5731
        %5733 = vmatprep.subr.mxu0 0.0
        %v5734 = vand.u32 %v5372, 4294901760
        %v5735 = vsub.f32 %v5372, %v5734
        %v5736 = vand.u32 %v5735, 4294901760
        %5737 = vmatpush1.msra.mxu0 %v5736
        %5738 = vmatprep.subr.mxu0 0.0
        %v5739 = vand.u32 %v5371, 4294901760
        %v5740 = vsub.f32 %v5371, %v5739
        %v5741 = vand.u32 %v5740, 4294901760
        %5742 = vmatpush1.msra.mxu0 %v5741
        %5743 = vmatprep.subr.mxu0 0.0
        %v5744 = vand.u32 %v5370, 4294901760
        %v5745 = vsub.f32 %v5370, %v5744
        %v5746 = vand.u32 %v5745, 4294901760
        %5747 = vmatpush1.msra.mxu0 %v5746
        %5748 = vmatprep.subr.mxu0 0.0
        %5749 = vmatpush2.msra.mxu0 0.0
        %5750 = vmatprep.subr.mxu0 0.0
        %5751 = vmatpush2.msra.mxu0 0.0
        %5752 = vmatprep.subr.mxu0 0.0
        %5753 = vmatpush2.msra.mxu0 0.0
        %5754 = vmatprep.subr.mxu0 0.0
        %5755 = vmatpush2.msra.mxu0 0.0
        %5756 = vmatprep.subr.mxu0 0.0
        %5757 = vmatpush2.msra.mxu0 0.0
        %5758 = vmatprep.subr.mxu0 0.0
        %5759 = vmatpush2.msra.mxu0 0.0
        %5760 = vmatprep.subr.mxu0 0.0
        %5761 = vmatpush2.msra.mxu0 0.0
        %5762 = vmatprep.subr.mxu0 0.0
        %5763 = vmatpush2.msra.mxu0 0.0
        %5764 = vmatprep.subr.mxu0 0.0
        %5765 = vmatpush2.msra.mxu0 0.0
        %5766 = vmatprep.subr.mxu0 0.0
        %5767 = vmatpush2.msra.mxu0 0.0
        %5768 = vmatprep.subr.mxu0 0.0
        %5769 = vmatpush2.msra.mxu0 0.0
        %5770 = vmatprep.subr.mxu0 0.0
        %5771 = vmatpush2.msra.mxu0 0.0
        %5772 = vmatprep.subr.mxu0 0.0
        %5773 = vmatpush2.msra.mxu0 0.0
        %5774 = vmatprep.subr.mxu0 0.0
        %5775 = vmatpush2.msra.mxu0 0.0
        %5776 = vmatprep.subr.mxu0 0.0
        %5777 = vmatpush2.msra.mxu0 0.0
        %5778 = vmatprep.subr.mxu0 0.0
        %5779 = vmatpush2.msra.mxu0 0.0
        %5780 = vmatprep.mubr.f32.mxu0 0.0
        %v5781 = vand.u32 %v5375, 4294901760
        %5782 = vmatmul.mubr.f32.gmra.mxu0 %v5781
        %v5783 = vpop.f32.mrf.mxu0
        %v5784 = vadd.f32 %v5701, %v5783
        %v5785 = vpop.f32.mrf.mxu0
        %5786 = vdwg.mxu0
        %5787 = vmatprep.subr.mxu0 0.0
        %5788 = vmatpush1.msra.mxu0 0.0
        %5789 = vmatprep.subr.mxu0 0.0
        %5790 = vmatpush1.msra.mxu0 0.0
        %5791 = vmatprep.subr.mxu0 0.0
        %5792 = vmatpush1.msra.mxu0 0.0
        %5793 = vmatprep.subr.mxu0 0.0
        %5794 = vmatpush1.msra.mxu0 0.0
        %5795 = vmatprep.subr.mxu0 0.0
        %5796 = vmatpush1.msra.mxu0 0.0
        %5797 = vmatprep.subr.mxu0 0.0
        %5798 = vmatpush1.msra.mxu0 0.0
        %5799 = vmatprep.subr.mxu0 0.0
        %5800 = vmatpush1.msra.mxu0 0.0
        %5801 = vmatprep.subr.mxu0 0.0
        %5802 = vmatpush1.msra.mxu0 0.0
        %5803 = vmatprep.subr.mxu0 0.0
        %5804 = vmatpush1.msra.mxu0 0.0
        %5805 = vmatprep.subr.mxu0 0.0
        %5806 = vmatpush1.msra.mxu0 0.0
        %5807 = vmatprep.subr.mxu0 0.0
        %5808 = vmatpush1.msra.mxu0 0.0
        %5809 = vmatprep.subr.mxu0 0.0
        %5810 = vmatpush1.msra.mxu0 0.0
        %5811 = vmatprep.subr.mxu0 0.0
        %v5812 = vand.u32 %v5373, 4294901760
        %5813 = vmatpush1.msra.mxu0 %v5812
        %5814 = vmatprep.subr.mxu0 0.0
        %v5815 = vand.u32 %v5372, 4294901760
        %5816 = vmatpush1.msra.mxu0 %v5815
        %5817 = vmatprep.subr.mxu0 0.0
        %v5818 = vand.u32 %v5371, 4294901760
        %5819 = vmatpush1.msra.mxu0 %v5818
        %5820 = vmatprep.subr.mxu0 0.0
        %v5821 = vand.u32 %v5370, 4294901760
        %5822 = vmatpush1.msra.mxu0 %v5821
        %5823 = vmatprep.subr.mxu0 0.0
        %5824 = vmatpush2.msra.mxu0 0.0
        %5825 = vmatprep.subr.mxu0 0.0
        %5826 = vmatpush2.msra.mxu0 0.0
        %5827 = vmatprep.subr.mxu0 0.0
        %5828 = vmatpush2.msra.mxu0 0.0
        %5829 = vmatprep.subr.mxu0 0.0
        %5830 = vmatpush2.msra.mxu0 0.0
        %5831 = vmatprep.subr.mxu0 0.0
        %5832 = vmatpush2.msra.mxu0 0.0
        %5833 = vmatprep.subr.mxu0 0.0
        %5834 = vmatpush2.msra.mxu0 0.0
        %5835 = vmatprep.subr.mxu0 0.0
        %5836 = vmatpush2.msra.mxu0 0.0
        %5837 = vmatprep.subr.mxu0 0.0
        %5838 = vmatpush2.msra.mxu0 0.0
        %5839 = vmatprep.subr.mxu0 0.0
        %5840 = vmatpush2.msra.mxu0 0.0
        %5841 = vmatprep.subr.mxu0 0.0
        %5842 = vmatpush2.msra.mxu0 0.0
        %5843 = vmatprep.subr.mxu0 0.0
        %5844 = vmatpush2.msra.mxu0 0.0
        %5845 = vmatprep.subr.mxu0 0.0
        %5846 = vmatpush2.msra.mxu0 0.0
        %5847 = vmatprep.subr.mxu0 0.0
        %5848 = vmatpush2.msra.mxu0 0.0
        %5849 = vmatprep.subr.mxu0 0.0
        %5850 = vmatpush2.msra.mxu0 0.0
        %5851 = vmatprep.subr.mxu0 0.0
        %5852 = vmatpush2.msra.mxu0 0.0
        %5853 = vmatprep.subr.mxu0 0.0
        %5854 = vmatpush2.msra.mxu0 0.0
        %5855 = vmatprep.mubr.f32.mxu0 0.0
        %v5856 = vand.u32 %v5375, 4294901760
        %5857 = vmatmul.mubr.f32.gmra.mxu0 %v5856
        %v5858 = vpop.f32.mrf.mxu0
        %v5859 = vadd.f32 %v5784, %v5858
        %v5860 = vpop.f32.mrf.mxu0
        %5861 = vdwg.mxu0
        %v5862 = vadd.f32 %v5368, %v5859
        %v5863 = vld [vmem:[%s7] sm:$0x1]
        %v5864 = vadd.f32 %v5862, %v5863
        %v5865 = vmax.f32 %v5864, 0.0
        %vm5866 = vcmask 32768
        %5867 = vst.msk [vmem:[%s308] sm:$0x1] %vm5866, %v5865
        %s5868 = sand.u32 %s208, 1
        %s5869 = scalar_lea.sflag [#allocation3], %s5868
        %s5870 = sand.u32 %s208, 1
        %s5871 = scalar_lea.vmem [#allocation2], %s5870
        // Predicated region
        $region53: #{mili_forward.1} parent=51 // pred_check
          %p5872 = pneg %p218
        $region54: #{mili_forward.1} parent=51 // pred_check_branch
          %5874 = sbr.rel (%p5872) target = $region56
        $region55: #{mili_forward.1} parent=51 // pred_region
          %s5876 = ssub.s32 16, 16
          %5877 = vsyncadd %s5869, %s5876
          %s5878 = smul.addr %s22, 16
          %s5879 = scalar_lea.hbm %s8, %s5878
          %s5881 = sshll.u32 %s5871, 4
          %s5882 = int_to_ptr.vmem [resolvable:$true] %s5881
          %5884 = dma.vmem_to_hbm [thread:$0]  %s5882, 16, %s5879, %s5869
        $region56: #{mili_forward.1} parent=51 // pred_fallthru
          _
      $region52: #{mili_forward.1} parent=5 // pred_fallthru
        _
      %p5885 = scmp.le.s32.totalorder 2, %s17
      // Predicated region
      $region57: #{mili_forward.1} parent=5 // pred_check
        %p5886 = pneg %p5885
      $region58: #{mili_forward.1} parent=5 // pred_check_branch
        %5888 = sbr.rel (%p5886) target = $region60
      $region59: #{mili_forward.1} parent=5 // pred_region
        %s5889 = ssub.s32 %s17, 2
        // Predicated region
        $region61: #{mili_forward.1} parent=59 // pred_check
          %p5890 = pneg %p224
        $region62: #{mili_forward.1} parent=59 // pred_check_branch
          %5892 = sbr.rel (%p5890) target = $region64
        $region63: #{mili_forward.1} parent=59 // pred_region
          %s5893 = sand.u32 %s209, 1
          %s5894 = scalar_lea.sflag [#allocation3], %s5893
          %s5895 = sand.u32 %s209, 1
          %s5896 = scalar_lea.vmem [#allocation2], %s5895
          %5897 = dma.done %s5894, 16
        $region64: #{mili_forward.1} parent=59 // pred_fallthru
          _
      $region60: #{mili_forward.1} parent=5 // pred_fallthru
        _
    $region6: #{mili_forward.1} parent=1 // loop_footer
      %s21 = sadd.s32 1, %s17
    $region7: #{mili_forward.1} parent=1 // loop_footer_branch
      %16 = sbr.rel target = $region3
    $region8: #{mili_forward.1} parent=1 // loop_exit
      _
    %5898 = vsyncpa [#allocation3], 1
    %s5899 = scalar_lea.sflag [#allocation3], 1
    %5900 = vsyncpa %s5899, 1

</llo_original>
